<compile_context>
chip_gen: v7x
topology: tpu7x:2x2x1
jax: 0.10.0
libtpu: 0.0.40
codegen_flags: <defaults>
</compile_context>

<pallas_src>
import functools

import jax
import jax.numpy as jnp
from jax.experimental import pallas as pl
from jax.experimental.pallas import tpu as pltpu


def _ftl_kernel(x_ref, lh_ref, lhi_ref, rw_ref, wc_ref, b_ref, o_ref, *, inv_hw):
    # x_ref  : (H, B*C*W)        input slab, lanes = (b, c, w)
    # lh_ref : (2H, H)           [C_H; S_H] stacked H-axis DFT
    # lhi_ref: (6H, H)           [RS_0 C_H; RS_1 C_H; RS_2 C_H; RS_0 S_H; ...] inverse DFT
    #                            with the 3 vertical conv taps (row shifts) folded in
    # rw_ref : (B*C*W, 2*B*C*W)  block-diagonal [C_W | S_W] W-axis DFT
    # wc_ref : (3*B*C*W, B*Cout*W) folded 3x3-conv weights (channel mix + horiz taps)
    # b_ref  : (1, B*Cout*W)     bias, lane layout (b, o, w)
    # o_ref  : (H, B*Cout*W)
    f32 = jnp.float32
    hp = jax.lax.Precision.HIGHEST
    h, n = x_ref.shape

    x = x_ref[...]

    # ---- amp = |fft2(x)| -----------------------------------------------------
    u = jnp.dot(x, rw_ref[...], preferred_element_type=f32, precision=hp)   # (h, 2n)
    t = jnp.dot(lh_ref[...], u, preferred_element_type=f32, precision=hp)   # (2h, 2n)
    re = t[:h, :n] - t[h:, n:]            # C_H x C_W - S_H x S_W
    im = t[:h, n:] + t[h:, :n]            # C_H x S_W + S_H x C_W (sign-free for abs)
    amp = jnp.sqrt(re * re + im * im)                                        # (h, n)

    # ---- real(ifft2(amp)) with the three conv row-shifts folded into lhi -----
    v = jnp.dot(amp, rw_ref[...], preferred_element_type=f32, precision=hp)  # (h, 2n)
    z = jnp.dot(lhi_ref[...], v, preferred_element_type=f32, precision=hp)   # (6h, 2n)
    xsh = jnp.concatenate(
        [z[j * h:(j + 1) * h, :n] - z[(3 + j) * h:(4 + j) * h, n:]
         for j in range(3)], axis=1) * inv_hw                                # (h, 3n)

    # ---- 3x3 conv (channel mix + horizontal taps), bias, ReLU ---------------
    y = jnp.dot(xsh, wc_ref[...], preferred_element_type=f32)                # (h, B*Cout*W)
    o_ref[...] = jnp.maximum(y + b_ref[...], 0.0).astype(o_ref.dtype)


def _dft_mats(n, dtype=jnp.float32):
    k = jnp.arange(n, dtype=jnp.float32)
    ang = 2.0 * jnp.pi * (k[:, None] * k[None, :]) / n
    return jnp.cos(ang).astype(dtype), jnp.sin(ang).astype(dtype)


def _row_shift_mats(n, dtype=jnp.float32):
    """S[d][i, j] = 1 if j == i + (d - 1) : (S[d] @ X)[i] = X[i+d-1] (0 outside)."""
    i = jnp.arange(n)
    return jnp.stack(
        [(i[None, :] == i[:, None] + (d - 1)) for d in range(3)]).astype(dtype)


def frequency_transformation_layer(x, conv_w, conv_b):
    """x: (B, C, H, W) f32; conv_w: (C_out, C_in, 3, 3); conv_b: (C_out,)."""
    b, c_in, h, w = x.shape
    c_out = conv_w.shape[0]
    f32 = jnp.float32
    x = x.astype(f32)
    conv_w = conv_w.astype(f32)
    conv_b = conv_b.astype(f32)

    ch, sh = _dft_mats(h)
    cw, sw = _dft_mats(w)
    rs_h = _row_shift_mats(h)                              # (3, H, H) row shifts
    cs_w = jnp.swapaxes(_row_shift_mats(w), 1, 2)          # (3, W, W) column shifts

    # Input slab: rows = H, lanes = (b, c, w).
    x2d = jnp.transpose(x, (2, 0, 1, 3)).reshape(h, b * c_in * w)

    # H-axis forward DFT, cos/sin stacked -> (2H, H).
    lh = jnp.concatenate([ch, sh], axis=0)

    # H-axis inverse DFT with the 3 vertical conv taps folded in -> (6H, H).
    rs_c = jnp.einsum('dij,jk->dik', rs_h, ch).reshape(3 * h, h)
    rs_s = jnp.einsum('dij,jk->dik', rs_h, sh).reshape(3 * h, h)
    lhi = jnp.concatenate([rs_c, rs_s], axis=0)

    # W-axis DFT, block-diagonal over (b, c): rows (b,c,w_in), cols (cos|sin, b,c,w_out).
    rw_small = jnp.stack([cw, sw], axis=0)                 # (2, W, W)
    eye_bc = jnp.eye(b * c_in, dtype=f32)
    rwbd = jnp.einsum('pq,tiw->pitqw', eye_bc, rw_small).reshape(
        b * c_in * w, 2 * b * c_in * w)

    # 3x3-conv weights (channel mixing + horizontal taps), block-diag over batch:
    # rows (dh, b, c, w_in), cols (b, o, w_out).
    m_w = jnp.einsum('ocde,eiw->dciow', conv_w, cs_w)      # (3, C, W, Cout, W)
    w_small = m_w.reshape(3, c_in * w, c_out * w)
    eye_b = jnp.eye(b, dtype=f32)
    wconv = jnp.einsum('ab,dkn->dakbn', eye_b, w_small).reshape(
        3 * b * c_in * w, b * c_out * w)

    bias_row = jnp.broadcast_to(conv_b[None, :, None],
                                (b, c_out, w)).reshape(1, b * c_out * w)

    n_in = b * c_in * w
    n_out = b * c_out * w
    flops = 2 * (h * n_in * 2 * n_in            # x @ RWbd
                 + 2 * h * h * 2 * n_in         # LH @ u
                 + h * n_in * 2 * n_in          # amp @ RWbd
                 + 6 * h * h * 2 * n_in         # LHI @ v
                 + h * 3 * n_in * n_out)        # conv matmul
    cost = pl.CostEstimate(
        flops=int(flops),
        transcendentals=int(h * n_in),
        bytes_accessed=int(4 * (x2d.size + lh.size + lhi.size + rwbd.size
                                + wconv.size + bias_row.size + h * n_out)))

    vmem = pltpu.MemorySpace.VMEM
    out2d = pl.pallas_call(
        functools.partial(_ftl_kernel, inv_hw=1.0 / (h * w)),
        out_shape=jax.ShapeDtypeStruct((h, n_out), f32),
        in_specs=[pl.BlockSpec(memory_space=vmem)] * 6,
        out_specs=pl.BlockSpec(memory_space=vmem),
        cost_estimate=cost,
    )(x2d, lh, lhi, rwbd, wconv, bias_row)

    # Lane-dense kernel output (H, B*Cout*W) -> (B, Cout, H, W) in the wrapper.
    return out2d.reshape(h, b, c_out, w).transpose(1, 2, 0, 3)


if __name__ == "__main__":
    key = jax.random.PRNGKey(0)
    k_x, k_w, k_b = jax.random.split(key, 3)

    B, C, H, W = 2, 4, 16, 16
    x = jax.random.normal(k_x, (B, C, H, W), dtype=jnp.float32)
    # Conv2d(C, C, 3, padding=1) parameters (PyTorch-style U(-k, k) init).
    kinit = 1.0 / (C * 9) ** 0.5
    conv_w = jax.random.uniform(k_w, (C, C, 3, 3), jnp.float32, -kinit, kinit)
    conv_b = jax.random.uniform(k_b, (C,), jnp.float32, -kinit, kinit)

    out = frequency_transformation_layer(x, conv_w, conv_b)
    out = jax.block_until_ready(out)

    # Plain-JAX reference: fft2 -> abs -> ifft2.real -> conv3x3(pad=1) -> relu.
    x_mod = jnp.real(jnp.fft.ifft2(jnp.abs(jnp.fft.fft2(x)))).astype(jnp.float32)
    y = jax.lax.conv_general_dilated(
        x_mod, conv_w, window_strides=(1, 1), padding=((1, 1), (1, 1)),
        dimension_numbers=("NCHW", "OIHW", "NCHW"),
        precision=jax.lax.Precision.HIGHEST)
    ref = jnp.maximum(y + conv_b[None, :, None, None], 0.0)

    err = float(jnp.max(jnp.abs(out - ref)))
    assert jnp.allclose(out, ref, atol=5e-2, rtol=5e-2), f"mismatch, max abs err {err}"
    print("KERNEL_OK")
</pallas_src>

<mosaic_0001>
module attributes {stable_mosaic.version = 11 : i64} {
  func.func @_ftl_kernel(%arg0: memref<16x128xf32, #tpu.memory_space<vmem>>, %arg1: memref<32x16xf32, #tpu.memory_space<vmem>>, %arg2: memref<96x16xf32, #tpu.memory_space<vmem>>, %arg3: memref<128x256xf32, #tpu.memory_space<vmem>>, %arg4: memref<384x128xf32, #tpu.memory_space<vmem>>, %arg5: memref<1x128xf32, #tpu.memory_space<vmem>>, %arg6: memref<16x128xf32, #tpu.memory_space<vmem>>) attributes {dimension_semantics = [], scalar_prefetch = 0 : i64, scratch_operands = 0 : i64, tpu.core_type = #tpu.core_type<tc>} {
    %c0 = arith.constant 0 : index
    %c0_0 = arith.constant 0 : index
    %0 = vector.load %arg0[%c0, %c0_0] : memref<16x128xf32, #tpu.memory_space<vmem>>, vector<16x128xf32>
    %c0_1 = arith.constant 0 : index
    %c0_2 = arith.constant 0 : index
    %1 = vector.load %arg3[%c0_1, %c0_2] : memref<128x256xf32, #tpu.memory_space<vmem>>, vector<128x256xf32>
    %cst = arith.constant dense<0.000000e+00> : vector<16x256xf32>
    %2 = tpu.matmul %0, %1, %cst {dimension_numbers = #tpu.dot_dimension_numbers<[1], [0], [0], [1], [0, 0, 1, 1], [], []>, precision = #tpu.contract_precision<fp32>} : vector<16x128xf32>, vector<128x256xf32>, vector<16x256xf32> -> vector<16x256xf32>
    %c0_3 = arith.constant 0 : index
    %c0_4 = arith.constant 0 : index
    %3 = vector.load %arg1[%c0_3, %c0_4] : memref<32x16xf32, #tpu.memory_space<vmem>>, vector<32x16xf32>
    %cst_5 = arith.constant dense<0.000000e+00> : vector<32x256xf32>
    %4 = tpu.matmul %3, %2, %cst_5 {dimension_numbers = #tpu.dot_dimension_numbers<[1], [0], [0], [1], [0, 0, 1, 1], [], []>, precision = #tpu.contract_precision<fp32>} : vector<32x16xf32>, vector<16x256xf32>, vector<32x256xf32> -> vector<32x256xf32>
    %5 = vector.extract_strided_slice %4 {offsets = [0, 0], sizes = [16, 128], strides = [1, 1]} : vector<32x256xf32> to vector<16x128xf32>
    %6 = vector.extract_strided_slice %4 {offsets = [16, 128], sizes = [16, 128], strides = [1, 1]} : vector<32x256xf32> to vector<16x128xf32>
    %7 = arith.subf %5, %6 : vector<16x128xf32>
    %8 = vector.extract_strided_slice %4 {offsets = [0, 128], sizes = [16, 128], strides = [1, 1]} : vector<32x256xf32> to vector<16x128xf32>
    %9 = vector.extract_strided_slice %4 {offsets = [16, 0], sizes = [16, 128], strides = [1, 1]} : vector<32x256xf32> to vector<16x128xf32>
    %10 = arith.addf %8, %9 : vector<16x128xf32>
    %11 = arith.mulf %7, %7 : vector<16x128xf32>
    %12 = arith.mulf %10, %10 : vector<16x128xf32>
    %13 = arith.addf %11, %12 : vector<16x128xf32>
    %14 = math.sqrt %13 : vector<16x128xf32>
    %c0_6 = arith.constant 0 : index
    %c0_7 = arith.constant 0 : index
    %15 = vector.load %arg3[%c0_6, %c0_7] : memref<128x256xf32, #tpu.memory_space<vmem>>, vector<128x256xf32>
    %cst_8 = arith.constant dense<0.000000e+00> : vector<16x256xf32>
    %16 = tpu.matmul %14, %15, %cst_8 {dimension_numbers = #tpu.dot_dimension_numbers<[1], [0], [0], [1], [0, 0, 1, 1], [], []>, precision = #tpu.contract_precision<fp32>} : vector<16x128xf32>, vector<128x256xf32>, vector<16x256xf32> -> vector<16x256xf32>
    %c0_9 = arith.constant 0 : index
    %c0_10 = arith.constant 0 : index
    %17 = vector.load %arg2[%c0_9, %c0_10] : memref<96x16xf32, #tpu.memory_space<vmem>>, vector<96x16xf32>
    %cst_11 = arith.constant dense<0.000000e+00> : vector<96x256xf32>
    %18 = tpu.matmul %17, %16, %cst_11 {dimension_numbers = #tpu.dot_dimension_numbers<[1], [0], [0], [1], [0, 0, 1, 1], [], []>, precision = #tpu.contract_precision<fp32>} : vector<96x16xf32>, vector<16x256xf32>, vector<96x256xf32> -> vector<96x256xf32>
    %19 = vector.extract_strided_slice %18 {offsets = [0, 0], sizes = [16, 128], strides = [1, 1]} : vector<96x256xf32> to vector<16x128xf32>
    %20 = vector.extract_strided_slice %18 {offsets = [48, 128], sizes = [16, 128], strides = [1, 1]} : vector<96x256xf32> to vector<16x128xf32>
    %21 = arith.subf %19, %20 : vector<16x128xf32>
    %22 = vector.extract_strided_slice %18 {offsets = [16, 0], sizes = [16, 128], strides = [1, 1]} : vector<96x256xf32> to vector<16x128xf32>
    %23 = vector.extract_strided_slice %18 {offsets = [64, 128], sizes = [16, 128], strides = [1, 1]} : vector<96x256xf32> to vector<16x128xf32>
    %24 = arith.subf %22, %23 : vector<16x128xf32>
    %25 = vector.extract_strided_slice %18 {offsets = [32, 0], sizes = [16, 128], strides = [1, 1]} : vector<96x256xf32> to vector<16x128xf32>
    %26 = vector.extract_strided_slice %18 {offsets = [80, 128], sizes = [16, 128], strides = [1, 1]} : vector<96x256xf32> to vector<16x128xf32>
    %27 = arith.subf %25, %26 : vector<16x128xf32>
    %28 = tpu.concatenate %21, %24, %27 in 1 : vector<16x128xf32>, vector<16x128xf32>, vector<16x128xf32> -> vector<16x384xf32>
    %cst_12 = arith.constant 3.906250e-03 : f32
    %29 = vector.broadcast %cst_12 : f32 to vector<16x384xf32>
    %30 = arith.mulf %28, %29 : vector<16x384xf32>
    %c0_13 = arith.constant 0 : index
    %c0_14 = arith.constant 0 : index
    %31 = vector.load %arg4[%c0_13, %c0_14] : memref<384x128xf32, #tpu.memory_space<vmem>>, vector<384x128xf32>
    %cst_15 = arith.constant dense<0.000000e+00> : vector<16x128xf32>
    %32 = tpu.matmul %30, %31, %cst_15 {dimension_numbers = #tpu.dot_dimension_numbers<[1], [0], [0], [1], [0, 0, 1, 1], [], []>} : vector<16x384xf32>, vector<384x128xf32>, vector<16x128xf32> -> vector<16x128xf32>
    %c0_16 = arith.constant 0 : index
    %c0_17 = arith.constant 0 : index
    %33 = vector.load %arg5[%c0_16, %c0_17] : memref<1x128xf32, #tpu.memory_space<vmem>>, vector<1x128xf32>
    %34 = vector.broadcast %33 : vector<1x128xf32> to vector<16x128xf32>
    %35 = arith.addf %32, %34 : vector<16x128xf32>
    %cst_18 = arith.constant 0.000000e+00 : f32
    %36 = vector.broadcast %cst_18 : f32 to vector<16x128xf32>
    %37 = arith.maximumf %35, %36 : vector<16x128xf32>
    %c0_19 = arith.constant 0 : index
    %c0_20 = arith.constant 0 : index
    %38 = vector.load %arg6[%c0_19, %c0_20] : memref<16x128xf32, #tpu.memory_space<vmem>>, vector<16x128xf32>
    tpu.vector_store %arg6[%c0_19, %c0_20], %37 {strides = array<i32>} : memref<16x128xf32, #tpu.memory_space<vmem>>, vector<16x128xf32>,
    return
  }
}

</mosaic_0001>

<llo_original>
// kernel: tpu_custom_call.1
$region0: #{tpu_custom_call.1}
  #allocation0 [shape = 'u32[]', space=smem, size = 0x4, offset = 0x4, fixed_abs, tag = 'smem constant byte address 0x4 - core index']
  #allocation1 [shape = 'u32[144,128]{1,0:T(1,128)}', space=vmem, size = 0x12000, scoped, tag = 'internal scratch']
  %s0 = inlined_call_operand.vmem [shape: f32[16,128], index: 0, kind: input, shape index: {}]
  %s1 = inlined_call_operand.vmem [shape: f32[32,16], index: 1, kind: input, shape index: {}]
  %s2 = inlined_call_operand.vmem [shape: f32[96,16], index: 2, kind: input, shape index: {}]
  %s3 = inlined_call_operand.hbm [shape: f32[128,256], index: 3, kind: input, shape index: {}]
  %s4 = inlined_call_operand.hbm [shape: f32[384,128], index: 4, kind: input, shape index: {}]
  %s5 = inlined_call_operand.vmem [shape: f32[1,128], index: 5, kind: input, shape index: {}]
  %s6 = inlined_call_operand.hbm [shape: f32[16,128], index: 6, kind: output, shape index: {}]
  %s7 = sld [smem:[#allocation0]]
  $region42: #{tpu_custom_call.1} parent=0
    _
  %s9 = ssub.s32 1, %s7
  %s10 = scalar_select 0, %s9, %s7
  $region1: #{tpu_custom_call.1} parent=0
    #allocation2 [shape = 'u8[131072]{0}', space=vmem, size = 0x20000, scoped, tag = 'input window, operand 3, single buffered']
    #allocation3 [shape = 's32[1]{0}', space=sflag, size = 0x4, scoped, tag = 'scoped memory for tpu_custom_call.1']
    #allocation4 [shape = 's32[1]{0}', space=sflag, size = 0x4, scoped, tag = 'scoped memory for tpu_custom_call.1']
    #allocation5 [shape = 'u8[196608]{0}', space=vmem, size = 0x30000, scoped, tag = 'input window, operand 4, single buffered']
    #allocation6 [shape = 's32[1]{0}', space=sflag, size = 0x4, scoped, tag = 'scoped memory for tpu_custom_call.1']
    #allocation7 [shape = 'u8[8192]{0}', space=vmem, size = 0x2000, scoped, tag = 'output window, operand 0, single buffered']
    %11 = vsyncpa [#allocation3], 0
    %12 = vsyncpa [#allocation6], 0
    %13 = vsyncpa [#allocation4], 0
    // Predicated region
    $region2: #{tpu_custom_call.1} parent=1 // pred_check
      _
    $region3: #{tpu_custom_call.1} parent=1 // pred_check_branch
      %15 = sbr.rel (0) target = $region5
    $region4: #{tpu_custom_call.1} parent=1 // pred_region
      _
    $region5: #{tpu_custom_call.1} parent=1 // pred_fallthru
      _
    // Predicated region
    $region6: #{tpu_custom_call.1} parent=1 // pred_check
      _
    $region7: #{tpu_custom_call.1} parent=1 // pred_check_branch
      %17 = sbr.rel (0) target = $region9
    $region8: #{tpu_custom_call.1} parent=1 // pred_region
      _
    $region9: #{tpu_custom_call.1} parent=1 // pred_fallthru
      _
    // Predicated region
    $region10: #{tpu_custom_call.1} parent=1 // pred_check
      _
    $region11: #{tpu_custom_call.1} parent=1 // pred_check_branch
      %19 = sbr.rel (0) target = $region13
    $region12: #{tpu_custom_call.1} parent=1 // pred_region
      _
    $region13: #{tpu_custom_call.1} parent=1 // pred_fallthru
      _
    // Predicated region
    $region14: #{tpu_custom_call.1} parent=1 // pred_check
      _
    $region15: #{tpu_custom_call.1} parent=1 // pred_check_branch
      %21 = sbr.rel (0) target = $region17
    $region16: #{tpu_custom_call.1} parent=1 // pred_region
      %s23 = ssub.s32 4096, 4096
      %24 = vsyncadd [#allocation3], %s23
      %s25 = sshll.u32 [#allocation2], 4
      %s26 = int_to_ptr.vmem [resolvable:$true] %s25
      %31 = dma.hbm_to_vmem [thread:$0]  %s3, 4096, %s26, [#allocation3], 256, 256, 16
    $region17: #{tpu_custom_call.1} parent=1 // pred_fallthru
      _
    // Predicated region
    $region18: #{tpu_custom_call.1} parent=1 // pred_check
      _
    $region19: #{tpu_custom_call.1} parent=1 // pred_check_branch
      %33 = sbr.rel (0) target = $region21
    $region20: #{tpu_custom_call.1} parent=1 // pred_region
      %s35 = ssub.s32 6144, 6144
      %36 = vsyncadd [#allocation6], %s35
      %s37 = sshll.u32 [#allocation5], 4
      %s38 = int_to_ptr.vmem [resolvable:$true] %s37
      %43 = dma.hbm_to_vmem [thread:$0]  %s4, 6144, %s38, [#allocation6], 128, 128, 8
    $region21: #{tpu_custom_call.1} parent=1 // pred_fallthru
      _
    // Predicated region
    $region22: #{tpu_custom_call.1} parent=1 // pred_check
      _
    $region23: #{tpu_custom_call.1} parent=1 // pred_check_branch
      %45 = sbr.rel (0) target = $region25
    $region24: #{tpu_custom_call.1} parent=1 // pred_region
      _
    $region25: #{tpu_custom_call.1} parent=1 // pred_fallthru
      _
    // Predicated region
    $region26: #{tpu_custom_call.1} parent=1 // pred_check
      _
    $region27: #{tpu_custom_call.1} parent=1 // pred_check_branch
      %47 = sbr.rel (0) target = $region29
    $region28: #{tpu_custom_call.1} parent=1 // pred_region
      %48 = dma.done [#allocation3], 4096
    $region29: #{tpu_custom_call.1} parent=1 // pred_fallthru
      _
    // Predicated region
    $region30: #{tpu_custom_call.1} parent=1 // pred_check
      _
    $region31: #{tpu_custom_call.1} parent=1 // pred_check_branch
      %50 = sbr.rel (0) target = $region33
    $region32: #{tpu_custom_call.1} parent=1 // pred_region
      %51 = dma.done [#allocation6], 6144
    $region33: #{tpu_custom_call.1} parent=1 // pred_fallthru
      _
    %v52 = vld [vmem:[%s0] sm:$0xff]
    %v53 = vld [vmem:[%s0 + $0x8] sm:$0xff]
    %v54 = vld [vmem:[#allocation2] sm:$0xff]
    %v55 = vld [vmem:[#allocation2 + $0x8] sm:$0xff]
    %v56 = vld [vmem:[#allocation2 + $0x10] sm:$0xff]
    %v57 = vld [vmem:[#allocation2 + $0x18] sm:$0xff]
    %v58 = vld [vmem:[#allocation2 + $0x20] sm:$0xff]
    %v59 = vld [vmem:[#allocation2 + $0x28] sm:$0xff]
    %v60 = vld [vmem:[#allocation2 + $0x30] sm:$0xff]
    %v61 = vld [vmem:[#allocation2 + $0x38] sm:$0xff]
    %v62 = vld [vmem:[#allocation2 + $0x40] sm:$0xff]
    %v63 = vld [vmem:[#allocation2 + $0x48] sm:$0xff]
    %v64 = vld [vmem:[#allocation2 + $0x50] sm:$0xff]
    %v65 = vld [vmem:[#allocation2 + $0x58] sm:$0xff]
    %v66 = vld [vmem:[#allocation2 + $0x60] sm:$0xff]
    %v67 = vld [vmem:[#allocation2 + $0x68] sm:$0xff]
    %v68 = vld [vmem:[#allocation2 + $0x70] sm:$0xff]
    %v69 = vld [vmem:[#allocation2 + $0x78] sm:$0xff]
    %v70 = vld [vmem:[#allocation2 + $0x80] sm:$0xff]
    %v71 = vld [vmem:[#allocation2 + $0x88] sm:$0xff]
    %v72 = vld [vmem:[#allocation2 + $0x90] sm:$0xff]
    %v73 = vld [vmem:[#allocation2 + $0x98] sm:$0xff]
    %v74 = vld [vmem:[#allocation2 + $0xa0] sm:$0xff]
    %v75 = vld [vmem:[#allocation2 + $0xa8] sm:$0xff]
    %v76 = vld [vmem:[#allocation2 + $0xb0] sm:$0xff]
    %v77 = vld [vmem:[#allocation2 + $0xb8] sm:$0xff]
    %v78 = vld [vmem:[#allocation2 + $0xc0] sm:$0xff]
    %v79 = vld [vmem:[#allocation2 + $0xc8] sm:$0xff]
    %v80 = vld [vmem:[#allocation2 + $0xd0] sm:$0xff]
    %v81 = vld [vmem:[#allocation2 + $0xd8] sm:$0xff]
    %v82 = vld [vmem:[#allocation2 + $0xe0] sm:$0xff]
    %v83 = vld [vmem:[#allocation2 + $0xe8] sm:$0xff]
    %v84 = vld [vmem:[#allocation2 + $0xf0] sm:$0xff]
    %v85 = vld [vmem:[#allocation2 + $0xf8] sm:$0xff]
    %v86 = vand.u32 %v55, 4294901760
    %87 = vmatprep.subr.mxu0 %v86
    %v88 = vand.u32 %v54, 4294901760
    %89 = vmatpush1.msra.mxu0 %v88
    %v90 = vand.u32 %v57, 4294901760
    %91 = vmatprep.subr.mxu0 %v90
    %v92 = vand.u32 %v56, 4294901760
    %93 = vmatpush1.msra.mxu0 %v92
    %v94 = vand.u32 %v59, 4294901760
    %95 = vmatprep.subr.mxu0 %v94
    %v96 = vand.u32 %v58, 4294901760
    %97 = vmatpush1.msra.mxu0 %v96
    %v98 = vand.u32 %v61, 4294901760
    %99 = vmatprep.subr.mxu0 %v98
    %v100 = vand.u32 %v60, 4294901760
    %101 = vmatpush1.msra.mxu0 %v100
    %v102 = vand.u32 %v63, 4294901760
    %103 = vmatprep.subr.mxu0 %v102
    %v104 = vand.u32 %v62, 4294901760
    %105 = vmatpush1.msra.mxu0 %v104
    %v106 = vand.u32 %v65, 4294901760
    %107 = vmatprep.subr.mxu0 %v106
    %v108 = vand.u32 %v64, 4294901760
    %109 = vmatpush1.msra.mxu0 %v108
    %v110 = vand.u32 %v67, 4294901760
    %111 = vmatprep.subr.mxu0 %v110
    %v112 = vand.u32 %v66, 4294901760
    %113 = vmatpush1.msra.mxu0 %v112
    %v114 = vand.u32 %v69, 4294901760
    %115 = vmatprep.subr.mxu0 %v114
    %v116 = vand.u32 %v68, 4294901760
    %117 = vmatpush1.msra.mxu0 %v116
    %v118 = vand.u32 %v71, 4294901760
    %119 = vmatprep.subr.mxu0 %v118
    %v120 = vand.u32 %v70, 4294901760
    %121 = vmatpush1.msra.mxu0 %v120
    %v122 = vand.u32 %v73, 4294901760
    %123 = vmatprep.subr.mxu0 %v122
    %v124 = vand.u32 %v72, 4294901760
    %125 = vmatpush1.msra.mxu0 %v124
    %v126 = vand.u32 %v75, 4294901760
    %127 = vmatprep.subr.mxu0 %v126
    %v128 = vand.u32 %v74, 4294901760
    %129 = vmatpush1.msra.mxu0 %v128
    %v130 = vand.u32 %v77, 4294901760
    %131 = vmatprep.subr.mxu0 %v130
    %v132 = vand.u32 %v76, 4294901760
    %133 = vmatpush1.msra.mxu0 %v132
    %v134 = vand.u32 %v79, 4294901760
    %135 = vmatprep.subr.mxu0 %v134
    %v136 = vand.u32 %v78, 4294901760
    %137 = vmatpush1.msra.mxu0 %v136
    %v138 = vand.u32 %v81, 4294901760
    %139 = vmatprep.subr.mxu0 %v138
    %v140 = vand.u32 %v80, 4294901760
    %141 = vmatpush1.msra.mxu0 %v140
    %v142 = vand.u32 %v83, 4294901760
    %143 = vmatprep.subr.mxu0 %v142
    %v144 = vand.u32 %v82, 4294901760
    %145 = vmatpush1.msra.mxu0 %v144
    %v146 = vand.u32 %v85, 4294901760
    %147 = vmatprep.subr.mxu0 %v146
    %v148 = vand.u32 %v84, 4294901760
    %149 = vmatpush1.msra.mxu0 %v148
    %150 = vmatprep.subr.mxu0 0.0
    %151 = vmatpush1.msra.mxu0 0.0
    %152 = vmatprep.subr.mxu0 0.0
    %153 = vmatpush1.msra.mxu0 0.0
    %154 = vmatprep.subr.mxu0 0.0
    %155 = vmatpush1.msra.mxu0 0.0
    %156 = vmatprep.subr.mxu0 0.0
    %157 = vmatpush1.msra.mxu0 0.0
    %158 = vmatprep.subr.mxu0 0.0
    %159 = vmatpush1.msra.mxu0 0.0
    %160 = vmatprep.subr.mxu0 0.0
    %161 = vmatpush1.msra.mxu0 0.0
    %162 = vmatprep.subr.mxu0 0.0
    %163 = vmatpush1.msra.mxu0 0.0
    %164 = vmatprep.subr.mxu0 0.0
    %165 = vmatpush1.msra.mxu0 0.0
    %166 = vmatprep.subr.mxu0 0.0
    %167 = vmatpush1.msra.mxu0 0.0
    %168 = vmatprep.subr.mxu0 0.0
    %169 = vmatpush1.msra.mxu0 0.0
    %170 = vmatprep.subr.mxu0 0.0
    %171 = vmatpush1.msra.mxu0 0.0
    %172 = vmatprep.subr.mxu0 0.0
    %173 = vmatpush1.msra.mxu0 0.0
    %174 = vmatprep.subr.mxu0 0.0
    %175 = vmatpush1.msra.mxu0 0.0
    %176 = vmatprep.subr.mxu0 0.0
    %177 = vmatpush1.msra.mxu0 0.0
    %178 = vmatprep.subr.mxu0 0.0
    %179 = vmatpush1.msra.mxu0 0.0
    %180 = vmatprep.subr.mxu0 0.0
    %181 = vmatpush1.msra.mxu0 0.0
    %182 = vmatprep.mubr.f32.mxu0 0.0
    %v183 = vand.u32 %v52, 4294901760
    %v184 = vsub.f32 %v52, %v183
    %v185 = vand.u32 %v184, 4294901760
    %v186 = vsub.f32 %v184, %v185
    %v187 = vand.u32 %v186, 4294901760
    %188 = vmatmul.mubr.f32.gmra.mrb[0].mxu0 %v187
    %v189 = vpop.f32.mrb[0].mxu0
    %v190 = vadd.f32 0.0, %v189
    %v191 = vpop.f32.mrb[0].mxu0
    %v192 = vadd.f32 0.0, %v191
    %193 = vmatprep.mubr.f32.mxu0 0.0
    %v194 = vand.u32 %v53, 4294901760
    %v195 = vsub.f32 %v53, %v194
    %v196 = vand.u32 %v195, 4294901760
    %v197 = vsub.f32 %v195, %v196
    %v198 = vand.u32 %v197, 4294901760
    %199 = vmatmul.mubr.f32.gmra.mrb[0].mxu0 %v198
    %v200 = vpop.f32.mrb[0].mxu0
    %v201 = vadd.f32 0.0, %v200
    %v202 = vpop.f32.mrb[0].mxu0
    %v203 = vadd.f32 0.0, %v202
    %204 = vdwg.mxu0
    %v205 = vand.u32 %v55, 4294901760
    %v206 = vsub.f32 %v55, %v205
    %v207 = vand.u32 %v206, 4294901760
    %v208 = vsub.f32 %v206, %v207
    %v209 = vand.u32 %v208, 4294901760
    %210 = vmatprep.subr.mxu0 %v209
    %v211 = vand.u32 %v54, 4294901760
    %v212 = vsub.f32 %v54, %v211
    %v213 = vand.u32 %v212, 4294901760
    %v214 = vsub.f32 %v212, %v213
    %v215 = vand.u32 %v214, 4294901760
    %216 = vmatpush1.msra.mxu0 %v215
    %v217 = vand.u32 %v57, 4294901760
    %v218 = vsub.f32 %v57, %v217
    %v219 = vand.u32 %v218, 4294901760
    %v220 = vsub.f32 %v218, %v219
    %v221 = vand.u32 %v220, 4294901760
    %222 = vmatprep.subr.mxu0 %v221
    %v223 = vand.u32 %v56, 4294901760
    %v224 = vsub.f32 %v56, %v223
    %v225 = vand.u32 %v224, 4294901760
    %v226 = vsub.f32 %v224, %v225
    %v227 = vand.u32 %v226, 4294901760
    %228 = vmatpush1.msra.mxu0 %v227
    %v229 = vand.u32 %v59, 4294901760
    %v230 = vsub.f32 %v59, %v229
    %v231 = vand.u32 %v230, 4294901760
    %v232 = vsub.f32 %v230, %v231
    %v233 = vand.u32 %v232, 4294901760
    %234 = vmatprep.subr.mxu0 %v233
    %v235 = vand.u32 %v58, 4294901760
    %v236 = vsub.f32 %v58, %v235
    %v237 = vand.u32 %v236, 4294901760
    %v238 = vsub.f32 %v236, %v237
    %v239 = vand.u32 %v238, 4294901760
    %240 = vmatpush1.msra.mxu0 %v239
    %v241 = vand.u32 %v61, 4294901760
    %v242 = vsub.f32 %v61, %v241
    %v243 = vand.u32 %v242, 4294901760
    %v244 = vsub.f32 %v242, %v243
    %v245 = vand.u32 %v244, 4294901760
    %246 = vmatprep.subr.mxu0 %v245
    %v247 = vand.u32 %v60, 4294901760
    %v248 = vsub.f32 %v60, %v247
    %v249 = vand.u32 %v248, 4294901760
    %v250 = vsub.f32 %v248, %v249
    %v251 = vand.u32 %v250, 4294901760
    %252 = vmatpush1.msra.mxu0 %v251
    %v253 = vand.u32 %v63, 4294901760
    %v254 = vsub.f32 %v63, %v253
    %v255 = vand.u32 %v254, 4294901760
    %v256 = vsub.f32 %v254, %v255
    %v257 = vand.u32 %v256, 4294901760
    %258 = vmatprep.subr.mxu0 %v257
    %v259 = vand.u32 %v62, 4294901760
    %v260 = vsub.f32 %v62, %v259
    %v261 = vand.u32 %v260, 4294901760
    %v262 = vsub.f32 %v260, %v261
    %v263 = vand.u32 %v262, 4294901760
    %264 = vmatpush1.msra.mxu0 %v263
    %v265 = vand.u32 %v65, 4294901760
    %v266 = vsub.f32 %v65, %v265
    %v267 = vand.u32 %v266, 4294901760
    %v268 = vsub.f32 %v266, %v267
    %v269 = vand.u32 %v268, 4294901760
    %270 = vmatprep.subr.mxu0 %v269
    %v271 = vand.u32 %v64, 4294901760
    %v272 = vsub.f32 %v64, %v271
    %v273 = vand.u32 %v272, 4294901760
    %v274 = vsub.f32 %v272, %v273
    %v275 = vand.u32 %v274, 4294901760
    %276 = vmatpush1.msra.mxu0 %v275
    %v277 = vand.u32 %v67, 4294901760
    %v278 = vsub.f32 %v67, %v277
    %v279 = vand.u32 %v278, 4294901760
    %v280 = vsub.f32 %v278, %v279
    %v281 = vand.u32 %v280, 4294901760
    %282 = vmatprep.subr.mxu0 %v281
    %v283 = vand.u32 %v66, 4294901760
    %v284 = vsub.f32 %v66, %v283
    %v285 = vand.u32 %v284, 4294901760
    %v286 = vsub.f32 %v284, %v285
    %v287 = vand.u32 %v286, 4294901760
    %288 = vmatpush1.msra.mxu0 %v287
    %v289 = vand.u32 %v69, 4294901760
    %v290 = vsub.f32 %v69, %v289
    %v291 = vand.u32 %v290, 4294901760
    %v292 = vsub.f32 %v290, %v291
    %v293 = vand.u32 %v292, 4294901760
    %294 = vmatprep.subr.mxu0 %v293
    %v295 = vand.u32 %v68, 4294901760
    %v296 = vsub.f32 %v68, %v295
    %v297 = vand.u32 %v296, 4294901760
    %v298 = vsub.f32 %v296, %v297
    %v299 = vand.u32 %v298, 4294901760
    %300 = vmatpush1.msra.mxu0 %v299
    %v301 = vand.u32 %v71, 4294901760
    %v302 = vsub.f32 %v71, %v301
    %v303 = vand.u32 %v302, 4294901760
    %v304 = vsub.f32 %v302, %v303
    %v305 = vand.u32 %v304, 4294901760
    %306 = vmatprep.subr.mxu0 %v305
    %v307 = vand.u32 %v70, 4294901760
    %v308 = vsub.f32 %v70, %v307
    %v309 = vand.u32 %v308, 4294901760
    %v310 = vsub.f32 %v308, %v309
    %v311 = vand.u32 %v310, 4294901760
    %312 = vmatpush1.msra.mxu0 %v311
    %v313 = vand.u32 %v73, 4294901760
    %v314 = vsub.f32 %v73, %v313
    %v315 = vand.u32 %v314, 4294901760
    %v316 = vsub.f32 %v314, %v315
    %v317 = vand.u32 %v316, 4294901760
    %318 = vmatprep.subr.mxu0 %v317
    %v319 = vand.u32 %v72, 4294901760
    %v320 = vsub.f32 %v72, %v319
    %v321 = vand.u32 %v320, 4294901760
    %v322 = vsub.f32 %v320, %v321
    %v323 = vand.u32 %v322, 4294901760
    %324 = vmatpush1.msra.mxu0 %v323
    %v325 = vand.u32 %v75, 4294901760
    %v326 = vsub.f32 %v75, %v325
    %v327 = vand.u32 %v326, 4294901760
    %v328 = vsub.f32 %v326, %v327
    %v329 = vand.u32 %v328, 4294901760
    %330 = vmatprep.subr.mxu0 %v329
    %v331 = vand.u32 %v74, 4294901760
    %v332 = vsub.f32 %v74, %v331
    %v333 = vand.u32 %v332, 4294901760
    %v334 = vsub.f32 %v332, %v333
    %v335 = vand.u32 %v334, 4294901760
    %336 = vmatpush1.msra.mxu0 %v335
    %v337 = vand.u32 %v77, 4294901760
    %v338 = vsub.f32 %v77, %v337
    %v339 = vand.u32 %v338, 4294901760
    %v340 = vsub.f32 %v338, %v339
    %v341 = vand.u32 %v340, 4294901760
    %342 = vmatprep.subr.mxu0 %v341
    %v343 = vand.u32 %v76, 4294901760
    %v344 = vsub.f32 %v76, %v343
    %v345 = vand.u32 %v344, 4294901760
    %v346 = vsub.f32 %v344, %v345
    %v347 = vand.u32 %v346, 4294901760
    %348 = vmatpush1.msra.mxu0 %v347
    %v349 = vand.u32 %v79, 4294901760
    %v350 = vsub.f32 %v79, %v349
    %v351 = vand.u32 %v350, 4294901760
    %v352 = vsub.f32 %v350, %v351
    %v353 = vand.u32 %v352, 4294901760
    %354 = vmatprep.subr.mxu0 %v353
    %v355 = vand.u32 %v78, 4294901760
    %v356 = vsub.f32 %v78, %v355
    %v357 = vand.u32 %v356, 4294901760
    %v358 = vsub.f32 %v356, %v357
    %v359 = vand.u32 %v358, 4294901760
    %360 = vmatpush1.msra.mxu0 %v359
    %v361 = vand.u32 %v81, 4294901760
    %v362 = vsub.f32 %v81, %v361
    %v363 = vand.u32 %v362, 4294901760
    %v364 = vsub.f32 %v362, %v363
    %v365 = vand.u32 %v364, 4294901760
    %366 = vmatprep.subr.mxu0 %v365
    %v367 = vand.u32 %v80, 4294901760
    %v368 = vsub.f32 %v80, %v367
    %v369 = vand.u32 %v368, 4294901760
    %v370 = vsub.f32 %v368, %v369
    %v371 = vand.u32 %v370, 4294901760
    %372 = vmatpush1.msra.mxu0 %v371
    %v373 = vand.u32 %v83, 4294901760
    %v374 = vsub.f32 %v83, %v373
    %v375 = vand.u32 %v374, 4294901760
    %v376 = vsub.f32 %v374, %v375
    %v377 = vand.u32 %v376, 4294901760
    %378 = vmatprep.subr.mxu0 %v377
    %v379 = vand.u32 %v82, 4294901760
    %v380 = vsub.f32 %v82, %v379
    %v381 = vand.u32 %v380, 4294901760
    %v382 = vsub.f32 %v380, %v381
    %v383 = vand.u32 %v382, 4294901760
    %384 = vmatpush1.msra.mxu0 %v383
    %v385 = vand.u32 %v85, 4294901760
    %v386 = vsub.f32 %v85, %v385
    %v387 = vand.u32 %v386, 4294901760
    %v388 = vsub.f32 %v386, %v387
    %v389 = vand.u32 %v388, 4294901760
    %390 = vmatprep.subr.mxu0 %v389
    %v391 = vand.u32 %v84, 4294901760
    %v392 = vsub.f32 %v84, %v391
    %v393 = vand.u32 %v392, 4294901760
    %v394 = vsub.f32 %v392, %v393
    %v395 = vand.u32 %v394, 4294901760
    %396 = vmatpush1.msra.mxu0 %v395
    %397 = vmatprep.subr.mxu0 0.0
    %398 = vmatpush1.msra.mxu0 0.0
    %399 = vmatprep.subr.mxu0 0.0
    %400 = vmatpush1.msra.mxu0 0.0
    %401 = vmatprep.subr.mxu0 0.0
    %402 = vmatpush1.msra.mxu0 0.0
    %403 = vmatprep.subr.mxu0 0.0
    %404 = vmatpush1.msra.mxu0 0.0
    %405 = vmatprep.subr.mxu0 0.0
    %406 = vmatpush1.msra.mxu0 0.0
    %407 = vmatprep.subr.mxu0 0.0
    %408 = vmatpush1.msra.mxu0 0.0
    %409 = vmatprep.subr.mxu0 0.0
    %410 = vmatpush1.msra.mxu0 0.0
    %411 = vmatprep.subr.mxu0 0.0
    %412 = vmatpush1.msra.mxu0 0.0
    %413 = vmatprep.subr.mxu0 0.0
    %414 = vmatpush1.msra.mxu0 0.0
    %415 = vmatprep.subr.mxu0 0.0
    %416 = vmatpush1.msra.mxu0 0.0
    %417 = vmatprep.subr.mxu0 0.0
    %418 = vmatpush1.msra.mxu0 0.0
    %419 = vmatprep.subr.mxu0 0.0
    %420 = vmatpush1.msra.mxu0 0.0
    %421 = vmatprep.subr.mxu0 0.0
    %422 = vmatpush1.msra.mxu0 0.0
    %423 = vmatprep.subr.mxu0 0.0
    %424 = vmatpush1.msra.mxu0 0.0
    %425 = vmatprep.subr.mxu0 0.0
    %426 = vmatpush1.msra.mxu0 0.0
    %427 = vmatprep.subr.mxu0 0.0
    %428 = vmatpush1.msra.mxu0 0.0
    %429 = vmatprep.mubr.f32.mxu0 0.0
    %v430 = vand.u32 %v52, 4294901760
    %431 = vmatmul.mubr.f32.gmra.mrb[0].mxu0 %v430
    %v432 = vpop.f32.mrb[0].mxu0
    %v433 = vadd.f32 %v190, %v432
    %v434 = vpop.f32.mrb[0].mxu0
    %v435 = vadd.f32 %v192, %v434
    %436 = vmatprep.mubr.f32.mxu0 0.0
    %v437 = vand.u32 %v53, 4294901760
    %438 = vmatmul.mubr.f32.gmra.mrb[0].mxu0 %v437
    %v439 = vpop.f32.mrb[0].mxu0
    %v440 = vadd.f32 %v201, %v439
    %v441 = vpop.f32.mrb[0].mxu0
    %v442 = vadd.f32 %v203, %v441
    %443 = vdwg.mxu0
    %v444 = vand.u32 %v55, 4294901760
    %v445 = vsub.f32 %v55, %v444
    %446 = vmatprep.subr.mxu0 %v445
    %v447 = vand.u32 %v54, 4294901760
    %v448 = vsub.f32 %v54, %v447
    %449 = vmatpush1.msra.mxu0 %v448
    %v450 = vand.u32 %v57, 4294901760
    %v451 = vsub.f32 %v57, %v450
    %452 = vmatprep.subr.mxu0 %v451
    %v453 = vand.u32 %v56, 4294901760
    %v454 = vsub.f32 %v56, %v453
    %455 = vmatpush1.msra.mxu0 %v454
    %v456 = vand.u32 %v59, 4294901760
    %v457 = vsub.f32 %v59, %v456
    %458 = vmatprep.subr.mxu0 %v457
    %v459 = vand.u32 %v58, 4294901760
    %v460 = vsub.f32 %v58, %v459
    %461 = vmatpush1.msra.mxu0 %v460
    %v462 = vand.u32 %v61, 4294901760
    %v463 = vsub.f32 %v61, %v462
    %464 = vmatprep.subr.mxu0 %v463
    %v465 = vand.u32 %v60, 4294901760
    %v466 = vsub.f32 %v60, %v465
    %467 = vmatpush1.msra.mxu0 %v466
    %v468 = vand.u32 %v63, 4294901760
    %v469 = vsub.f32 %v63, %v468
    %470 = vmatprep.subr.mxu0 %v469
    %v471 = vand.u32 %v62, 4294901760
    %v472 = vsub.f32 %v62, %v471
    %473 = vmatpush1.msra.mxu0 %v472
    %v474 = vand.u32 %v65, 4294901760
    %v475 = vsub.f32 %v65, %v474
    %476 = vmatprep.subr.mxu0 %v475
    %v477 = vand.u32 %v64, 4294901760
    %v478 = vsub.f32 %v64, %v477
    %479 = vmatpush1.msra.mxu0 %v478
    %v480 = vand.u32 %v67, 4294901760
    %v481 = vsub.f32 %v67, %v480
    %482 = vmatprep.subr.mxu0 %v481
    %v483 = vand.u32 %v66, 4294901760
    %v484 = vsub.f32 %v66, %v483
    %485 = vmatpush1.msra.mxu0 %v484
    %v486 = vand.u32 %v69, 4294901760
    %v487 = vsub.f32 %v69, %v486
    %488 = vmatprep.subr.mxu0 %v487
    %v489 = vand.u32 %v68, 4294901760
    %v490 = vsub.f32 %v68, %v489
    %491 = vmatpush1.msra.mxu0 %v490
    %v492 = vand.u32 %v71, 4294901760
    %v493 = vsub.f32 %v71, %v492
    %494 = vmatprep.subr.mxu0 %v493
    %v495 = vand.u32 %v70, 4294901760
    %v496 = vsub.f32 %v70, %v495
    %497 = vmatpush1.msra.mxu0 %v496
    %v498 = vand.u32 %v73, 4294901760
    %v499 = vsub.f32 %v73, %v498
    %500 = vmatprep.subr.mxu0 %v499
    %v501 = vand.u32 %v72, 4294901760
    %v502 = vsub.f32 %v72, %v501
    %503 = vmatpush1.msra.mxu0 %v502
    %v504 = vand.u32 %v75, 4294901760
    %v505 = vsub.f32 %v75, %v504
    %506 = vmatprep.subr.mxu0 %v505
    %v507 = vand.u32 %v74, 4294901760
    %v508 = vsub.f32 %v74, %v507
    %509 = vmatpush1.msra.mxu0 %v508
    %v510 = vand.u32 %v77, 4294901760
    %v511 = vsub.f32 %v77, %v510
    %512 = vmatprep.subr.mxu0 %v511
    %v513 = vand.u32 %v76, 4294901760
    %v514 = vsub.f32 %v76, %v513
    %515 = vmatpush1.msra.mxu0 %v514
    %v516 = vand.u32 %v79, 4294901760
    %v517 = vsub.f32 %v79, %v516
    %518 = vmatprep.subr.mxu0 %v517
    %v519 = vand.u32 %v78, 4294901760
    %v520 = vsub.f32 %v78, %v519
    %521 = vmatpush1.msra.mxu0 %v520
    %v522 = vand.u32 %v81, 4294901760
    %v523 = vsub.f32 %v81, %v522
    %524 = vmatprep.subr.mxu0 %v523
    %v525 = vand.u32 %v80, 4294901760
    %v526 = vsub.f32 %v80, %v525
    %527 = vmatpush1.msra.mxu0 %v526
    %v528 = vand.u32 %v83, 4294901760
    %v529 = vsub.f32 %v83, %v528
    %530 = vmatprep.subr.mxu0 %v529
    %v531 = vand.u32 %v82, 4294901760
    %v532 = vsub.f32 %v82, %v531
    %533 = vmatpush1.msra.mxu0 %v532
    %v534 = vand.u32 %v85, 4294901760
    %v535 = vsub.f32 %v85, %v534
    %536 = vmatprep.subr.mxu0 %v535
    %v537 = vand.u32 %v84, 4294901760
    %v538 = vsub.f32 %v84, %v537
    %539 = vmatpush1.msra.mxu0 %v538
    %540 = vmatprep.subr.mxu0 0.0
    %541 = vmatpush1.msra.mxu0 0.0
    %542 = vmatprep.subr.mxu0 0.0
    %543 = vmatpush1.msra.mxu0 0.0
    %544 = vmatprep.subr.mxu0 0.0
    %545 = vmatpush1.msra.mxu0 0.0
    %546 = vmatprep.subr.mxu0 0.0
    %547 = vmatpush1.msra.mxu0 0.0
    %548 = vmatprep.subr.mxu0 0.0
    %549 = vmatpush1.msra.mxu0 0.0
    %550 = vmatprep.subr.mxu0 0.0
    %551 = vmatpush1.msra.mxu0 0.0
    %552 = vmatprep.subr.mxu0 0.0
    %553 = vmatpush1.msra.mxu0 0.0
    %554 = vmatprep.subr.mxu0 0.0
    %555 = vmatpush1.msra.mxu0 0.0
    %556 = vmatprep.subr.mxu0 0.0
    %557 = vmatpush1.msra.mxu0 0.0
    %558 = vmatprep.subr.mxu0 0.0
    %559 = vmatpush1.msra.mxu0 0.0
    %560 = vmatprep.subr.mxu0 0.0
    %561 = vmatpush1.msra.mxu0 0.0
    %562 = vmatprep.subr.mxu0 0.0
    %563 = vmatpush1.msra.mxu0 0.0
    %564 = vmatprep.subr.mxu0 0.0
    %565 = vmatpush1.msra.mxu0 0.0
    %566 = vmatprep.subr.mxu0 0.0
    %567 = vmatpush1.msra.mxu0 0.0
    %568 = vmatprep.subr.mxu0 0.0
    %569 = vmatpush1.msra.mxu0 0.0
    %570 = vmatprep.subr.mxu0 0.0
    %571 = vmatpush1.msra.mxu0 0.0
    %572 = vmatprep.mubr.f32.mxu0 0.0
    %v573 = vand.u32 %v52, 4294901760
    %v574 = vsub.f32 %v52, %v573
    %575 = vmatmul.mubr.f32.gmra.mrb[0].mxu0 %v574
    %v576 = vpop.f32.mrb[0].mxu0
    %v577 = vadd.f32 %v433, %v576
    %v578 = vpop.f32.mrb[0].mxu0
    %v579 = vadd.f32 %v435, %v578
    %580 = vmatprep.mubr.f32.mxu0 0.0
    %v581 = vand.u32 %v53, 4294901760
    %v582 = vsub.f32 %v53, %v581
    %583 = vmatmul.mubr.f32.gmra.mrb[0].mxu0 %v582
    %v584 = vpop.f32.mrb[0].mxu0
    %v585 = vadd.f32 %v440, %v584
    %v586 = vpop.f32.mrb[0].mxu0
    %v587 = vadd.f32 %v442, %v586
    %588 = vdwg.mxu0
    %v589 = vand.u32 %v55, 4294901760
    %590 = vmatprep.subr.mxu0 %v589
    %v591 = vand.u32 %v54, 4294901760
    %592 = vmatpush1.msra.mxu0 %v591
    %v593 = vand.u32 %v57, 4294901760
    %594 = vmatprep.subr.mxu0 %v593
    %v595 = vand.u32 %v56, 4294901760
    %596 = vmatpush1.msra.mxu0 %v595
    %v597 = vand.u32 %v59, 4294901760
    %598 = vmatprep.subr.mxu0 %v597
    %v599 = vand.u32 %v58, 4294901760
    %600 = vmatpush1.msra.mxu0 %v599
    %v601 = vand.u32 %v61, 4294901760
    %602 = vmatprep.subr.mxu0 %v601
    %v603 = vand.u32 %v60, 4294901760
    %604 = vmatpush1.msra.mxu0 %v603
    %v605 = vand.u32 %v63, 4294901760
    %606 = vmatprep.subr.mxu0 %v605
    %v607 = vand.u32 %v62, 4294901760
    %608 = vmatpush1.msra.mxu0 %v607
    %v609 = vand.u32 %v65, 4294901760
    %610 = vmatprep.subr.mxu0 %v609
    %v611 = vand.u32 %v64, 4294901760
    %612 = vmatpush1.msra.mxu0 %v611
    %v613 = vand.u32 %v67, 4294901760
    %614 = vmatprep.subr.mxu0 %v613
    %v615 = vand.u32 %v66, 4294901760
    %616 = vmatpush1.msra.mxu0 %v615
    %v617 = vand.u32 %v69, 4294901760
    %618 = vmatprep.subr.mxu0 %v617
    %v619 = vand.u32 %v68, 4294901760
    %620 = vmatpush1.msra.mxu0 %v619
    %v621 = vand.u32 %v71, 4294901760
    %622 = vmatprep.subr.mxu0 %v621
    %v623 = vand.u32 %v70, 4294901760
    %624 = vmatpush1.msra.mxu0 %v623
    %v625 = vand.u32 %v73, 4294901760
    %626 = vmatprep.subr.mxu0 %v625
    %v627 = vand.u32 %v72, 4294901760
    %628 = vmatpush1.msra.mxu0 %v627
    %v629 = vand.u32 %v75, 4294901760
    %630 = vmatprep.subr.mxu0 %v629
    %v631 = vand.u32 %v74, 4294901760
    %632 = vmatpush1.msra.mxu0 %v631
    %v633 = vand.u32 %v77, 4294901760
    %634 = vmatprep.subr.mxu0 %v633
    %v635 = vand.u32 %v76, 4294901760
    %636 = vmatpush1.msra.mxu0 %v635
    %v637 = vand.u32 %v79, 4294901760
    %638 = vmatprep.subr.mxu0 %v637
    %v639 = vand.u32 %v78, 4294901760
    %640 = vmatpush1.msra.mxu0 %v639
    %v641 = vand.u32 %v81, 4294901760
    %642 = vmatprep.subr.mxu0 %v641
    %v643 = vand.u32 %v80, 4294901760
    %644 = vmatpush1.msra.mxu0 %v643
    %v645 = vand.u32 %v83, 4294901760
    %646 = vmatprep.subr.mxu0 %v645
    %v647 = vand.u32 %v82, 4294901760
    %648 = vmatpush1.msra.mxu0 %v647
    %v649 = vand.u32 %v85, 4294901760
    %650 = vmatprep.subr.mxu0 %v649
    %v651 = vand.u32 %v84, 4294901760
    %652 = vmatpush1.msra.mxu0 %v651
    %653 = vmatprep.subr.mxu0 0.0
    %654 = vmatpush1.msra.mxu0 0.0
    %655 = vmatprep.subr.mxu0 0.0
    %656 = vmatpush1.msra.mxu0 0.0
    %657 = vmatprep.subr.mxu0 0.0
    %658 = vmatpush1.msra.mxu0 0.0
    %659 = vmatprep.subr.mxu0 0.0
    %660 = vmatpush1.msra.mxu0 0.0
    %661 = vmatprep.subr.mxu0 0.0
    %662 = vmatpush1.msra.mxu0 0.0
    %663 = vmatprep.subr.mxu0 0.0
    %664 = vmatpush1.msra.mxu0 0.0
    %665 = vmatprep.subr.mxu0 0.0
    %666 = vmatpush1.msra.mxu0 0.0
    %667 = vmatprep.subr.mxu0 0.0
    %668 = vmatpush1.msra.mxu0 0.0
    %669 = vmatprep.subr.mxu0 0.0
    %670 = vmatpush1.msra.mxu0 0.0
    %671 = vmatprep.subr.mxu0 0.0
    %672 = vmatpush1.msra.mxu0 0.0
    %673 = vmatprep.subr.mxu0 0.0
    %674 = vmatpush1.msra.mxu0 0.0
    %675 = vmatprep.subr.mxu0 0.0
    %676 = vmatpush1.msra.mxu0 0.0
    %677 = vmatprep.subr.mxu0 0.0
    %678 = vmatpush1.msra.mxu0 0.0
    %679 = vmatprep.subr.mxu0 0.0
    %680 = vmatpush1.msra.mxu0 0.0
    %681 = vmatprep.subr.mxu0 0.0
    %682 = vmatpush1.msra.mxu0 0.0
    %683 = vmatprep.subr.mxu0 0.0
    %684 = vmatpush1.msra.mxu0 0.0
    %685 = vmatprep.mubr.f32.mxu0 0.0
    %v686 = vand.u32 %v52, 4294901760
    %v687 = vsub.f32 %v52, %v686
    %v688 = vand.u32 %v687, 4294901760
    %689 = vmatmul.mubr.f32.gmra.mrb[0].mxu0 %v688
    %v690 = vpop.f32.mrb[0].mxu0
    %v691 = vadd.f32 %v577, %v690
    %v692 = vpop.f32.mrb[0].mxu0
    %v693 = vadd.f32 %v579, %v692
    %694 = vmatprep.mubr.f32.mxu0 0.0
    %v695 = vand.u32 %v53, 4294901760
    %v696 = vsub.f32 %v53, %v695
    %v697 = vand.u32 %v696, 4294901760
    %698 = vmatmul.mubr.f32.gmra.mrb[0].mxu0 %v697
    %v699 = vpop.f32.mrb[0].mxu0
    %v700 = vadd.f32 %v585, %v699
    %v701 = vpop.f32.mrb[0].mxu0
    %v702 = vadd.f32 %v587, %v701
    %703 = vdwg.mxu0
    %v704 = vand.u32 %v55, 4294901760
    %v705 = vsub.f32 %v55, %v704
    %v706 = vand.u32 %v705, 4294901760
    %707 = vmatprep.subr.mxu0 %v706
    %v708 = vand.u32 %v54, 4294901760
    %v709 = vsub.f32 %v54, %v708
    %v710 = vand.u32 %v709, 4294901760
    %711 = vmatpush1.msra.mxu0 %v710
    %v712 = vand.u32 %v57, 4294901760
    %v713 = vsub.f32 %v57, %v712
    %v714 = vand.u32 %v713, 4294901760
    %715 = vmatprep.subr.mxu0 %v714
    %v716 = vand.u32 %v56, 4294901760
    %v717 = vsub.f32 %v56, %v716
    %v718 = vand.u32 %v717, 4294901760
    %719 = vmatpush1.msra.mxu0 %v718
    %v720 = vand.u32 %v59, 4294901760
    %v721 = vsub.f32 %v59, %v720
    %v722 = vand.u32 %v721, 4294901760
    %723 = vmatprep.subr.mxu0 %v722
    %v724 = vand.u32 %v58, 4294901760
    %v725 = vsub.f32 %v58, %v724
    %v726 = vand.u32 %v725, 4294901760
    %727 = vmatpush1.msra.mxu0 %v726
    %v728 = vand.u32 %v61, 4294901760
    %v729 = vsub.f32 %v61, %v728
    %v730 = vand.u32 %v729, 4294901760
    %731 = vmatprep.subr.mxu0 %v730
    %v732 = vand.u32 %v60, 4294901760
    %v733 = vsub.f32 %v60, %v732
    %v734 = vand.u32 %v733, 4294901760
    %735 = vmatpush1.msra.mxu0 %v734
    %v736 = vand.u32 %v63, 4294901760
    %v737 = vsub.f32 %v63, %v736
    %v738 = vand.u32 %v737, 4294901760
    %739 = vmatprep.subr.mxu0 %v738
    %v740 = vand.u32 %v62, 4294901760
    %v741 = vsub.f32 %v62, %v740
    %v742 = vand.u32 %v741, 4294901760
    %743 = vmatpush1.msra.mxu0 %v742
    %v744 = vand.u32 %v65, 4294901760
    %v745 = vsub.f32 %v65, %v744
    %v746 = vand.u32 %v745, 4294901760
    %747 = vmatprep.subr.mxu0 %v746
    %v748 = vand.u32 %v64, 4294901760
    %v749 = vsub.f32 %v64, %v748
    %v750 = vand.u32 %v749, 4294901760
    %751 = vmatpush1.msra.mxu0 %v750
    %v752 = vand.u32 %v67, 4294901760
    %v753 = vsub.f32 %v67, %v752
    %v754 = vand.u32 %v753, 4294901760
    %755 = vmatprep.subr.mxu0 %v754
    %v756 = vand.u32 %v66, 4294901760
    %v757 = vsub.f32 %v66, %v756
    %v758 = vand.u32 %v757, 4294901760
    %759 = vmatpush1.msra.mxu0 %v758
    %v760 = vand.u32 %v69, 4294901760
    %v761 = vsub.f32 %v69, %v760
    %v762 = vand.u32 %v761, 4294901760
    %763 = vmatprep.subr.mxu0 %v762
    %v764 = vand.u32 %v68, 4294901760
    %v765 = vsub.f32 %v68, %v764
    %v766 = vand.u32 %v765, 4294901760
    %767 = vmatpush1.msra.mxu0 %v766
    %v768 = vand.u32 %v71, 4294901760
    %v769 = vsub.f32 %v71, %v768
    %v770 = vand.u32 %v769, 4294901760
    %771 = vmatprep.subr.mxu0 %v770
    %v772 = vand.u32 %v70, 4294901760
    %v773 = vsub.f32 %v70, %v772
    %v774 = vand.u32 %v773, 4294901760
    %775 = vmatpush1.msra.mxu0 %v774
    %v776 = vand.u32 %v73, 4294901760
    %v777 = vsub.f32 %v73, %v776
    %v778 = vand.u32 %v777, 4294901760
    %779 = vmatprep.subr.mxu0 %v778
    %v780 = vand.u32 %v72, 4294901760
    %v781 = vsub.f32 %v72, %v780
    %v782 = vand.u32 %v781, 4294901760
    %783 = vmatpush1.msra.mxu0 %v782
    %v784 = vand.u32 %v75, 4294901760
    %v785 = vsub.f32 %v75, %v784
    %v786 = vand.u32 %v785, 4294901760
    %787 = vmatprep.subr.mxu0 %v786
    %v788 = vand.u32 %v74, 4294901760
    %v789 = vsub.f32 %v74, %v788
    %v790 = vand.u32 %v789, 4294901760
    %791 = vmatpush1.msra.mxu0 %v790
    %v792 = vand.u32 %v77, 4294901760
    %v793 = vsub.f32 %v77, %v792
    %v794 = vand.u32 %v793, 4294901760
    %795 = vmatprep.subr.mxu0 %v794
    %v796 = vand.u32 %v76, 4294901760
    %v797 = vsub.f32 %v76, %v796
    %v798 = vand.u32 %v797, 4294901760
    %799 = vmatpush1.msra.mxu0 %v798
    %v800 = vand.u32 %v79, 4294901760
    %v801 = vsub.f32 %v79, %v800
    %v802 = vand.u32 %v801, 4294901760
    %803 = vmatprep.subr.mxu0 %v802
    %v804 = vand.u32 %v78, 4294901760
    %v805 = vsub.f32 %v78, %v804
    %v806 = vand.u32 %v805, 4294901760
    %807 = vmatpush1.msra.mxu0 %v806
    %v808 = vand.u32 %v81, 4294901760
    %v809 = vsub.f32 %v81, %v808
    %v810 = vand.u32 %v809, 4294901760
    %811 = vmatprep.subr.mxu0 %v810
    %v812 = vand.u32 %v80, 4294901760
    %v813 = vsub.f32 %v80, %v812
    %v814 = vand.u32 %v813, 4294901760
    %815 = vmatpush1.msra.mxu0 %v814
    %v816 = vand.u32 %v83, 4294901760
    %v817 = vsub.f32 %v83, %v816
    %v818 = vand.u32 %v817, 4294901760
    %819 = vmatprep.subr.mxu0 %v818
    %v820 = vand.u32 %v82, 4294901760
    %v821 = vsub.f32 %v82, %v820
    %v822 = vand.u32 %v821, 4294901760
    %823 = vmatpush1.msra.mxu0 %v822
    %v824 = vand.u32 %v85, 4294901760
    %v825 = vsub.f32 %v85, %v824
    %v826 = vand.u32 %v825, 4294901760
    %827 = vmatprep.subr.mxu0 %v826
    %v828 = vand.u32 %v84, 4294901760
    %v829 = vsub.f32 %v84, %v828
    %v830 = vand.u32 %v829, 4294901760
    %831 = vmatpush1.msra.mxu0 %v830
    %832 = vmatprep.subr.mxu0 0.0
    %833 = vmatpush1.msra.mxu0 0.0
    %834 = vmatprep.subr.mxu0 0.0
    %835 = vmatpush1.msra.mxu0 0.0
    %836 = vmatprep.subr.mxu0 0.0
    %837 = vmatpush1.msra.mxu0 0.0
    %838 = vmatprep.subr.mxu0 0.0
    %839 = vmatpush1.msra.mxu0 0.0
    %840 = vmatprep.subr.mxu0 0.0
    %841 = vmatpush1.msra.mxu0 0.0
    %842 = vmatprep.subr.mxu0 0.0
    %843 = vmatpush1.msra.mxu0 0.0
    %844 = vmatprep.subr.mxu0 0.0
    %845 = vmatpush1.msra.mxu0 0.0
    %846 = vmatprep.subr.mxu0 0.0
    %847 = vmatpush1.msra.mxu0 0.0
    %848 = vmatprep.subr.mxu0 0.0
    %849 = vmatpush1.msra.mxu0 0.0
    %850 = vmatprep.subr.mxu0 0.0
    %851 = vmatpush1.msra.mxu0 0.0
    %852 = vmatprep.subr.mxu0 0.0
    %853 = vmatpush1.msra.mxu0 0.0
    %854 = vmatprep.subr.mxu0 0.0
    %855 = vmatpush1.msra.mxu0 0.0
    %856 = vmatprep.subr.mxu0 0.0
    %857 = vmatpush1.msra.mxu0 0.0
    %858 = vmatprep.subr.mxu0 0.0
    %859 = vmatpush1.msra.mxu0 0.0
    %860 = vmatprep.subr.mxu0 0.0
    %861 = vmatpush1.msra.mxu0 0.0
    %862 = vmatprep.subr.mxu0 0.0
    %863 = vmatpush1.msra.mxu0 0.0
    %864 = vmatprep.mubr.f32.mxu0 0.0
    %v865 = vand.u32 %v52, 4294901760
    %866 = vmatmul.mubr.f32.gmra.mrb[0].mxu0 %v865
    %v867 = vpop.f32.mrb[0].mxu0
    %v868 = vadd.f32 %v691, %v867
    %v869 = vpop.f32.mrb[0].mxu0
    %v870 = vadd.f32 %v693, %v869
    %871 = vmatprep.mubr.f32.mxu0 0.0
    %v872 = vand.u32 %v53, 4294901760
    %873 = vmatmul.mubr.f32.gmra.mrb[0].mxu0 %v872
    %v874 = vpop.f32.mrb[0].mxu0
    %v875 = vadd.f32 %v700, %v874
    %v876 = vpop.f32.mrb[0].mxu0
    %v877 = vadd.f32 %v702, %v876
    %878 = vdwg.mxu0
    %v879 = vand.u32 %v55, 4294901760
    %880 = vmatprep.subr.mxu0 %v879
    %v881 = vand.u32 %v54, 4294901760
    %882 = vmatpush1.msra.mxu0 %v881
    %v883 = vand.u32 %v57, 4294901760
    %884 = vmatprep.subr.mxu0 %v883
    %v885 = vand.u32 %v56, 4294901760
    %886 = vmatpush1.msra.mxu0 %v885
    %v887 = vand.u32 %v59, 4294901760
    %888 = vmatprep.subr.mxu0 %v887
    %v889 = vand.u32 %v58, 4294901760
    %890 = vmatpush1.msra.mxu0 %v889
    %v891 = vand.u32 %v61, 4294901760
    %892 = vmatprep.subr.mxu0 %v891
    %v893 = vand.u32 %v60, 4294901760
    %894 = vmatpush1.msra.mxu0 %v893
    %v895 = vand.u32 %v63, 4294901760
    %896 = vmatprep.subr.mxu0 %v895
    %v897 = vand.u32 %v62, 4294901760
    %898 = vmatpush1.msra.mxu0 %v897
    %v899 = vand.u32 %v65, 4294901760
    %900 = vmatprep.subr.mxu0 %v899
    %v901 = vand.u32 %v64, 4294901760
    %902 = vmatpush1.msra.mxu0 %v901
    %v903 = vand.u32 %v67, 4294901760
    %904 = vmatprep.subr.mxu0 %v903
    %v905 = vand.u32 %v66, 4294901760
    %906 = vmatpush1.msra.mxu0 %v905
    %v907 = vand.u32 %v69, 4294901760
    %908 = vmatprep.subr.mxu0 %v907
    %v909 = vand.u32 %v68, 4294901760
    %910 = vmatpush1.msra.mxu0 %v909
    %v911 = vand.u32 %v71, 4294901760
    %912 = vmatprep.subr.mxu0 %v911
    %v913 = vand.u32 %v70, 4294901760
    %914 = vmatpush1.msra.mxu0 %v913
    %v915 = vand.u32 %v73, 4294901760
    %916 = vmatprep.subr.mxu0 %v915
    %v917 = vand.u32 %v72, 4294901760
    %918 = vmatpush1.msra.mxu0 %v917
    %v919 = vand.u32 %v75, 4294901760
    %920 = vmatprep.subr.mxu0 %v919
    %v921 = vand.u32 %v74, 4294901760
    %922 = vmatpush1.msra.mxu0 %v921
    %v923 = vand.u32 %v77, 4294901760
    %924 = vmatprep.subr.mxu0 %v923
    %v925 = vand.u32 %v76, 4294901760
    %926 = vmatpush1.msra.mxu0 %v925
    %v927 = vand.u32 %v79, 4294901760
    %928 = vmatprep.subr.mxu0 %v927
    %v929 = vand.u32 %v78, 4294901760
    %930 = vmatpush1.msra.mxu0 %v929
    %v931 = vand.u32 %v81, 4294901760
    %932 = vmatprep.subr.mxu0 %v931
    %v933 = vand.u32 %v80, 4294901760
    %934 = vmatpush1.msra.mxu0 %v933
    %v935 = vand.u32 %v83, 4294901760
    %936 = vmatprep.subr.mxu0 %v935
    %v937 = vand.u32 %v82, 4294901760
    %938 = vmatpush1.msra.mxu0 %v937
    %v939 = vand.u32 %v85, 4294901760
    %940 = vmatprep.subr.mxu0 %v939
    %v941 = vand.u32 %v84, 4294901760
    %942 = vmatpush1.msra.mxu0 %v941
    %943 = vmatprep.subr.mxu0 0.0
    %944 = vmatpush1.msra.mxu0 0.0
    %945 = vmatprep.subr.mxu0 0.0
    %946 = vmatpush1.msra.mxu0 0.0
    %947 = vmatprep.subr.mxu0 0.0
    %948 = vmatpush1.msra.mxu0 0.0
    %949 = vmatprep.subr.mxu0 0.0
    %950 = vmatpush1.msra.mxu0 0.0
    %951 = vmatprep.subr.mxu0 0.0
    %952 = vmatpush1.msra.mxu0 0.0
    %953 = vmatprep.subr.mxu0 0.0
    %954 = vmatpush1.msra.mxu0 0.0
    %955 = vmatprep.subr.mxu0 0.0
    %956 = vmatpush1.msra.mxu0 0.0
    %957 = vmatprep.subr.mxu0 0.0
    %958 = vmatpush1.msra.mxu0 0.0
    %959 = vmatprep.subr.mxu0 0.0
    %960 = vmatpush1.msra.mxu0 0.0
    %961 = vmatprep.subr.mxu0 0.0
    %962 = vmatpush1.msra.mxu0 0.0
    %963 = vmatprep.subr.mxu0 0.0
    %964 = vmatpush1.msra.mxu0 0.0
    %965 = vmatprep.subr.mxu0 0.0
    %966 = vmatpush1.msra.mxu0 0.0
    %967 = vmatprep.subr.mxu0 0.0
    %968 = vmatpush1.msra.mxu0 0.0
    %969 = vmatprep.subr.mxu0 0.0
    %970 = vmatpush1.msra.mxu0 0.0
    %971 = vmatprep.subr.mxu0 0.0
    %972 = vmatpush1.msra.mxu0 0.0
    %973 = vmatprep.subr.mxu0 0.0
    %974 = vmatpush1.msra.mxu0 0.0
    %975 = vmatprep.mubr.f32.mxu0 0.0
    %v976 = vand.u32 %v52, 4294901760
    %977 = vmatmul.mubr.f32.gmra.mrb[0].mxu0 %v976
    %v978 = vpop.f32.mrb[0].mxu0
    %v979 = vadd.f32 %v868, %v978
    %v980 = vpop.f32.mrb[0].mxu0
    %v981 = vadd.f32 %v870, %v980
    %982 = vmatprep.mubr.f32.mxu0 0.0
    %v983 = vand.u32 %v53, 4294901760
    %984 = vmatmul.mubr.f32.gmra.mrb[0].mxu0 %v983
    %v985 = vpop.f32.mrb[0].mxu0
    %v986 = vadd.f32 %v875, %v985
    %v987 = vpop.f32.mrb[0].mxu0
    %v988 = vadd.f32 %v877, %v987
    %989 = vdwg.mxu0
    %v990 = vld [vmem:[%s1] sm:$0xff]
    %v991 = vld [vmem:[%s1 + $0x8] sm:$0xff]
    %v992 = vld [vmem:[%s1 + $0x10] sm:$0xff]
    %v993 = vld [vmem:[%s1 + $0x18] sm:$0xff]
    %vm994 = vcmask 130048
    %v996 = vsel %vm994, %v990, 0
    %v999 = vsel %vm994, %v991, 0
    %v1002 = vsel %vm994, %v992, 0
    %v1005 = vsel %vm994, %v993, 0
    %v1007 = vand.u32 %v981, 4294901760
    %1008 = vmatprep.subr.mxu0 %v1007
    %v1009 = vand.u32 %v979, 4294901760
    %1010 = vmatpush1.msra.mxu0 %v1009
    %v1011 = vand.u32 %v988, 4294901760
    %1012 = vmatprep.subr.mxu0 %v1011
    %v1013 = vand.u32 %v986, 4294901760
    %1014 = vmatpush1.msra.mxu0 %v1013
    %1015 = vmatprep.subr.mxu0 0.0
    %1016 = vmatpush1.msra.mxu0 0.0
    %1017 = vmatprep.subr.mxu0 0.0
    %1018 = vmatpush1.msra.mxu0 0.0
    %1019 = vmatprep.subr.mxu0 0.0
    %1020 = vmatpush1.msra.mxu0 0.0
    %1021 = vmatprep.subr.mxu0 0.0
    %1022 = vmatpush1.msra.mxu0 0.0
    %1023 = vmatprep.subr.mxu0 0.0
    %1024 = vmatpush1.msra.mxu0 0.0
    %1025 = vmatprep.subr.mxu0 0.0
    %1026 = vmatpush1.msra.mxu0 0.0
    %1027 = vmatprep.subr.mxu0 0.0
    %1028 = vmatpush1.msra.mxu0 0.0
    %1029 = vmatprep.subr.mxu0 0.0
    %1030 = vmatpush1.msra.mxu0 0.0
    %1031 = vmatprep.subr.mxu0 0.0
    %1032 = vmatpush1.msra.mxu0 0.0
    %1033 = vmatprep.subr.mxu0 0.0
    %1034 = vmatpush1.msra.mxu0 0.0
    %1035 = vmatprep.subr.mxu0 0.0
    %1036 = vmatpush1.msra.mxu0 0.0
    %1037 = vmatprep.subr.mxu0 0.0
    %1038 = vmatpush1.msra.mxu0 0.0
    %1039 = vmatprep.subr.mxu0 0.0
    %1040 = vmatpush1.msra.mxu0 0.0
    %1041 = vmatprep.subr.mxu0 0.0
    %1042 = vmatpush1.msra.mxu0 0.0
    %1043 = vmatprep.subr.mxu0 0.0
    %1044 = vmatpush1.msra.mxu0 0.0
    %1045 = vmatprep.subr.mxu0 0.0
    %1046 = vmatpush1.msra.mxu0 0.0
    %1047 = vmatprep.subr.mxu0 0.0
    %1048 = vmatpush1.msra.mxu0 0.0
    %1049 = vmatprep.subr.mxu0 0.0
    %1050 = vmatpush1.msra.mxu0 0.0
    %1051 = vmatprep.subr.mxu0 0.0
    %1052 = vmatpush1.msra.mxu0 0.0
    %1053 = vmatprep.subr.mxu0 0.0
    %1054 = vmatpush1.msra.mxu0 0.0
    %1055 = vmatprep.subr.mxu0 0.0
    %1056 = vmatpush1.msra.mxu0 0.0
    %1057 = vmatprep.subr.mxu0 0.0
    %1058 = vmatpush1.msra.mxu0 0.0
    %1059 = vmatprep.subr.mxu0 0.0
    %1060 = vmatpush1.msra.mxu0 0.0
    %1061 = vmatprep.subr.mxu0 0.0
    %1062 = vmatpush1.msra.mxu0 0.0
    %1063 = vmatprep.subr.mxu0 0.0
    %1064 = vmatpush1.msra.mxu0 0.0
    %1065 = vmatprep.subr.mxu0 0.0
    %1066 = vmatpush1.msra.mxu0 0.0
    %1067 = vmatprep.subr.mxu0 0.0
    %1068 = vmatpush1.msra.mxu0 0.0
    %1069 = vmatprep.subr.mxu0 0.0
    %1070 = vmatpush1.msra.mxu0 0.0
    %1071 = vmatprep.subr.mxu0 0.0
    %1072 = vmatpush1.msra.mxu0 0.0
    %1073 = vmatprep.subr.mxu0 0.0
    %1074 = vmatpush1.msra.mxu0 0.0
    %1075 = vmatprep.mubr.f32.mxu0 0.0
    %v1076 = vand.u32 %v996, 4294901760
    %v1077 = vsub.f32 %v996, %v1076
    %v1078 = vand.u32 %v1077, 4294901760
    %v1079 = vsub.f32 %v1077, %v1078
    %v1080 = vand.u32 %v1079, 4294901760
    %1081 = vmatmul.mubr.f32.gmra.mrb[0].mxu0 %v1080
    %v1082 = vpop.f32.mrb[0].mxu0
    %v1083 = vadd.f32 0.0, %v1082
    %v1084 = vpop.f32.mrb[0].mxu0
    %v1085 = vadd.f32 0.0, %v1084
    %1086 = vmatprep.mubr.f32.mxu0 0.0
    %v1087 = vand.u32 %v999, 4294901760
    %v1088 = vsub.f32 %v999, %v1087
    %v1089 = vand.u32 %v1088, 4294901760
    %v1090 = vsub.f32 %v1088, %v1089
    %v1091 = vand.u32 %v1090, 4294901760
    %1092 = vmatmul.mubr.f32.gmra.mrb[0].mxu0 %v1091
    %v1093 = vpop.f32.mrb[0].mxu0
    %v1094 = vadd.f32 0.0, %v1093
    %v1095 = vpop.f32.mrb[0].mxu0
    %v1096 = vadd.f32 0.0, %v1095
    %1097 = vmatprep.mubr.f32.mxu0 0.0
    %v1098 = vand.u32 %v1002, 4294901760
    %v1099 = vsub.f32 %v1002, %v1098
    %v1100 = vand.u32 %v1099, 4294901760
    %v1101 = vsub.f32 %v1099, %v1100
    %v1102 = vand.u32 %v1101, 4294901760
    %1103 = vmatmul.mubr.f32.gmra.mrb[0].mxu0 %v1102
    %v1104 = vpop.f32.mrb[0].mxu0
    %v1105 = vadd.f32 0.0, %v1104
    %v1106 = vpop.f32.mrb[0].mxu0
    %v1107 = vadd.f32 0.0, %v1106
    %1108 = vmatprep.mubr.f32.mxu0 0.0
    %v1109 = vand.u32 %v1005, 4294901760
    %v1110 = vsub.f32 %v1005, %v1109
    %v1111 = vand.u32 %v1110, 4294901760
    %v1112 = vsub.f32 %v1110, %v1111
    %v1113 = vand.u32 %v1112, 4294901760
    %1114 = vmatmul.mubr.f32.gmra.mrb[0].mxu0 %v1113
    %v1115 = vpop.f32.mrb[0].mxu0
    %v1116 = vadd.f32 0.0, %v1115
    %v1117 = vpop.f32.mrb[0].mxu0
    %v1118 = vadd.f32 0.0, %v1117
    %1119 = vdwg.mxu0
    %v1120 = vand.u32 %v981, 4294901760
    %v1121 = vsub.f32 %v981, %v1120
    %v1122 = vand.u32 %v1121, 4294901760
    %v1123 = vsub.f32 %v1121, %v1122
    %v1124 = vand.u32 %v1123, 4294901760
    %1125 = vmatprep.subr.mxu0 %v1124
    %v1126 = vand.u32 %v979, 4294901760
    %v1127 = vsub.f32 %v979, %v1126
    %v1128 = vand.u32 %v1127, 4294901760
    %v1129 = vsub.f32 %v1127, %v1128
    %v1130 = vand.u32 %v1129, 4294901760
    %1131 = vmatpush1.msra.mxu0 %v1130
    %v1132 = vand.u32 %v988, 4294901760
    %v1133 = vsub.f32 %v988, %v1132
    %v1134 = vand.u32 %v1133, 4294901760
    %v1135 = vsub.f32 %v1133, %v1134
    %v1136 = vand.u32 %v1135, 4294901760
    %1137 = vmatprep.subr.mxu0 %v1136
    %v1138 = vand.u32 %v986, 4294901760
    %v1139 = vsub.f32 %v986, %v1138
    %v1140 = vand.u32 %v1139, 4294901760
    %v1141 = vsub.f32 %v1139, %v1140
    %v1142 = vand.u32 %v1141, 4294901760
    %1143 = vmatpush1.msra.mxu0 %v1142
    %1144 = vmatprep.subr.mxu0 0.0
    %1145 = vmatpush1.msra.mxu0 0.0
    %1146 = vmatprep.subr.mxu0 0.0
    %1147 = vmatpush1.msra.mxu0 0.0
    %1148 = vmatprep.subr.mxu0 0.0
    %1149 = vmatpush1.msra.mxu0 0.0
    %1150 = vmatprep.subr.mxu0 0.0
    %1151 = vmatpush1.msra.mxu0 0.0
    %1152 = vmatprep.subr.mxu0 0.0
    %1153 = vmatpush1.msra.mxu0 0.0
    %1154 = vmatprep.subr.mxu0 0.0
    %1155 = vmatpush1.msra.mxu0 0.0
    %1156 = vmatprep.subr.mxu0 0.0
    %1157 = vmatpush1.msra.mxu0 0.0
    %1158 = vmatprep.subr.mxu0 0.0
    %1159 = vmatpush1.msra.mxu0 0.0
    %1160 = vmatprep.subr.mxu0 0.0
    %1161 = vmatpush1.msra.mxu0 0.0
    %1162 = vmatprep.subr.mxu0 0.0
    %1163 = vmatpush1.msra.mxu0 0.0
    %1164 = vmatprep.subr.mxu0 0.0
    %1165 = vmatpush1.msra.mxu0 0.0
    %1166 = vmatprep.subr.mxu0 0.0
    %1167 = vmatpush1.msra.mxu0 0.0
    %1168 = vmatprep.subr.mxu0 0.0
    %1169 = vmatpush1.msra.mxu0 0.0
    %1170 = vmatprep.subr.mxu0 0.0
    %1171 = vmatpush1.msra.mxu0 0.0
    %1172 = vmatprep.subr.mxu0 0.0
    %1173 = vmatpush1.msra.mxu0 0.0
    %1174 = vmatprep.subr.mxu0 0.0
    %1175 = vmatpush1.msra.mxu0 0.0
    %1176 = vmatprep.subr.mxu0 0.0
    %1177 = vmatpush1.msra.mxu0 0.0
    %1178 = vmatprep.subr.mxu0 0.0
    %1179 = vmatpush1.msra.mxu0 0.0
    %1180 = vmatprep.subr.mxu0 0.0
    %1181 = vmatpush1.msra.mxu0 0.0
    %1182 = vmatprep.subr.mxu0 0.0
    %1183 = vmatpush1.msra.mxu0 0.0
    %1184 = vmatprep.subr.mxu0 0.0
    %1185 = vmatpush1.msra.mxu0 0.0
    %1186 = vmatprep.subr.mxu0 0.0
    %1187 = vmatpush1.msra.mxu0 0.0
    %1188 = vmatprep.subr.mxu0 0.0
    %1189 = vmatpush1.msra.mxu0 0.0
    %1190 = vmatprep.subr.mxu0 0.0
    %1191 = vmatpush1.msra.mxu0 0.0
    %1192 = vmatprep.subr.mxu0 0.0
    %1193 = vmatpush1.msra.mxu0 0.0
    %1194 = vmatprep.subr.mxu0 0.0
    %1195 = vmatpush1.msra.mxu0 0.0
    %1196 = vmatprep.subr.mxu0 0.0
    %1197 = vmatpush1.msra.mxu0 0.0
    %1198 = vmatprep.subr.mxu0 0.0
    %1199 = vmatpush1.msra.mxu0 0.0
    %1200 = vmatprep.subr.mxu0 0.0
    %1201 = vmatpush1.msra.mxu0 0.0
    %1202 = vmatprep.subr.mxu0 0.0
    %1203 = vmatpush1.msra.mxu0 0.0
    %1204 = vmatprep.mubr.f32.mxu0 0.0
    %v1205 = vand.u32 %v996, 4294901760
    %1206 = vmatmul.mubr.f32.gmra.mrb[0].mxu0 %v1205
    %v1207 = vpop.f32.mrb[0].mxu0
    %v1208 = vadd.f32 %v1083, %v1207
    %v1209 = vpop.f32.mrb[0].mxu0
    %v1210 = vadd.f32 %v1085, %v1209
    %1211 = vmatprep.mubr.f32.mxu0 0.0
    %v1212 = vand.u32 %v999, 4294901760
    %1213 = vmatmul.mubr.f32.gmra.mrb[0].mxu0 %v1212
    %v1214 = vpop.f32.mrb[0].mxu0
    %v1215 = vadd.f32 %v1094, %v1214
    %v1216 = vpop.f32.mrb[0].mxu0
    %v1217 = vadd.f32 %v1096, %v1216
    %1218 = vmatprep.mubr.f32.mxu0 0.0
    %v1219 = vand.u32 %v1002, 4294901760
    %1220 = vmatmul.mubr.f32.gmra.mrb[0].mxu0 %v1219
    %v1221 = vpop.f32.mrb[0].mxu0
    %v1222 = vadd.f32 %v1105, %v1221
    %v1223 = vpop.f32.mrb[0].mxu0
    %v1224 = vadd.f32 %v1107, %v1223
    %1225 = vmatprep.mubr.f32.mxu0 0.0
    %v1226 = vand.u32 %v1005, 4294901760
    %1227 = vmatmul.mubr.f32.gmra.mrb[0].mxu0 %v1226
    %v1228 = vpop.f32.mrb[0].mxu0
    %v1229 = vadd.f32 %v1116, %v1228
    %v1230 = vpop.f32.mrb[0].mxu0
    %v1231 = vadd.f32 %v1118, %v1230
    %1232 = vdwg.mxu0
    %v1233 = vand.u32 %v981, 4294901760
    %v1234 = vsub.f32 %v981, %v1233
    %1235 = vmatprep.subr.mxu0 %v1234
    %v1236 = vand.u32 %v979, 4294901760
    %v1237 = vsub.f32 %v979, %v1236
    %1238 = vmatpush1.msra.mxu0 %v1237
    %v1239 = vand.u32 %v988, 4294901760
    %v1240 = vsub.f32 %v988, %v1239
    %1241 = vmatprep.subr.mxu0 %v1240
    %v1242 = vand.u32 %v986, 4294901760
    %v1243 = vsub.f32 %v986, %v1242
    %1244 = vmatpush1.msra.mxu0 %v1243
    %1245 = vmatprep.subr.mxu0 0.0
    %1246 = vmatpush1.msra.mxu0 0.0
    %1247 = vmatprep.subr.mxu0 0.0
    %1248 = vmatpush1.msra.mxu0 0.0
    %1249 = vmatprep.subr.mxu0 0.0
    %1250 = vmatpush1.msra.mxu0 0.0
    %1251 = vmatprep.subr.mxu0 0.0
    %1252 = vmatpush1.msra.mxu0 0.0
    %1253 = vmatprep.subr.mxu0 0.0
    %1254 = vmatpush1.msra.mxu0 0.0
    %1255 = vmatprep.subr.mxu0 0.0
    %1256 = vmatpush1.msra.mxu0 0.0
    %1257 = vmatprep.subr.mxu0 0.0
    %1258 = vmatpush1.msra.mxu0 0.0
    %1259 = vmatprep.subr.mxu0 0.0
    %1260 = vmatpush1.msra.mxu0 0.0
    %1261 = vmatprep.subr.mxu0 0.0
    %1262 = vmatpush1.msra.mxu0 0.0
    %1263 = vmatprep.subr.mxu0 0.0
    %1264 = vmatpush1.msra.mxu0 0.0
    %1265 = vmatprep.subr.mxu0 0.0
    %1266 = vmatpush1.msra.mxu0 0.0
    %1267 = vmatprep.subr.mxu0 0.0
    %1268 = vmatpush1.msra.mxu0 0.0
    %1269 = vmatprep.subr.mxu0 0.0
    %1270 = vmatpush1.msra.mxu0 0.0
    %1271 = vmatprep.subr.mxu0 0.0
    %1272 = vmatpush1.msra.mxu0 0.0
    %1273 = vmatprep.subr.mxu0 0.0
    %1274 = vmatpush1.msra.mxu0 0.0
    %1275 = vmatprep.subr.mxu0 0.0
    %1276 = vmatpush1.msra.mxu0 0.0
    %1277 = vmatprep.subr.mxu0 0.0
    %1278 = vmatpush1.msra.mxu0 0.0
    %1279 = vmatprep.subr.mxu0 0.0
    %1280 = vmatpush1.msra.mxu0 0.0
    %1281 = vmatprep.subr.mxu0 0.0
    %1282 = vmatpush1.msra.mxu0 0.0
    %1283 = vmatprep.subr.mxu0 0.0
    %1284 = vmatpush1.msra.mxu0 0.0
    %1285 = vmatprep.subr.mxu0 0.0
    %1286 = vmatpush1.msra.mxu0 0.0
    %1287 = vmatprep.subr.mxu0 0.0
    %1288 = vmatpush1.msra.mxu0 0.0
    %1289 = vmatprep.subr.mxu0 0.0
    %1290 = vmatpush1.msra.mxu0 0.0
    %1291 = vmatprep.subr.mxu0 0.0
    %1292 = vmatpush1.msra.mxu0 0.0
    %1293 = vmatprep.subr.mxu0 0.0
    %1294 = vmatpush1.msra.mxu0 0.0
    %1295 = vmatprep.subr.mxu0 0.0
    %1296 = vmatpush1.msra.mxu0 0.0
    %1297 = vmatprep.subr.mxu0 0.0
    %1298 = vmatpush1.msra.mxu0 0.0
    %1299 = vmatprep.subr.mxu0 0.0
    %1300 = vmatpush1.msra.mxu0 0.0
    %1301 = vmatprep.subr.mxu0 0.0
    %1302 = vmatpush1.msra.mxu0 0.0
    %1303 = vmatprep.subr.mxu0 0.0
    %1304 = vmatpush1.msra.mxu0 0.0
    %1305 = vmatprep.mubr.f32.mxu0 0.0
    %v1306 = vand.u32 %v996, 4294901760
    %v1307 = vsub.f32 %v996, %v1306
    %1308 = vmatmul.mubr.f32.gmra.mrb[0].mxu0 %v1307
    %v1309 = vpop.f32.mrb[0].mxu0
    %v1310 = vadd.f32 %v1208, %v1309
    %v1311 = vpop.f32.mrb[0].mxu0
    %v1312 = vadd.f32 %v1210, %v1311
    %1313 = vmatprep.mubr.f32.mxu0 0.0
    %v1314 = vand.u32 %v999, 4294901760
    %v1315 = vsub.f32 %v999, %v1314
    %1316 = vmatmul.mubr.f32.gmra.mrb[0].mxu0 %v1315
    %v1317 = vpop.f32.mrb[0].mxu0
    %v1318 = vadd.f32 %v1215, %v1317
    %v1319 = vpop.f32.mrb[0].mxu0
    %v1320 = vadd.f32 %v1217, %v1319
    %1321 = vmatprep.mubr.f32.mxu0 0.0
    %v1322 = vand.u32 %v1002, 4294901760
    %v1323 = vsub.f32 %v1002, %v1322
    %1324 = vmatmul.mubr.f32.gmra.mrb[0].mxu0 %v1323
    %v1325 = vpop.f32.mrb[0].mxu0
    %v1326 = vadd.f32 %v1222, %v1325
    %v1327 = vpop.f32.mrb[0].mxu0
    %v1328 = vadd.f32 %v1224, %v1327
    %1329 = vmatprep.mubr.f32.mxu0 0.0
    %v1330 = vand.u32 %v1005, 4294901760
    %v1331 = vsub.f32 %v1005, %v1330
    %1332 = vmatmul.mubr.f32.gmra.mrb[0].mxu0 %v1331
    %v1333 = vpop.f32.mrb[0].mxu0
    %v1334 = vadd.f32 %v1229, %v1333
    %v1335 = vpop.f32.mrb[0].mxu0
    %v1336 = vadd.f32 %v1231, %v1335
    %1337 = vdwg.mxu0
    %v1338 = vand.u32 %v981, 4294901760
    %1339 = vmatprep.subr.mxu0 %v1338
    %v1340 = vand.u32 %v979, 4294901760
    %1341 = vmatpush1.msra.mxu0 %v1340
    %v1342 = vand.u32 %v988, 4294901760
    %1343 = vmatprep.subr.mxu0 %v1342
    %v1344 = vand.u32 %v986, 4294901760
    %1345 = vmatpush1.msra.mxu0 %v1344
    %1346 = vmatprep.subr.mxu0 0.0
    %1347 = vmatpush1.msra.mxu0 0.0
    %1348 = vmatprep.subr.mxu0 0.0
    %1349 = vmatpush1.msra.mxu0 0.0
    %1350 = vmatprep.subr.mxu0 0.0
    %1351 = vmatpush1.msra.mxu0 0.0
    %1352 = vmatprep.subr.mxu0 0.0
    %1353 = vmatpush1.msra.mxu0 0.0
    %1354 = vmatprep.subr.mxu0 0.0
    %1355 = vmatpush1.msra.mxu0 0.0
    %1356 = vmatprep.subr.mxu0 0.0
    %1357 = vmatpush1.msra.mxu0 0.0
    %1358 = vmatprep.subr.mxu0 0.0
    %1359 = vmatpush1.msra.mxu0 0.0
    %1360 = vmatprep.subr.mxu0 0.0
    %1361 = vmatpush1.msra.mxu0 0.0
    %1362 = vmatprep.subr.mxu0 0.0
    %1363 = vmatpush1.msra.mxu0 0.0
    %1364 = vmatprep.subr.mxu0 0.0
    %1365 = vmatpush1.msra.mxu0 0.0
    %1366 = vmatprep.subr.mxu0 0.0
    %1367 = vmatpush1.msra.mxu0 0.0
    %1368 = vmatprep.subr.mxu0 0.0
    %1369 = vmatpush1.msra.mxu0 0.0
    %1370 = vmatprep.subr.mxu0 0.0
    %1371 = vmatpush1.msra.mxu0 0.0
    %1372 = vmatprep.subr.mxu0 0.0
    %1373 = vmatpush1.msra.mxu0 0.0
    %1374 = vmatprep.subr.mxu0 0.0
    %1375 = vmatpush1.msra.mxu0 0.0
    %1376 = vmatprep.subr.mxu0 0.0
    %1377 = vmatpush1.msra.mxu0 0.0
    %1378 = vmatprep.subr.mxu0 0.0
    %1379 = vmatpush1.msra.mxu0 0.0
    %1380 = vmatprep.subr.mxu0 0.0
    %1381 = vmatpush1.msra.mxu0 0.0
    %1382 = vmatprep.subr.mxu0 0.0
    %1383 = vmatpush1.msra.mxu0 0.0
    %1384 = vmatprep.subr.mxu0 0.0
    %1385 = vmatpush1.msra.mxu0 0.0
    %1386 = vmatprep.subr.mxu0 0.0
    %1387 = vmatpush1.msra.mxu0 0.0
    %1388 = vmatprep.subr.mxu0 0.0
    %1389 = vmatpush1.msra.mxu0 0.0
    %1390 = vmatprep.subr.mxu0 0.0
    %1391 = vmatpush1.msra.mxu0 0.0
    %1392 = vmatprep.subr.mxu0 0.0
    %1393 = vmatpush1.msra.mxu0 0.0
    %1394 = vmatprep.subr.mxu0 0.0
    %1395 = vmatpush1.msra.mxu0 0.0
    %1396 = vmatprep.subr.mxu0 0.0
    %1397 = vmatpush1.msra.mxu0 0.0
    %1398 = vmatprep.subr.mxu0 0.0
    %1399 = vmatpush1.msra.mxu0 0.0
    %1400 = vmatprep.subr.mxu0 0.0
    %1401 = vmatpush1.msra.mxu0 0.0
    %1402 = vmatprep.subr.mxu0 0.0
    %1403 = vmatpush1.msra.mxu0 0.0
    %1404 = vmatprep.subr.mxu0 0.0
    %1405 = vmatpush1.msra.mxu0 0.0
    %1406 = vmatprep.mubr.f32.mxu0 0.0
    %v1407 = vand.u32 %v996, 4294901760
    %v1408 = vsub.f32 %v996, %v1407
    %v1409 = vand.u32 %v1408, 4294901760
    %1410 = vmatmul.mubr.f32.gmra.mrb[0].mxu0 %v1409
    %v1411 = vpop.f32.mrb[0].mxu0
    %v1412 = vadd.f32 %v1310, %v1411
    %v1413 = vpop.f32.mrb[0].mxu0
    %v1414 = vadd.f32 %v1312, %v1413
    %1415 = vmatprep.mubr.f32.mxu0 0.0
    %v1416 = vand.u32 %v999, 4294901760
    %v1417 = vsub.f32 %v999, %v1416
    %v1418 = vand.u32 %v1417, 4294901760
    %1419 = vmatmul.mubr.f32.gmra.mrb[0].mxu0 %v1418
    %v1420 = vpop.f32.mrb[0].mxu0
    %v1421 = vadd.f32 %v1318, %v1420
    %v1422 = vpop.f32.mrb[0].mxu0
    %v1423 = vadd.f32 %v1320, %v1422
    %1424 = vmatprep.mubr.f32.mxu0 0.0
    %v1425 = vand.u32 %v1002, 4294901760
    %v1426 = vsub.f32 %v1002, %v1425
    %v1427 = vand.u32 %v1426, 4294901760
    %1428 = vmatmul.mubr.f32.gmra.mrb[0].mxu0 %v1427
    %v1429 = vpop.f32.mrb[0].mxu0
    %v1430 = vadd.f32 %v1326, %v1429
    %v1431 = vpop.f32.mrb[0].mxu0
    %v1432 = vadd.f32 %v1328, %v1431
    %1433 = vmatprep.mubr.f32.mxu0 0.0
    %v1434 = vand.u32 %v1005, 4294901760
    %v1435 = vsub.f32 %v1005, %v1434
    %v1436 = vand.u32 %v1435, 4294901760
    %1437 = vmatmul.mubr.f32.gmra.mrb[0].mxu0 %v1436
    %v1438 = vpop.f32.mrb[0].mxu0
    %v1439 = vadd.f32 %v1334, %v1438
    %v1440 = vpop.f32.mrb[0].mxu0
    %v1441 = vadd.f32 %v1336, %v1440
    %1442 = vdwg.mxu0
    %v1443 = vand.u32 %v981, 4294901760
    %v1444 = vsub.f32 %v981, %v1443
    %v1445 = vand.u32 %v1444, 4294901760
    %1446 = vmatprep.subr.mxu0 %v1445
    %v1447 = vand.u32 %v979, 4294901760
    %v1448 = vsub.f32 %v979, %v1447
    %v1449 = vand.u32 %v1448, 4294901760
    %1450 = vmatpush1.msra.mxu0 %v1449
    %v1451 = vand.u32 %v988, 4294901760
    %v1452 = vsub.f32 %v988, %v1451
    %v1453 = vand.u32 %v1452, 4294901760
    %1454 = vmatprep.subr.mxu0 %v1453
    %v1455 = vand.u32 %v986, 4294901760
    %v1456 = vsub.f32 %v986, %v1455
    %v1457 = vand.u32 %v1456, 4294901760
    %1458 = vmatpush1.msra.mxu0 %v1457
    %1459 = vmatprep.subr.mxu0 0.0
    %1460 = vmatpush1.msra.mxu0 0.0
    %1461 = vmatprep.subr.mxu0 0.0
    %1462 = vmatpush1.msra.mxu0 0.0
    %1463 = vmatprep.subr.mxu0 0.0
    %1464 = vmatpush1.msra.mxu0 0.0
    %1465 = vmatprep.subr.mxu0 0.0
    %1466 = vmatpush1.msra.mxu0 0.0
    %1467 = vmatprep.subr.mxu0 0.0
    %1468 = vmatpush1.msra.mxu0 0.0
    %1469 = vmatprep.subr.mxu0 0.0
    %1470 = vmatpush1.msra.mxu0 0.0
    %1471 = vmatprep.subr.mxu0 0.0
    %1472 = vmatpush1.msra.mxu0 0.0
    %1473 = vmatprep.subr.mxu0 0.0
    %1474 = vmatpush1.msra.mxu0 0.0
    %1475 = vmatprep.subr.mxu0 0.0
    %1476 = vmatpush1.msra.mxu0 0.0
    %1477 = vmatprep.subr.mxu0 0.0
    %1478 = vmatpush1.msra.mxu0 0.0
    %1479 = vmatprep.subr.mxu0 0.0
    %1480 = vmatpush1.msra.mxu0 0.0
    %1481 = vmatprep.subr.mxu0 0.0
    %1482 = vmatpush1.msra.mxu0 0.0
    %1483 = vmatprep.subr.mxu0 0.0
    %1484 = vmatpush1.msra.mxu0 0.0
    %1485 = vmatprep.subr.mxu0 0.0
    %1486 = vmatpush1.msra.mxu0 0.0
    %1487 = vmatprep.subr.mxu0 0.0
    %1488 = vmatpush1.msra.mxu0 0.0
    %1489 = vmatprep.subr.mxu0 0.0
    %1490 = vmatpush1.msra.mxu0 0.0
    %1491 = vmatprep.subr.mxu0 0.0
    %1492 = vmatpush1.msra.mxu0 0.0
    %1493 = vmatprep.subr.mxu0 0.0
    %1494 = vmatpush1.msra.mxu0 0.0
    %1495 = vmatprep.subr.mxu0 0.0
    %1496 = vmatpush1.msra.mxu0 0.0
    %1497 = vmatprep.subr.mxu0 0.0
    %1498 = vmatpush1.msra.mxu0 0.0
    %1499 = vmatprep.subr.mxu0 0.0
    %1500 = vmatpush1.msra.mxu0 0.0
    %1501 = vmatprep.subr.mxu0 0.0
    %1502 = vmatpush1.msra.mxu0 0.0
    %1503 = vmatprep.subr.mxu0 0.0
    %1504 = vmatpush1.msra.mxu0 0.0
    %1505 = vmatprep.subr.mxu0 0.0
    %1506 = vmatpush1.msra.mxu0 0.0
    %1507 = vmatprep.subr.mxu0 0.0
    %1508 = vmatpush1.msra.mxu0 0.0
    %1509 = vmatprep.subr.mxu0 0.0
    %1510 = vmatpush1.msra.mxu0 0.0
    %1511 = vmatprep.subr.mxu0 0.0
    %1512 = vmatpush1.msra.mxu0 0.0
    %1513 = vmatprep.subr.mxu0 0.0
    %1514 = vmatpush1.msra.mxu0 0.0
    %1515 = vmatprep.subr.mxu0 0.0
    %1516 = vmatpush1.msra.mxu0 0.0
    %1517 = vmatprep.subr.mxu0 0.0
    %1518 = vmatpush1.msra.mxu0 0.0
    %1519 = vmatprep.mubr.f32.mxu0 0.0
    %v1520 = vand.u32 %v996, 4294901760
    %1521 = vmatmul.mubr.f32.gmra.mrb[0].mxu0 %v1520
    %v1522 = vpop.f32.mrb[0].mxu0
    %v1523 = vadd.f32 %v1412, %v1522
    %v1524 = vpop.f32.mrb[0].mxu0
    %v1525 = vadd.f32 %v1414, %v1524
    %1526 = vmatprep.mubr.f32.mxu0 0.0
    %v1527 = vand.u32 %v999, 4294901760
    %1528 = vmatmul.mubr.f32.gmra.mrb[0].mxu0 %v1527
    %v1529 = vpop.f32.mrb[0].mxu0
    %v1530 = vadd.f32 %v1421, %v1529
    %v1531 = vpop.f32.mrb[0].mxu0
    %v1532 = vadd.f32 %v1423, %v1531
    %1533 = vmatprep.mubr.f32.mxu0 0.0
    %v1534 = vand.u32 %v1002, 4294901760
    %1535 = vmatmul.mubr.f32.gmra.mrb[0].mxu0 %v1534
    %v1536 = vpop.f32.mrb[0].mxu0
    %v1537 = vadd.f32 %v1430, %v1536
    %v1538 = vpop.f32.mrb[0].mxu0
    %v1539 = vadd.f32 %v1432, %v1538
    %1540 = vmatprep.mubr.f32.mxu0 0.0
    %v1541 = vand.u32 %v1005, 4294901760
    %1542 = vmatmul.mubr.f32.gmra.mrb[0].mxu0 %v1541
    %v1543 = vpop.f32.mrb[0].mxu0
    %v1544 = vadd.f32 %v1439, %v1543
    %v1545 = vpop.f32.mrb[0].mxu0
    %v1546 = vadd.f32 %v1441, %v1545
    %1547 = vdwg.mxu0
    %v1548 = vand.u32 %v981, 4294901760
    %1549 = vmatprep.subr.mxu0 %v1548
    %v1550 = vand.u32 %v979, 4294901760
    %1551 = vmatpush1.msra.mxu0 %v1550
    %v1552 = vand.u32 %v988, 4294901760
    %1553 = vmatprep.subr.mxu0 %v1552
    %v1554 = vand.u32 %v986, 4294901760
    %1555 = vmatpush1.msra.mxu0 %v1554
    %1556 = vmatprep.subr.mxu0 0.0
    %1557 = vmatpush1.msra.mxu0 0.0
    %1558 = vmatprep.subr.mxu0 0.0
    %1559 = vmatpush1.msra.mxu0 0.0
    %1560 = vmatprep.subr.mxu0 0.0
    %1561 = vmatpush1.msra.mxu0 0.0
    %1562 = vmatprep.subr.mxu0 0.0
    %1563 = vmatpush1.msra.mxu0 0.0
    %1564 = vmatprep.subr.mxu0 0.0
    %1565 = vmatpush1.msra.mxu0 0.0
    %1566 = vmatprep.subr.mxu0 0.0
    %1567 = vmatpush1.msra.mxu0 0.0
    %1568 = vmatprep.subr.mxu0 0.0
    %1569 = vmatpush1.msra.mxu0 0.0
    %1570 = vmatprep.subr.mxu0 0.0
    %1571 = vmatpush1.msra.mxu0 0.0
    %1572 = vmatprep.subr.mxu0 0.0
    %1573 = vmatpush1.msra.mxu0 0.0
    %1574 = vmatprep.subr.mxu0 0.0
    %1575 = vmatpush1.msra.mxu0 0.0
    %1576 = vmatprep.subr.mxu0 0.0
    %1577 = vmatpush1.msra.mxu0 0.0
    %1578 = vmatprep.subr.mxu0 0.0
    %1579 = vmatpush1.msra.mxu0 0.0
    %1580 = vmatprep.subr.mxu0 0.0
    %1581 = vmatpush1.msra.mxu0 0.0
    %1582 = vmatprep.subr.mxu0 0.0
    %1583 = vmatpush1.msra.mxu0 0.0
    %1584 = vmatprep.subr.mxu0 0.0
    %1585 = vmatpush1.msra.mxu0 0.0
    %1586 = vmatprep.subr.mxu0 0.0
    %1587 = vmatpush1.msra.mxu0 0.0
    %1588 = vmatprep.subr.mxu0 0.0
    %1589 = vmatpush1.msra.mxu0 0.0
    %1590 = vmatprep.subr.mxu0 0.0
    %1591 = vmatpush1.msra.mxu0 0.0
    %1592 = vmatprep.subr.mxu0 0.0
    %1593 = vmatpush1.msra.mxu0 0.0
    %1594 = vmatprep.subr.mxu0 0.0
    %1595 = vmatpush1.msra.mxu0 0.0
    %1596 = vmatprep.subr.mxu0 0.0
    %1597 = vmatpush1.msra.mxu0 0.0
    %1598 = vmatprep.subr.mxu0 0.0
    %1599 = vmatpush1.msra.mxu0 0.0
    %1600 = vmatprep.subr.mxu0 0.0
    %1601 = vmatpush1.msra.mxu0 0.0
    %1602 = vmatprep.subr.mxu0 0.0
    %1603 = vmatpush1.msra.mxu0 0.0
    %1604 = vmatprep.subr.mxu0 0.0
    %1605 = vmatpush1.msra.mxu0 0.0
    %1606 = vmatprep.subr.mxu0 0.0
    %1607 = vmatpush1.msra.mxu0 0.0
    %1608 = vmatprep.subr.mxu0 0.0
    %1609 = vmatpush1.msra.mxu0 0.0
    %1610 = vmatprep.subr.mxu0 0.0
    %1611 = vmatpush1.msra.mxu0 0.0
    %1612 = vmatprep.subr.mxu0 0.0
    %1613 = vmatpush1.msra.mxu0 0.0
    %1614 = vmatprep.subr.mxu0 0.0
    %1615 = vmatpush1.msra.mxu0 0.0
    %1616 = vmatprep.mubr.f32.mxu0 0.0
    %v1617 = vand.u32 %v996, 4294901760
    %1618 = vmatmul.mubr.f32.gmra.mrb[0].mxu0 %v1617
    %v1619 = vpop.f32.mrb[0].mxu0
    %v1620 = vadd.f32 %v1523, %v1619
    %v1621 = vpop.f32.mrb[0].mxu0
    %v1622 = vadd.f32 %v1525, %v1621
    %1623 = vmatprep.mubr.f32.mxu0 0.0
    %v1624 = vand.u32 %v999, 4294901760
    %1625 = vmatmul.mubr.f32.gmra.mrb[0].mxu0 %v1624
    %v1626 = vpop.f32.mrb[0].mxu0
    %v1627 = vadd.f32 %v1530, %v1626
    %v1628 = vpop.f32.mrb[0].mxu0
    %v1629 = vadd.f32 %v1532, %v1628
    %1630 = vmatprep.mubr.f32.mxu0 0.0
    %v1631 = vand.u32 %v1002, 4294901760
    %1632 = vmatmul.mubr.f32.gmra.mrb[0].mxu0 %v1631
    %v1633 = vpop.f32.mrb[0].mxu0
    %v1634 = vadd.f32 %v1537, %v1633
    %v1635 = vpop.f32.mrb[0].mxu0
    %v1636 = vadd.f32 %v1539, %v1635
    %1637 = vmatprep.mubr.f32.mxu0 0.0
    %v1638 = vand.u32 %v1005, 4294901760
    %1639 = vmatmul.mubr.f32.gmra.mrb[0].mxu0 %v1638
    %v1640 = vpop.f32.mrb[0].mxu0
    %v1641 = vadd.f32 %v1544, %v1640
    %v1642 = vpop.f32.mrb[0].mxu0
    %v1643 = vadd.f32 %v1546, %v1642
    %1644 = vdwg.mxu0
    %v1645 = vsub.f32 %v1620, %v1636
    %v1646 = vsub.f32 %v1627, %v1643
    %v1647 = vadd.f32 %v1622, %v1634
    %v1648 = vadd.f32 %v1629, %v1641
    %v1649 = vmul.f32 %v1645, %v1645
    %v1650 = vmul.f32 %v1646, %v1646
    %v1651 = vmul.f32 %v1647, %v1647
    %v1652 = vmul.f32 %v1648, %v1648
    %v1653 = vadd.f32 %v1649, %v1651
    %v1654 = vadd.f32 %v1650, %v1652
    %v1655 = vrsqrt.pop %v1653
    %v1656 = vmul.f32 %v1653, %v1655
    %vm1657 = vcmp.eq.f32.partialorder %v1653, inf
    %v1658 = vsel %vm1657, %v1653, %v1656
    %vm1659 = vcmp.eq.f32.partialorder %v1653, 0.0
    %v1660 = vand.u32 %v1653, 2147483648
    %v1661 = vsel %vm1659, %v1660, %v1658
    %v1662 = vrsqrt.pop %v1654
    %v1663 = vmul.f32 %v1654, %v1662
    %vm1664 = vcmp.eq.f32.partialorder %v1654, inf
    %v1665 = vsel %vm1664, %v1654, %v1663
    %vm1666 = vcmp.eq.f32.partialorder %v1654, 0.0
    %v1667 = vand.u32 %v1654, 2147483648
    %v1668 = vsel %vm1666, %v1667, %v1665
    %v1669 = vand.u32 %v55, 4294901760
    %1670 = vmatprep.subr.mxu0 %v1669
    %v1671 = vand.u32 %v54, 4294901760
    %1672 = vmatpush1.msra.mxu0 %v1671
    %v1673 = vand.u32 %v57, 4294901760
    %1674 = vmatprep.subr.mxu0 %v1673
    %v1675 = vand.u32 %v56, 4294901760
    %1676 = vmatpush1.msra.mxu0 %v1675
    %v1677 = vand.u32 %v59, 4294901760
    %1678 = vmatprep.subr.mxu0 %v1677
    %v1679 = vand.u32 %v58, 4294901760
    %1680 = vmatpush1.msra.mxu0 %v1679
    %v1681 = vand.u32 %v61, 4294901760
    %1682 = vmatprep.subr.mxu0 %v1681
    %v1683 = vand.u32 %v60, 4294901760
    %1684 = vmatpush1.msra.mxu0 %v1683
    %v1685 = vand.u32 %v63, 4294901760
    %1686 = vmatprep.subr.mxu0 %v1685
    %v1687 = vand.u32 %v62, 4294901760
    %1688 = vmatpush1.msra.mxu0 %v1687
    %v1689 = vand.u32 %v65, 4294901760
    %1690 = vmatprep.subr.mxu0 %v1689
    %v1691 = vand.u32 %v64, 4294901760
    %1692 = vmatpush1.msra.mxu0 %v1691
    %v1693 = vand.u32 %v67, 4294901760
    %1694 = vmatprep.subr.mxu0 %v1693
    %v1695 = vand.u32 %v66, 4294901760
    %1696 = vmatpush1.msra.mxu0 %v1695
    %v1697 = vand.u32 %v69, 4294901760
    %1698 = vmatprep.subr.mxu0 %v1697
    %v1699 = vand.u32 %v68, 4294901760
    %1700 = vmatpush1.msra.mxu0 %v1699
    %v1701 = vand.u32 %v71, 4294901760
    %1702 = vmatprep.subr.mxu0 %v1701
    %v1703 = vand.u32 %v70, 4294901760
    %1704 = vmatpush1.msra.mxu0 %v1703
    %v1705 = vand.u32 %v73, 4294901760
    %1706 = vmatprep.subr.mxu0 %v1705
    %v1707 = vand.u32 %v72, 4294901760
    %1708 = vmatpush1.msra.mxu0 %v1707
    %v1709 = vand.u32 %v75, 4294901760
    %1710 = vmatprep.subr.mxu0 %v1709
    %v1711 = vand.u32 %v74, 4294901760
    %1712 = vmatpush1.msra.mxu0 %v1711
    %v1713 = vand.u32 %v77, 4294901760
    %1714 = vmatprep.subr.mxu0 %v1713
    %v1715 = vand.u32 %v76, 4294901760
    %1716 = vmatpush1.msra.mxu0 %v1715
    %v1717 = vand.u32 %v79, 4294901760
    %1718 = vmatprep.subr.mxu0 %v1717
    %v1719 = vand.u32 %v78, 4294901760
    %1720 = vmatpush1.msra.mxu0 %v1719
    %v1721 = vand.u32 %v81, 4294901760
    %1722 = vmatprep.subr.mxu0 %v1721
    %v1723 = vand.u32 %v80, 4294901760
    %1724 = vmatpush1.msra.mxu0 %v1723
    %v1725 = vand.u32 %v83, 4294901760
    %1726 = vmatprep.subr.mxu0 %v1725
    %v1727 = vand.u32 %v82, 4294901760
    %1728 = vmatpush1.msra.mxu0 %v1727
    %v1729 = vand.u32 %v85, 4294901760
    %1730 = vmatprep.subr.mxu0 %v1729
    %v1731 = vand.u32 %v84, 4294901760
    %1732 = vmatpush1.msra.mxu0 %v1731
    %1733 = vmatprep.subr.mxu0 0.0
    %1734 = vmatpush1.msra.mxu0 0.0
    %1735 = vmatprep.subr.mxu0 0.0
    %1736 = vmatpush1.msra.mxu0 0.0
    %1737 = vmatprep.subr.mxu0 0.0
    %1738 = vmatpush1.msra.mxu0 0.0
    %1739 = vmatprep.subr.mxu0 0.0
    %1740 = vmatpush1.msra.mxu0 0.0
    %1741 = vmatprep.subr.mxu0 0.0
    %1742 = vmatpush1.msra.mxu0 0.0
    %1743 = vmatprep.subr.mxu0 0.0
    %1744 = vmatpush1.msra.mxu0 0.0
    %1745 = vmatprep.subr.mxu0 0.0
    %1746 = vmatpush1.msra.mxu0 0.0
    %1747 = vmatprep.subr.mxu0 0.0
    %1748 = vmatpush1.msra.mxu0 0.0
    %1749 = vmatprep.subr.mxu0 0.0
    %1750 = vmatpush1.msra.mxu0 0.0
    %1751 = vmatprep.subr.mxu0 0.0
    %1752 = vmatpush1.msra.mxu0 0.0
    %1753 = vmatprep.subr.mxu0 0.0
    %1754 = vmatpush1.msra.mxu0 0.0
    %1755 = vmatprep.subr.mxu0 0.0
    %1756 = vmatpush1.msra.mxu0 0.0
    %1757 = vmatprep.subr.mxu0 0.0
    %1758 = vmatpush1.msra.mxu0 0.0
    %1759 = vmatprep.subr.mxu0 0.0
    %1760 = vmatpush1.msra.mxu0 0.0
    %1761 = vmatprep.subr.mxu0 0.0
    %1762 = vmatpush1.msra.mxu0 0.0
    %1763 = vmatprep.subr.mxu0 0.0
    %1764 = vmatpush1.msra.mxu0 0.0
    %1765 = vmatprep.mubr.f32.mxu0 0.0
    %v1766 = vand.u32 %v1661, 4294901760
    %v1767 = vsub.f32 %v1661, %v1766
    %v1768 = vand.u32 %v1767, 4294901760
    %v1769 = vsub.f32 %v1767, %v1768
    %v1770 = vand.u32 %v1769, 4294901760
    %1771 = vmatmul.mubr.f32.gmra.mrb[0].mxu0 %v1770
    %v1772 = vpop.f32.mrb[0].mxu0
    %v1773 = vadd.f32 0.0, %v1772
    %v1774 = vpop.f32.mrb[0].mxu0
    %v1775 = vadd.f32 0.0, %v1774
    %1776 = vmatprep.mubr.f32.mxu0 0.0
    %v1777 = vand.u32 %v1668, 4294901760
    %v1778 = vsub.f32 %v1668, %v1777
    %v1779 = vand.u32 %v1778, 4294901760
    %v1780 = vsub.f32 %v1778, %v1779
    %v1781 = vand.u32 %v1780, 4294901760
    %1782 = vmatmul.mubr.f32.gmra.mrb[0].mxu0 %v1781
    %v1783 = vpop.f32.mrb[0].mxu0
    %v1784 = vadd.f32 0.0, %v1783
    %v1785 = vpop.f32.mrb[0].mxu0
    %v1786 = vadd.f32 0.0, %v1785
    %1787 = vdwg.mxu0
    %v1788 = vand.u32 %v55, 4294901760
    %v1789 = vsub.f32 %v55, %v1788
    %v1790 = vand.u32 %v1789, 4294901760
    %v1791 = vsub.f32 %v1789, %v1790
    %v1792 = vand.u32 %v1791, 4294901760
    %1793 = vmatprep.subr.mxu0 %v1792
    %v1794 = vand.u32 %v54, 4294901760
    %v1795 = vsub.f32 %v54, %v1794
    %v1796 = vand.u32 %v1795, 4294901760
    %v1797 = vsub.f32 %v1795, %v1796
    %v1798 = vand.u32 %v1797, 4294901760
    %1799 = vmatpush1.msra.mxu0 %v1798
    %v1800 = vand.u32 %v57, 4294901760
    %v1801 = vsub.f32 %v57, %v1800
    %v1802 = vand.u32 %v1801, 4294901760
    %v1803 = vsub.f32 %v1801, %v1802
    %v1804 = vand.u32 %v1803, 4294901760
    %1805 = vmatprep.subr.mxu0 %v1804
    %v1806 = vand.u32 %v56, 4294901760
    %v1807 = vsub.f32 %v56, %v1806
    %v1808 = vand.u32 %v1807, 4294901760
    %v1809 = vsub.f32 %v1807, %v1808
    %v1810 = vand.u32 %v1809, 4294901760
    %1811 = vmatpush1.msra.mxu0 %v1810
    %v1812 = vand.u32 %v59, 4294901760
    %v1813 = vsub.f32 %v59, %v1812
    %v1814 = vand.u32 %v1813, 4294901760
    %v1815 = vsub.f32 %v1813, %v1814
    %v1816 = vand.u32 %v1815, 4294901760
    %1817 = vmatprep.subr.mxu0 %v1816
    %v1818 = vand.u32 %v58, 4294901760
    %v1819 = vsub.f32 %v58, %v1818
    %v1820 = vand.u32 %v1819, 4294901760
    %v1821 = vsub.f32 %v1819, %v1820
    %v1822 = vand.u32 %v1821, 4294901760
    %1823 = vmatpush1.msra.mxu0 %v1822
    %v1824 = vand.u32 %v61, 4294901760
    %v1825 = vsub.f32 %v61, %v1824
    %v1826 = vand.u32 %v1825, 4294901760
    %v1827 = vsub.f32 %v1825, %v1826
    %v1828 = vand.u32 %v1827, 4294901760
    %1829 = vmatprep.subr.mxu0 %v1828
    %v1830 = vand.u32 %v60, 4294901760
    %v1831 = vsub.f32 %v60, %v1830
    %v1832 = vand.u32 %v1831, 4294901760
    %v1833 = vsub.f32 %v1831, %v1832
    %v1834 = vand.u32 %v1833, 4294901760
    %1835 = vmatpush1.msra.mxu0 %v1834
    %v1836 = vand.u32 %v63, 4294901760
    %v1837 = vsub.f32 %v63, %v1836
    %v1838 = vand.u32 %v1837, 4294901760
    %v1839 = vsub.f32 %v1837, %v1838
    %v1840 = vand.u32 %v1839, 4294901760
    %1841 = vmatprep.subr.mxu0 %v1840
    %v1842 = vand.u32 %v62, 4294901760
    %v1843 = vsub.f32 %v62, %v1842
    %v1844 = vand.u32 %v1843, 4294901760
    %v1845 = vsub.f32 %v1843, %v1844
    %v1846 = vand.u32 %v1845, 4294901760
    %1847 = vmatpush1.msra.mxu0 %v1846
    %v1848 = vand.u32 %v65, 4294901760
    %v1849 = vsub.f32 %v65, %v1848
    %v1850 = vand.u32 %v1849, 4294901760
    %v1851 = vsub.f32 %v1849, %v1850
    %v1852 = vand.u32 %v1851, 4294901760
    %1853 = vmatprep.subr.mxu0 %v1852
    %v1854 = vand.u32 %v64, 4294901760
    %v1855 = vsub.f32 %v64, %v1854
    %v1856 = vand.u32 %v1855, 4294901760
    %v1857 = vsub.f32 %v1855, %v1856
    %v1858 = vand.u32 %v1857, 4294901760
    %1859 = vmatpush1.msra.mxu0 %v1858
    %v1860 = vand.u32 %v67, 4294901760
    %v1861 = vsub.f32 %v67, %v1860
    %v1862 = vand.u32 %v1861, 4294901760
    %v1863 = vsub.f32 %v1861, %v1862
    %v1864 = vand.u32 %v1863, 4294901760
    %1865 = vmatprep.subr.mxu0 %v1864
    %v1866 = vand.u32 %v66, 4294901760
    %v1867 = vsub.f32 %v66, %v1866
    %v1868 = vand.u32 %v1867, 4294901760
    %v1869 = vsub.f32 %v1867, %v1868
    %v1870 = vand.u32 %v1869, 4294901760
    %1871 = vmatpush1.msra.mxu0 %v1870
    %v1872 = vand.u32 %v69, 4294901760
    %v1873 = vsub.f32 %v69, %v1872
    %v1874 = vand.u32 %v1873, 4294901760
    %v1875 = vsub.f32 %v1873, %v1874
    %v1876 = vand.u32 %v1875, 4294901760
    %1877 = vmatprep.subr.mxu0 %v1876
    %v1878 = vand.u32 %v68, 4294901760
    %v1879 = vsub.f32 %v68, %v1878
    %v1880 = vand.u32 %v1879, 4294901760
    %v1881 = vsub.f32 %v1879, %v1880
    %v1882 = vand.u32 %v1881, 4294901760
    %1883 = vmatpush1.msra.mxu0 %v1882
    %v1884 = vand.u32 %v71, 4294901760
    %v1885 = vsub.f32 %v71, %v1884
    %v1886 = vand.u32 %v1885, 4294901760
    %v1887 = vsub.f32 %v1885, %v1886
    %v1888 = vand.u32 %v1887, 4294901760
    %1889 = vmatprep.subr.mxu0 %v1888
    %v1890 = vand.u32 %v70, 4294901760
    %v1891 = vsub.f32 %v70, %v1890
    %v1892 = vand.u32 %v1891, 4294901760
    %v1893 = vsub.f32 %v1891, %v1892
    %v1894 = vand.u32 %v1893, 4294901760
    %1895 = vmatpush1.msra.mxu0 %v1894
    %v1896 = vand.u32 %v73, 4294901760
    %v1897 = vsub.f32 %v73, %v1896
    %v1898 = vand.u32 %v1897, 4294901760
    %v1899 = vsub.f32 %v1897, %v1898
    %v1900 = vand.u32 %v1899, 4294901760
    %1901 = vmatprep.subr.mxu0 %v1900
    %v1902 = vand.u32 %v72, 4294901760
    %v1903 = vsub.f32 %v72, %v1902
    %v1904 = vand.u32 %v1903, 4294901760
    %v1905 = vsub.f32 %v1903, %v1904
    %v1906 = vand.u32 %v1905, 4294901760
    %1907 = vmatpush1.msra.mxu0 %v1906
    %v1908 = vand.u32 %v75, 4294901760
    %v1909 = vsub.f32 %v75, %v1908
    %v1910 = vand.u32 %v1909, 4294901760
    %v1911 = vsub.f32 %v1909, %v1910
    %v1912 = vand.u32 %v1911, 4294901760
    %1913 = vmatprep.subr.mxu0 %v1912
    %v1914 = vand.u32 %v74, 4294901760
    %v1915 = vsub.f32 %v74, %v1914
    %v1916 = vand.u32 %v1915, 4294901760
    %v1917 = vsub.f32 %v1915, %v1916
    %v1918 = vand.u32 %v1917, 4294901760
    %1919 = vmatpush1.msra.mxu0 %v1918
    %v1920 = vand.u32 %v77, 4294901760
    %v1921 = vsub.f32 %v77, %v1920
    %v1922 = vand.u32 %v1921, 4294901760
    %v1923 = vsub.f32 %v1921, %v1922
    %v1924 = vand.u32 %v1923, 4294901760
    %1925 = vmatprep.subr.mxu0 %v1924
    %v1926 = vand.u32 %v76, 4294901760
    %v1927 = vsub.f32 %v76, %v1926
    %v1928 = vand.u32 %v1927, 4294901760
    %v1929 = vsub.f32 %v1927, %v1928
    %v1930 = vand.u32 %v1929, 4294901760
    %1931 = vmatpush1.msra.mxu0 %v1930
    %v1932 = vand.u32 %v79, 4294901760
    %v1933 = vsub.f32 %v79, %v1932
    %v1934 = vand.u32 %v1933, 4294901760
    %v1935 = vsub.f32 %v1933, %v1934
    %v1936 = vand.u32 %v1935, 4294901760
    %1937 = vmatprep.subr.mxu0 %v1936
    %v1938 = vand.u32 %v78, 4294901760
    %v1939 = vsub.f32 %v78, %v1938
    %v1940 = vand.u32 %v1939, 4294901760
    %v1941 = vsub.f32 %v1939, %v1940
    %v1942 = vand.u32 %v1941, 4294901760
    %1943 = vmatpush1.msra.mxu0 %v1942
    %v1944 = vand.u32 %v81, 4294901760
    %v1945 = vsub.f32 %v81, %v1944
    %v1946 = vand.u32 %v1945, 4294901760
    %v1947 = vsub.f32 %v1945, %v1946
    %v1948 = vand.u32 %v1947, 4294901760
    %1949 = vmatprep.subr.mxu0 %v1948
    %v1950 = vand.u32 %v80, 4294901760
    %v1951 = vsub.f32 %v80, %v1950
    %v1952 = vand.u32 %v1951, 4294901760
    %v1953 = vsub.f32 %v1951, %v1952
    %v1954 = vand.u32 %v1953, 4294901760
    %1955 = vmatpush1.msra.mxu0 %v1954
    %v1956 = vand.u32 %v83, 4294901760
    %v1957 = vsub.f32 %v83, %v1956
    %v1958 = vand.u32 %v1957, 4294901760
    %v1959 = vsub.f32 %v1957, %v1958
    %v1960 = vand.u32 %v1959, 4294901760
    %1961 = vmatprep.subr.mxu0 %v1960
    %v1962 = vand.u32 %v82, 4294901760
    %v1963 = vsub.f32 %v82, %v1962
    %v1964 = vand.u32 %v1963, 4294901760
    %v1965 = vsub.f32 %v1963, %v1964
    %v1966 = vand.u32 %v1965, 4294901760
    %1967 = vmatpush1.msra.mxu0 %v1966
    %v1968 = vand.u32 %v85, 4294901760
    %v1969 = vsub.f32 %v85, %v1968
    %v1970 = vand.u32 %v1969, 4294901760
    %v1971 = vsub.f32 %v1969, %v1970
    %v1972 = vand.u32 %v1971, 4294901760
    %1973 = vmatprep.subr.mxu0 %v1972
    %v1974 = vand.u32 %v84, 4294901760
    %v1975 = vsub.f32 %v84, %v1974
    %v1976 = vand.u32 %v1975, 4294901760
    %v1977 = vsub.f32 %v1975, %v1976
    %v1978 = vand.u32 %v1977, 4294901760
    %1979 = vmatpush1.msra.mxu0 %v1978
    %1980 = vmatprep.subr.mxu0 0.0
    %1981 = vmatpush1.msra.mxu0 0.0
    %1982 = vmatprep.subr.mxu0 0.0
    %1983 = vmatpush1.msra.mxu0 0.0
    %1984 = vmatprep.subr.mxu0 0.0
    %1985 = vmatpush1.msra.mxu0 0.0
    %1986 = vmatprep.subr.mxu0 0.0
    %1987 = vmatpush1.msra.mxu0 0.0
    %1988 = vmatprep.subr.mxu0 0.0
    %1989 = vmatpush1.msra.mxu0 0.0
    %1990 = vmatprep.subr.mxu0 0.0
    %1991 = vmatpush1.msra.mxu0 0.0
    %1992 = vmatprep.subr.mxu0 0.0
    %1993 = vmatpush1.msra.mxu0 0.0
    %1994 = vmatprep.subr.mxu0 0.0
    %1995 = vmatpush1.msra.mxu0 0.0
    %1996 = vmatprep.subr.mxu0 0.0
    %1997 = vmatpush1.msra.mxu0 0.0
    %1998 = vmatprep.subr.mxu0 0.0
    %1999 = vmatpush1.msra.mxu0 0.0
    %2000 = vmatprep.subr.mxu0 0.0
    %2001 = vmatpush1.msra.mxu0 0.0
    %2002 = vmatprep.subr.mxu0 0.0
    %2003 = vmatpush1.msra.mxu0 0.0
    %2004 = vmatprep.subr.mxu0 0.0
    %2005 = vmatpush1.msra.mxu0 0.0
    %2006 = vmatprep.subr.mxu0 0.0
    %2007 = vmatpush1.msra.mxu0 0.0
    %2008 = vmatprep.subr.mxu0 0.0
    %2009 = vmatpush1.msra.mxu0 0.0
    %2010 = vmatprep.subr.mxu0 0.0
    %2011 = vmatpush1.msra.mxu0 0.0
    %2012 = vmatprep.mubr.f32.mxu0 0.0
    %v2013 = vand.u32 %v1661, 4294901760
    %2014 = vmatmul.mubr.f32.gmra.mrb[0].mxu0 %v2013
    %v2015 = vpop.f32.mrb[0].mxu0
    %v2016 = vadd.f32 %v1773, %v2015
    %v2017 = vpop.f32.mrb[0].mxu0
    %v2018 = vadd.f32 %v1775, %v2017
    %2019 = vmatprep.mubr.f32.mxu0 0.0
    %v2020 = vand.u32 %v1668, 4294901760
    %2021 = vmatmul.mubr.f32.gmra.mrb[0].mxu0 %v2020
    %v2022 = vpop.f32.mrb[0].mxu0
    %v2023 = vadd.f32 %v1784, %v2022
    %v2024 = vpop.f32.mrb[0].mxu0
    %v2025 = vadd.f32 %v1786, %v2024
    %2026 = vdwg.mxu0
    %v2027 = vand.u32 %v55, 4294901760
    %v2028 = vsub.f32 %v55, %v2027
    %2029 = vmatprep.subr.mxu0 %v2028
    %v2030 = vand.u32 %v54, 4294901760
    %v2031 = vsub.f32 %v54, %v2030
    %2032 = vmatpush1.msra.mxu0 %v2031
    %v2033 = vand.u32 %v57, 4294901760
    %v2034 = vsub.f32 %v57, %v2033
    %2035 = vmatprep.subr.mxu0 %v2034
    %v2036 = vand.u32 %v56, 4294901760
    %v2037 = vsub.f32 %v56, %v2036
    %2038 = vmatpush1.msra.mxu0 %v2037
    %v2039 = vand.u32 %v59, 4294901760
    %v2040 = vsub.f32 %v59, %v2039
    %2041 = vmatprep.subr.mxu0 %v2040
    %v2042 = vand.u32 %v58, 4294901760
    %v2043 = vsub.f32 %v58, %v2042
    %2044 = vmatpush1.msra.mxu0 %v2043
    %v2045 = vand.u32 %v61, 4294901760
    %v2046 = vsub.f32 %v61, %v2045
    %2047 = vmatprep.subr.mxu0 %v2046
    %v2048 = vand.u32 %v60, 4294901760
    %v2049 = vsub.f32 %v60, %v2048
    %2050 = vmatpush1.msra.mxu0 %v2049
    %v2051 = vand.u32 %v63, 4294901760
    %v2052 = vsub.f32 %v63, %v2051
    %2053 = vmatprep.subr.mxu0 %v2052
    %v2054 = vand.u32 %v62, 4294901760
    %v2055 = vsub.f32 %v62, %v2054
    %2056 = vmatpush1.msra.mxu0 %v2055
    %v2057 = vand.u32 %v65, 4294901760
    %v2058 = vsub.f32 %v65, %v2057
    %2059 = vmatprep.subr.mxu0 %v2058
    %v2060 = vand.u32 %v64, 4294901760
    %v2061 = vsub.f32 %v64, %v2060
    %2062 = vmatpush1.msra.mxu0 %v2061
    %v2063 = vand.u32 %v67, 4294901760
    %v2064 = vsub.f32 %v67, %v2063
    %2065 = vmatprep.subr.mxu0 %v2064
    %v2066 = vand.u32 %v66, 4294901760
    %v2067 = vsub.f32 %v66, %v2066
    %2068 = vmatpush1.msra.mxu0 %v2067
    %v2069 = vand.u32 %v69, 4294901760
    %v2070 = vsub.f32 %v69, %v2069
    %2071 = vmatprep.subr.mxu0 %v2070
    %v2072 = vand.u32 %v68, 4294901760
    %v2073 = vsub.f32 %v68, %v2072
    %2074 = vmatpush1.msra.mxu0 %v2073
    %v2075 = vand.u32 %v71, 4294901760
    %v2076 = vsub.f32 %v71, %v2075
    %2077 = vmatprep.subr.mxu0 %v2076
    %v2078 = vand.u32 %v70, 4294901760
    %v2079 = vsub.f32 %v70, %v2078
    %2080 = vmatpush1.msra.mxu0 %v2079
    %v2081 = vand.u32 %v73, 4294901760
    %v2082 = vsub.f32 %v73, %v2081
    %2083 = vmatprep.subr.mxu0 %v2082
    %v2084 = vand.u32 %v72, 4294901760
    %v2085 = vsub.f32 %v72, %v2084
    %2086 = vmatpush1.msra.mxu0 %v2085
    %v2087 = vand.u32 %v75, 4294901760
    %v2088 = vsub.f32 %v75, %v2087
    %2089 = vmatprep.subr.mxu0 %v2088
    %v2090 = vand.u32 %v74, 4294901760
    %v2091 = vsub.f32 %v74, %v2090
    %2092 = vmatpush1.msra.mxu0 %v2091
    %v2093 = vand.u32 %v77, 4294901760
    %v2094 = vsub.f32 %v77, %v2093
    %2095 = vmatprep.subr.mxu0 %v2094
    %v2096 = vand.u32 %v76, 4294901760
    %v2097 = vsub.f32 %v76, %v2096
    %2098 = vmatpush1.msra.mxu0 %v2097
    %v2099 = vand.u32 %v79, 4294901760
    %v2100 = vsub.f32 %v79, %v2099
    %2101 = vmatprep.subr.mxu0 %v2100
    %v2102 = vand.u32 %v78, 4294901760
    %v2103 = vsub.f32 %v78, %v2102
    %2104 = vmatpush1.msra.mxu0 %v2103
    %v2105 = vand.u32 %v81, 4294901760
    %v2106 = vsub.f32 %v81, %v2105
    %2107 = vmatprep.subr.mxu0 %v2106
    %v2108 = vand.u32 %v80, 4294901760
    %v2109 = vsub.f32 %v80, %v2108
    %2110 = vmatpush1.msra.mxu0 %v2109
    %v2111 = vand.u32 %v83, 4294901760
    %v2112 = vsub.f32 %v83, %v2111
    %2113 = vmatprep.subr.mxu0 %v2112
    %v2114 = vand.u32 %v82, 4294901760
    %v2115 = vsub.f32 %v82, %v2114
    %2116 = vmatpush1.msra.mxu0 %v2115
    %v2117 = vand.u32 %v85, 4294901760
    %v2118 = vsub.f32 %v85, %v2117
    %2119 = vmatprep.subr.mxu0 %v2118
    %v2120 = vand.u32 %v84, 4294901760
    %v2121 = vsub.f32 %v84, %v2120
    %2122 = vmatpush1.msra.mxu0 %v2121
    %2123 = vmatprep.subr.mxu0 0.0
    %2124 = vmatpush1.msra.mxu0 0.0
    %2125 = vmatprep.subr.mxu0 0.0
    %2126 = vmatpush1.msra.mxu0 0.0
    %2127 = vmatprep.subr.mxu0 0.0
    %2128 = vmatpush1.msra.mxu0 0.0
    %2129 = vmatprep.subr.mxu0 0.0
    %2130 = vmatpush1.msra.mxu0 0.0
    %2131 = vmatprep.subr.mxu0 0.0
    %2132 = vmatpush1.msra.mxu0 0.0
    %2133 = vmatprep.subr.mxu0 0.0
    %2134 = vmatpush1.msra.mxu0 0.0
    %2135 = vmatprep.subr.mxu0 0.0
    %2136 = vmatpush1.msra.mxu0 0.0
    %2137 = vmatprep.subr.mxu0 0.0
    %2138 = vmatpush1.msra.mxu0 0.0
    %2139 = vmatprep.subr.mxu0 0.0
    %2140 = vmatpush1.msra.mxu0 0.0
    %2141 = vmatprep.subr.mxu0 0.0
    %2142 = vmatpush1.msra.mxu0 0.0
    %2143 = vmatprep.subr.mxu0 0.0
    %2144 = vmatpush1.msra.mxu0 0.0
    %2145 = vmatprep.subr.mxu0 0.0
    %2146 = vmatpush1.msra.mxu0 0.0
    %2147 = vmatprep.subr.mxu0 0.0
    %2148 = vmatpush1.msra.mxu0 0.0
    %2149 = vmatprep.subr.mxu0 0.0
    %2150 = vmatpush1.msra.mxu0 0.0
    %2151 = vmatprep.subr.mxu0 0.0
    %2152 = vmatpush1.msra.mxu0 0.0
    %2153 = vmatprep.subr.mxu0 0.0
    %2154 = vmatpush1.msra.mxu0 0.0
    %2155 = vmatprep.mubr.f32.mxu0 0.0
    %v2156 = vand.u32 %v1661, 4294901760
    %v2157 = vsub.f32 %v1661, %v2156
    %2158 = vmatmul.mubr.f32.gmra.mrb[0].mxu0 %v2157
    %v2159 = vpop.f32.mrb[0].mxu0
    %v2160 = vadd.f32 %v2016, %v2159
    %v2161 = vpop.f32.mrb[0].mxu0
    %v2162 = vadd.f32 %v2018, %v2161
    %2163 = vmatprep.mubr.f32.mxu0 0.0
    %v2164 = vand.u32 %v1668, 4294901760
    %v2165 = vsub.f32 %v1668, %v2164
    %2166 = vmatmul.mubr.f32.gmra.mrb[0].mxu0 %v2165
    %v2167 = vpop.f32.mrb[0].mxu0
    %v2168 = vadd.f32 %v2023, %v2167
    %v2169 = vpop.f32.mrb[0].mxu0
    %v2170 = vadd.f32 %v2025, %v2169
    %2171 = vdwg.mxu0
    %v2172 = vand.u32 %v55, 4294901760
    %2173 = vmatprep.subr.mxu0 %v2172
    %v2174 = vand.u32 %v54, 4294901760
    %2175 = vmatpush1.msra.mxu0 %v2174
    %v2176 = vand.u32 %v57, 4294901760
    %2177 = vmatprep.subr.mxu0 %v2176
    %v2178 = vand.u32 %v56, 4294901760
    %2179 = vmatpush1.msra.mxu0 %v2178
    %v2180 = vand.u32 %v59, 4294901760
    %2181 = vmatprep.subr.mxu0 %v2180
    %v2182 = vand.u32 %v58, 4294901760
    %2183 = vmatpush1.msra.mxu0 %v2182
    %v2184 = vand.u32 %v61, 4294901760
    %2185 = vmatprep.subr.mxu0 %v2184
    %v2186 = vand.u32 %v60, 4294901760
    %2187 = vmatpush1.msra.mxu0 %v2186
    %v2188 = vand.u32 %v63, 4294901760
    %2189 = vmatprep.subr.mxu0 %v2188
    %v2190 = vand.u32 %v62, 4294901760
    %2191 = vmatpush1.msra.mxu0 %v2190
    %v2192 = vand.u32 %v65, 4294901760
    %2193 = vmatprep.subr.mxu0 %v2192
    %v2194 = vand.u32 %v64, 4294901760
    %2195 = vmatpush1.msra.mxu0 %v2194
    %v2196 = vand.u32 %v67, 4294901760
    %2197 = vmatprep.subr.mxu0 %v2196
    %v2198 = vand.u32 %v66, 4294901760
    %2199 = vmatpush1.msra.mxu0 %v2198
    %v2200 = vand.u32 %v69, 4294901760
    %2201 = vmatprep.subr.mxu0 %v2200
    %v2202 = vand.u32 %v68, 4294901760
    %2203 = vmatpush1.msra.mxu0 %v2202
    %v2204 = vand.u32 %v71, 4294901760
    %2205 = vmatprep.subr.mxu0 %v2204
    %v2206 = vand.u32 %v70, 4294901760
    %2207 = vmatpush1.msra.mxu0 %v2206
    %v2208 = vand.u32 %v73, 4294901760
    %2209 = vmatprep.subr.mxu0 %v2208
    %v2210 = vand.u32 %v72, 4294901760
    %2211 = vmatpush1.msra.mxu0 %v2210
    %v2212 = vand.u32 %v75, 4294901760
    %2213 = vmatprep.subr.mxu0 %v2212
    %v2214 = vand.u32 %v74, 4294901760
    %2215 = vmatpush1.msra.mxu0 %v2214
    %v2216 = vand.u32 %v77, 4294901760
    %2217 = vmatprep.subr.mxu0 %v2216
    %v2218 = vand.u32 %v76, 4294901760
    %2219 = vmatpush1.msra.mxu0 %v2218
    %v2220 = vand.u32 %v79, 4294901760
    %2221 = vmatprep.subr.mxu0 %v2220
    %v2222 = vand.u32 %v78, 4294901760
    %2223 = vmatpush1.msra.mxu0 %v2222
    %v2224 = vand.u32 %v81, 4294901760
    %2225 = vmatprep.subr.mxu0 %v2224
    %v2226 = vand.u32 %v80, 4294901760
    %2227 = vmatpush1.msra.mxu0 %v2226
    %v2228 = vand.u32 %v83, 4294901760
    %2229 = vmatprep.subr.mxu0 %v2228
    %v2230 = vand.u32 %v82, 4294901760
    %2231 = vmatpush1.msra.mxu0 %v2230
    %v2232 = vand.u32 %v85, 4294901760
    %2233 = vmatprep.subr.mxu0 %v2232
    %v2234 = vand.u32 %v84, 4294901760
    %2235 = vmatpush1.msra.mxu0 %v2234
    %2236 = vmatprep.subr.mxu0 0.0
    %2237 = vmatpush1.msra.mxu0 0.0
    %2238 = vmatprep.subr.mxu0 0.0
    %2239 = vmatpush1.msra.mxu0 0.0
    %2240 = vmatprep.subr.mxu0 0.0
    %2241 = vmatpush1.msra.mxu0 0.0
    %2242 = vmatprep.subr.mxu0 0.0
    %2243 = vmatpush1.msra.mxu0 0.0
    %2244 = vmatprep.subr.mxu0 0.0
    %2245 = vmatpush1.msra.mxu0 0.0
    %2246 = vmatprep.subr.mxu0 0.0
    %2247 = vmatpush1.msra.mxu0 0.0
    %2248 = vmatprep.subr.mxu0 0.0
    %2249 = vmatpush1.msra.mxu0 0.0
    %2250 = vmatprep.subr.mxu0 0.0
    %2251 = vmatpush1.msra.mxu0 0.0
    %2252 = vmatprep.subr.mxu0 0.0
    %2253 = vmatpush1.msra.mxu0 0.0
    %2254 = vmatprep.subr.mxu0 0.0
    %2255 = vmatpush1.msra.mxu0 0.0
    %2256 = vmatprep.subr.mxu0 0.0
    %2257 = vmatpush1.msra.mxu0 0.0
    %2258 = vmatprep.subr.mxu0 0.0
    %2259 = vmatpush1.msra.mxu0 0.0
    %2260 = vmatprep.subr.mxu0 0.0
    %2261 = vmatpush1.msra.mxu0 0.0
    %2262 = vmatprep.subr.mxu0 0.0
    %2263 = vmatpush1.msra.mxu0 0.0
    %2264 = vmatprep.subr.mxu0 0.0
    %2265 = vmatpush1.msra.mxu0 0.0
    %2266 = vmatprep.subr.mxu0 0.0
    %2267 = vmatpush1.msra.mxu0 0.0
    %2268 = vmatprep.mubr.f32.mxu0 0.0
    %v2269 = vand.u32 %v1661, 4294901760
    %v2270 = vsub.f32 %v1661, %v2269
    %v2271 = vand.u32 %v2270, 4294901760
    %2272 = vmatmul.mubr.f32.gmra.mrb[0].mxu0 %v2271
    %v2273 = vpop.f32.mrb[0].mxu0
    %v2274 = vadd.f32 %v2160, %v2273
    %v2275 = vpop.f32.mrb[0].mxu0
    %v2276 = vadd.f32 %v2162, %v2275
    %2277 = vmatprep.mubr.f32.mxu0 0.0
    %v2278 = vand.u32 %v1668, 4294901760
    %v2279 = vsub.f32 %v1668, %v2278
    %v2280 = vand.u32 %v2279, 4294901760
    %2281 = vmatmul.mubr.f32.gmra.mrb[0].mxu0 %v2280
    %v2282 = vpop.f32.mrb[0].mxu0
    %v2283 = vadd.f32 %v2168, %v2282
    %v2284 = vpop.f32.mrb[0].mxu0
    %v2285 = vadd.f32 %v2170, %v2284
    %2286 = vdwg.mxu0
    %v2287 = vand.u32 %v55, 4294901760
    %v2288 = vsub.f32 %v55, %v2287
    %v2289 = vand.u32 %v2288, 4294901760
    %2290 = vmatprep.subr.mxu0 %v2289
    %v2291 = vand.u32 %v54, 4294901760
    %v2292 = vsub.f32 %v54, %v2291
    %v2293 = vand.u32 %v2292, 4294901760
    %2294 = vmatpush1.msra.mxu0 %v2293
    %v2295 = vand.u32 %v57, 4294901760
    %v2296 = vsub.f32 %v57, %v2295
    %v2297 = vand.u32 %v2296, 4294901760
    %2298 = vmatprep.subr.mxu0 %v2297
    %v2299 = vand.u32 %v56, 4294901760
    %v2300 = vsub.f32 %v56, %v2299
    %v2301 = vand.u32 %v2300, 4294901760
    %2302 = vmatpush1.msra.mxu0 %v2301
    %v2303 = vand.u32 %v59, 4294901760
    %v2304 = vsub.f32 %v59, %v2303
    %v2305 = vand.u32 %v2304, 4294901760
    %2306 = vmatprep.subr.mxu0 %v2305
    %v2307 = vand.u32 %v58, 4294901760
    %v2308 = vsub.f32 %v58, %v2307
    %v2309 = vand.u32 %v2308, 4294901760
    %2310 = vmatpush1.msra.mxu0 %v2309
    %v2311 = vand.u32 %v61, 4294901760
    %v2312 = vsub.f32 %v61, %v2311
    %v2313 = vand.u32 %v2312, 4294901760
    %2314 = vmatprep.subr.mxu0 %v2313
    %v2315 = vand.u32 %v60, 4294901760
    %v2316 = vsub.f32 %v60, %v2315
    %v2317 = vand.u32 %v2316, 4294901760
    %2318 = vmatpush1.msra.mxu0 %v2317
    %v2319 = vand.u32 %v63, 4294901760
    %v2320 = vsub.f32 %v63, %v2319
    %v2321 = vand.u32 %v2320, 4294901760
    %2322 = vmatprep.subr.mxu0 %v2321
    %v2323 = vand.u32 %v62, 4294901760
    %v2324 = vsub.f32 %v62, %v2323
    %v2325 = vand.u32 %v2324, 4294901760
    %2326 = vmatpush1.msra.mxu0 %v2325
    %v2327 = vand.u32 %v65, 4294901760
    %v2328 = vsub.f32 %v65, %v2327
    %v2329 = vand.u32 %v2328, 4294901760
    %2330 = vmatprep.subr.mxu0 %v2329
    %v2331 = vand.u32 %v64, 4294901760
    %v2332 = vsub.f32 %v64, %v2331
    %v2333 = vand.u32 %v2332, 4294901760
    %2334 = vmatpush1.msra.mxu0 %v2333
    %v2335 = vand.u32 %v67, 4294901760
    %v2336 = vsub.f32 %v67, %v2335
    %v2337 = vand.u32 %v2336, 4294901760
    %2338 = vmatprep.subr.mxu0 %v2337
    %v2339 = vand.u32 %v66, 4294901760
    %v2340 = vsub.f32 %v66, %v2339
    %v2341 = vand.u32 %v2340, 4294901760
    %2342 = vmatpush1.msra.mxu0 %v2341
    %v2343 = vand.u32 %v69, 4294901760
    %v2344 = vsub.f32 %v69, %v2343
    %v2345 = vand.u32 %v2344, 4294901760
    %2346 = vmatprep.subr.mxu0 %v2345
    %v2347 = vand.u32 %v68, 4294901760
    %v2348 = vsub.f32 %v68, %v2347
    %v2349 = vand.u32 %v2348, 4294901760
    %2350 = vmatpush1.msra.mxu0 %v2349
    %v2351 = vand.u32 %v71, 4294901760
    %v2352 = vsub.f32 %v71, %v2351
    %v2353 = vand.u32 %v2352, 4294901760
    %2354 = vmatprep.subr.mxu0 %v2353
    %v2355 = vand.u32 %v70, 4294901760
    %v2356 = vsub.f32 %v70, %v2355
    %v2357 = vand.u32 %v2356, 4294901760
    %2358 = vmatpush1.msra.mxu0 %v2357
    %v2359 = vand.u32 %v73, 4294901760
    %v2360 = vsub.f32 %v73, %v2359
    %v2361 = vand.u32 %v2360, 4294901760
    %2362 = vmatprep.subr.mxu0 %v2361
    %v2363 = vand.u32 %v72, 4294901760
    %v2364 = vsub.f32 %v72, %v2363
    %v2365 = vand.u32 %v2364, 4294901760
    %2366 = vmatpush1.msra.mxu0 %v2365
    %v2367 = vand.u32 %v75, 4294901760
    %v2368 = vsub.f32 %v75, %v2367
    %v2369 = vand.u32 %v2368, 4294901760
    %2370 = vmatprep.subr.mxu0 %v2369
    %v2371 = vand.u32 %v74, 4294901760
    %v2372 = vsub.f32 %v74, %v2371
    %v2373 = vand.u32 %v2372, 4294901760
    %2374 = vmatpush1.msra.mxu0 %v2373
    %v2375 = vand.u32 %v77, 4294901760
    %v2376 = vsub.f32 %v77, %v2375
    %v2377 = vand.u32 %v2376, 4294901760
    %2378 = vmatprep.subr.mxu0 %v2377
    %v2379 = vand.u32 %v76, 4294901760
    %v2380 = vsub.f32 %v76, %v2379
    %v2381 = vand.u32 %v2380, 4294901760
    %2382 = vmatpush1.msra.mxu0 %v2381
    %v2383 = vand.u32 %v79, 4294901760
    %v2384 = vsub.f32 %v79, %v2383
    %v2385 = vand.u32 %v2384, 4294901760
    %2386 = vmatprep.subr.mxu0 %v2385
    %v2387 = vand.u32 %v78, 4294901760
    %v2388 = vsub.f32 %v78, %v2387
    %v2389 = vand.u32 %v2388, 4294901760
    %2390 = vmatpush1.msra.mxu0 %v2389
    %v2391 = vand.u32 %v81, 4294901760
    %v2392 = vsub.f32 %v81, %v2391
    %v2393 = vand.u32 %v2392, 4294901760
    %2394 = vmatprep.subr.mxu0 %v2393
    %v2395 = vand.u32 %v80, 4294901760
    %v2396 = vsub.f32 %v80, %v2395
    %v2397 = vand.u32 %v2396, 4294901760
    %2398 = vmatpush1.msra.mxu0 %v2397
    %v2399 = vand.u32 %v83, 4294901760
    %v2400 = vsub.f32 %v83, %v2399
    %v2401 = vand.u32 %v2400, 4294901760
    %2402 = vmatprep.subr.mxu0 %v2401
    %v2403 = vand.u32 %v82, 4294901760
    %v2404 = vsub.f32 %v82, %v2403
    %v2405 = vand.u32 %v2404, 4294901760
    %2406 = vmatpush1.msra.mxu0 %v2405
    %v2407 = vand.u32 %v85, 4294901760
    %v2408 = vsub.f32 %v85, %v2407
    %v2409 = vand.u32 %v2408, 4294901760
    %2410 = vmatprep.subr.mxu0 %v2409
    %v2411 = vand.u32 %v84, 4294901760
    %v2412 = vsub.f32 %v84, %v2411
    %v2413 = vand.u32 %v2412, 4294901760
    %2414 = vmatpush1.msra.mxu0 %v2413
    %2415 = vmatprep.subr.mxu0 0.0
    %2416 = vmatpush1.msra.mxu0 0.0
    %2417 = vmatprep.subr.mxu0 0.0
    %2418 = vmatpush1.msra.mxu0 0.0
    %2419 = vmatprep.subr.mxu0 0.0
    %2420 = vmatpush1.msra.mxu0 0.0
    %2421 = vmatprep.subr.mxu0 0.0
    %2422 = vmatpush1.msra.mxu0 0.0
    %2423 = vmatprep.subr.mxu0 0.0
    %2424 = vmatpush1.msra.mxu0 0.0
    %2425 = vmatprep.subr.mxu0 0.0
    %2426 = vmatpush1.msra.mxu0 0.0
    %2427 = vmatprep.subr.mxu0 0.0
    %2428 = vmatpush1.msra.mxu0 0.0
    %2429 = vmatprep.subr.mxu0 0.0
    %2430 = vmatpush1.msra.mxu0 0.0
    %2431 = vmatprep.subr.mxu0 0.0
    %2432 = vmatpush1.msra.mxu0 0.0
    %2433 = vmatprep.subr.mxu0 0.0
    %2434 = vmatpush1.msra.mxu0 0.0
    %2435 = vmatprep.subr.mxu0 0.0
    %2436 = vmatpush1.msra.mxu0 0.0
    %2437 = vmatprep.subr.mxu0 0.0
    %2438 = vmatpush1.msra.mxu0 0.0
    %2439 = vmatprep.subr.mxu0 0.0
    %2440 = vmatpush1.msra.mxu0 0.0
    %2441 = vmatprep.subr.mxu0 0.0
    %2442 = vmatpush1.msra.mxu0 0.0
    %2443 = vmatprep.subr.mxu0 0.0
    %2444 = vmatpush1.msra.mxu0 0.0
    %2445 = vmatprep.subr.mxu0 0.0
    %2446 = vmatpush1.msra.mxu0 0.0
    %2447 = vmatprep.mubr.f32.mxu0 0.0
    %v2448 = vand.u32 %v1661, 4294901760
    %2449 = vmatmul.mubr.f32.gmra.mrb[0].mxu0 %v2448
    %v2450 = vpop.f32.mrb[0].mxu0
    %v2451 = vadd.f32 %v2274, %v2450
    %v2452 = vpop.f32.mrb[0].mxu0
    %v2453 = vadd.f32 %v2276, %v2452
    %2454 = vmatprep.mubr.f32.mxu0 0.0
    %v2455 = vand.u32 %v1668, 4294901760
    %2456 = vmatmul.mubr.f32.gmra.mrb[0].mxu0 %v2455
    %v2457 = vpop.f32.mrb[0].mxu0
    %v2458 = vadd.f32 %v2283, %v2457
    %v2459 = vpop.f32.mrb[0].mxu0
    %v2460 = vadd.f32 %v2285, %v2459
    %2461 = vdwg.mxu0
    %v2462 = vand.u32 %v55, 4294901760
    %2463 = vmatprep.subr.mxu0 %v2462
    %v2464 = vand.u32 %v54, 4294901760
    %2465 = vmatpush1.msra.mxu0 %v2464
    %v2466 = vand.u32 %v57, 4294901760
    %2467 = vmatprep.subr.mxu0 %v2466
    %v2468 = vand.u32 %v56, 4294901760
    %2469 = vmatpush1.msra.mxu0 %v2468
    %v2470 = vand.u32 %v59, 4294901760
    %2471 = vmatprep.subr.mxu0 %v2470
    %v2472 = vand.u32 %v58, 4294901760
    %2473 = vmatpush1.msra.mxu0 %v2472
    %v2474 = vand.u32 %v61, 4294901760
    %2475 = vmatprep.subr.mxu0 %v2474
    %v2476 = vand.u32 %v60, 4294901760
    %2477 = vmatpush1.msra.mxu0 %v2476
    %v2478 = vand.u32 %v63, 4294901760
    %2479 = vmatprep.subr.mxu0 %v2478
    %v2480 = vand.u32 %v62, 4294901760
    %2481 = vmatpush1.msra.mxu0 %v2480
    %v2482 = vand.u32 %v65, 4294901760
    %2483 = vmatprep.subr.mxu0 %v2482
    %v2484 = vand.u32 %v64, 4294901760
    %2485 = vmatpush1.msra.mxu0 %v2484
    %v2486 = vand.u32 %v67, 4294901760
    %2487 = vmatprep.subr.mxu0 %v2486
    %v2488 = vand.u32 %v66, 4294901760
    %2489 = vmatpush1.msra.mxu0 %v2488
    %v2490 = vand.u32 %v69, 4294901760
    %2491 = vmatprep.subr.mxu0 %v2490
    %v2492 = vand.u32 %v68, 4294901760
    %2493 = vmatpush1.msra.mxu0 %v2492
    %v2494 = vand.u32 %v71, 4294901760
    %2495 = vmatprep.subr.mxu0 %v2494
    %v2496 = vand.u32 %v70, 4294901760
    %2497 = vmatpush1.msra.mxu0 %v2496
    %v2498 = vand.u32 %v73, 4294901760
    %2499 = vmatprep.subr.mxu0 %v2498
    %v2500 = vand.u32 %v72, 4294901760
    %2501 = vmatpush1.msra.mxu0 %v2500
    %v2502 = vand.u32 %v75, 4294901760
    %2503 = vmatprep.subr.mxu0 %v2502
    %v2504 = vand.u32 %v74, 4294901760
    %2505 = vmatpush1.msra.mxu0 %v2504
    %v2506 = vand.u32 %v77, 4294901760
    %2507 = vmatprep.subr.mxu0 %v2506
    %v2508 = vand.u32 %v76, 4294901760
    %2509 = vmatpush1.msra.mxu0 %v2508
    %v2510 = vand.u32 %v79, 4294901760
    %2511 = vmatprep.subr.mxu0 %v2510
    %v2512 = vand.u32 %v78, 4294901760
    %2513 = vmatpush1.msra.mxu0 %v2512
    %v2514 = vand.u32 %v81, 4294901760
    %2515 = vmatprep.subr.mxu0 %v2514
    %v2516 = vand.u32 %v80, 4294901760
    %2517 = vmatpush1.msra.mxu0 %v2516
    %v2518 = vand.u32 %v83, 4294901760
    %2519 = vmatprep.subr.mxu0 %v2518
    %v2520 = vand.u32 %v82, 4294901760
    %2521 = vmatpush1.msra.mxu0 %v2520
    %v2522 = vand.u32 %v85, 4294901760
    %2523 = vmatprep.subr.mxu0 %v2522
    %v2524 = vand.u32 %v84, 4294901760
    %2525 = vmatpush1.msra.mxu0 %v2524
    %2526 = vmatprep.subr.mxu0 0.0
    %2527 = vmatpush1.msra.mxu0 0.0
    %2528 = vmatprep.subr.mxu0 0.0
    %2529 = vmatpush1.msra.mxu0 0.0
    %2530 = vmatprep.subr.mxu0 0.0
    %2531 = vmatpush1.msra.mxu0 0.0
    %2532 = vmatprep.subr.mxu0 0.0
    %2533 = vmatpush1.msra.mxu0 0.0
    %2534 = vmatprep.subr.mxu0 0.0
    %2535 = vmatpush1.msra.mxu0 0.0
    %2536 = vmatprep.subr.mxu0 0.0
    %2537 = vmatpush1.msra.mxu0 0.0
    %2538 = vmatprep.subr.mxu0 0.0
    %2539 = vmatpush1.msra.mxu0 0.0
    %2540 = vmatprep.subr.mxu0 0.0
    %2541 = vmatpush1.msra.mxu0 0.0
    %2542 = vmatprep.subr.mxu0 0.0
    %2543 = vmatpush1.msra.mxu0 0.0
    %2544 = vmatprep.subr.mxu0 0.0
    %2545 = vmatpush1.msra.mxu0 0.0
    %2546 = vmatprep.subr.mxu0 0.0
    %2547 = vmatpush1.msra.mxu0 0.0
    %2548 = vmatprep.subr.mxu0 0.0
    %2549 = vmatpush1.msra.mxu0 0.0
    %2550 = vmatprep.subr.mxu0 0.0
    %2551 = vmatpush1.msra.mxu0 0.0
    %2552 = vmatprep.subr.mxu0 0.0
    %2553 = vmatpush1.msra.mxu0 0.0
    %2554 = vmatprep.subr.mxu0 0.0
    %2555 = vmatpush1.msra.mxu0 0.0
    %2556 = vmatprep.subr.mxu0 0.0
    %2557 = vmatpush1.msra.mxu0 0.0
    %2558 = vmatprep.mubr.f32.mxu0 0.0
    %v2559 = vand.u32 %v1661, 4294901760
    %2560 = vmatmul.mubr.f32.gmra.mrb[0].mxu0 %v2559
    %v2561 = vpop.f32.mrb[0].mxu0
    %v2562 = vadd.f32 %v2451, %v2561
    %v2563 = vpop.f32.mrb[0].mxu0
    %v2564 = vadd.f32 %v2453, %v2563
    %2565 = vmatprep.mubr.f32.mxu0 0.0
    %v2566 = vand.u32 %v1668, 4294901760
    %2567 = vmatmul.mubr.f32.gmra.mrb[0].mxu0 %v2566
    %v2568 = vpop.f32.mrb[0].mxu0
    %v2569 = vadd.f32 %v2458, %v2568
    %v2570 = vpop.f32.mrb[0].mxu0
    %v2571 = vadd.f32 %v2460, %v2570
    %2572 = vdwg.mxu0
    %v2573 = vld [vmem:[%s2] sm:$0xff]
    %v2574 = vld [vmem:[%s2 + $0x8] sm:$0xff]
    %v2575 = vld [vmem:[%s2 + $0x10] sm:$0xff]
    %v2576 = vld [vmem:[%s2 + $0x18] sm:$0xff]
    %v2577 = vld [vmem:[%s2 + $0x20] sm:$0xff]
    %v2578 = vld [vmem:[%s2 + $0x28] sm:$0xff]
    %v2579 = vld [vmem:[%s2 + $0x30] sm:$0xff]
    %v2580 = vld [vmem:[%s2 + $0x38] sm:$0xff]
    %v2581 = vld [vmem:[%s2 + $0x40] sm:$0xff]
    %v2582 = vld [vmem:[%s2 + $0x48] sm:$0xff]
    %v2583 = vld [vmem:[%s2 + $0x50] sm:$0xff]
    %v2584 = vld [vmem:[%s2 + $0x58] sm:$0xff]
    %v2586 = vsel %vm994, %v2573, 0
    %v2589 = vsel %vm994, %v2574, 0
    %v2592 = vsel %vm994, %v2575, 0
    %v2595 = vsel %vm994, %v2576, 0
    %v2598 = vsel %vm994, %v2577, 0
    %v2601 = vsel %vm994, %v2578, 0
    %v2604 = vsel %vm994, %v2579, 0
    %v2607 = vsel %vm994, %v2580, 0
    %v2610 = vsel %vm994, %v2581, 0
    %v2613 = vsel %vm994, %v2582, 0
    %v2616 = vsel %vm994, %v2583, 0
    %v2619 = vsel %vm994, %v2584, 0
    %v2621 = vand.u32 %v2564, 4294901760
    %2622 = vmatprep.subr.mxu0 %v2621
    %v2623 = vand.u32 %v2562, 4294901760
    %2624 = vmatpush1.msra.mxu0 %v2623
    %v2625 = vand.u32 %v2571, 4294901760
    %2626 = vmatprep.subr.mxu0 %v2625
    %v2627 = vand.u32 %v2569, 4294901760
    %2628 = vmatpush1.msra.mxu0 %v2627
    %2629 = vmatprep.subr.mxu0 0.0
    %2630 = vmatpush1.msra.mxu0 0.0
    %2631 = vmatprep.subr.mxu0 0.0
    %2632 = vmatpush1.msra.mxu0 0.0
    %2633 = vmatprep.subr.mxu0 0.0
    %2634 = vmatpush1.msra.mxu0 0.0
    %2635 = vmatprep.subr.mxu0 0.0
    %2636 = vmatpush1.msra.mxu0 0.0
    %2637 = vmatprep.subr.mxu0 0.0
    %2638 = vmatpush1.msra.mxu0 0.0
    %2639 = vmatprep.subr.mxu0 0.0
    %2640 = vmatpush1.msra.mxu0 0.0
    %2641 = vmatprep.subr.mxu0 0.0
    %2642 = vmatpush1.msra.mxu0 0.0
    %2643 = vmatprep.subr.mxu0 0.0
    %2644 = vmatpush1.msra.mxu0 0.0
    %2645 = vmatprep.subr.mxu0 0.0
    %2646 = vmatpush1.msra.mxu0 0.0
    %2647 = vmatprep.subr.mxu0 0.0
    %2648 = vmatpush1.msra.mxu0 0.0
    %2649 = vmatprep.subr.mxu0 0.0
    %2650 = vmatpush1.msra.mxu0 0.0
    %2651 = vmatprep.subr.mxu0 0.0
    %2652 = vmatpush1.msra.mxu0 0.0
    %2653 = vmatprep.subr.mxu0 0.0
    %2654 = vmatpush1.msra.mxu0 0.0
    %2655 = vmatprep.subr.mxu0 0.0
    %2656 = vmatpush1.msra.mxu0 0.0
    %2657 = vmatprep.subr.mxu0 0.0
    %2658 = vmatpush1.msra.mxu0 0.0
    %2659 = vmatprep.subr.mxu0 0.0
    %2660 = vmatpush1.msra.mxu0 0.0
    %2661 = vmatprep.subr.mxu0 0.0
    %2662 = vmatpush1.msra.mxu0 0.0
    %2663 = vmatprep.subr.mxu0 0.0
    %2664 = vmatpush1.msra.mxu0 0.0
    %2665 = vmatprep.subr.mxu0 0.0
    %2666 = vmatpush1.msra.mxu0 0.0
    %2667 = vmatprep.subr.mxu0 0.0
    %2668 = vmatpush1.msra.mxu0 0.0
    %2669 = vmatprep.subr.mxu0 0.0
    %2670 = vmatpush1.msra.mxu0 0.0
    %2671 = vmatprep.subr.mxu0 0.0
    %2672 = vmatpush1.msra.mxu0 0.0
    %2673 = vmatprep.subr.mxu0 0.0
    %2674 = vmatpush1.msra.mxu0 0.0
    %2675 = vmatprep.subr.mxu0 0.0
    %2676 = vmatpush1.msra.mxu0 0.0
    %2677 = vmatprep.subr.mxu0 0.0
    %2678 = vmatpush1.msra.mxu0 0.0
    %2679 = vmatprep.subr.mxu0 0.0
    %2680 = vmatpush1.msra.mxu0 0.0
    %2681 = vmatprep.subr.mxu0 0.0
    %2682 = vmatpush1.msra.mxu0 0.0
    %2683 = vmatprep.subr.mxu0 0.0
    %2684 = vmatpush1.msra.mxu0 0.0
    %2685 = vmatprep.subr.mxu0 0.0
    %2686 = vmatpush1.msra.mxu0 0.0
    %2687 = vmatprep.subr.mxu0 0.0
    %2688 = vmatpush1.msra.mxu0 0.0
    %2689 = vmatprep.mubr.f32.mxu0 0.0
    %v2690 = vand.u32 %v2586, 4294901760
    %v2691 = vsub.f32 %v2586, %v2690
    %v2692 = vand.u32 %v2691, 4294901760
    %v2693 = vsub.f32 %v2691, %v2692
    %v2694 = vand.u32 %v2693, 4294901760
    %2695 = vmatmul.mubr.f32.gmra.mrb[0].mxu0 %v2694
    %v2696 = vpop.f32.mrb[0].mxu0
    %v2697 = vadd.f32 0.0, %v2696
    %v2698 = vpop.f32.mrb[0].mxu0
    %2699 = vmatprep.mubr.f32.mxu0 0.0
    %v2700 = vand.u32 %v2589, 4294901760
    %v2701 = vsub.f32 %v2589, %v2700
    %v2702 = vand.u32 %v2701, 4294901760
    %v2703 = vsub.f32 %v2701, %v2702
    %v2704 = vand.u32 %v2703, 4294901760
    %2705 = vmatmul.mubr.f32.gmra.mrb[0].mxu0 %v2704
    %v2706 = vpop.f32.mrb[0].mxu0
    %v2707 = vadd.f32 0.0, %v2706
    %v2708 = vpop.f32.mrb[0].mxu0
    %2709 = vmatprep.mubr.f32.mxu0 0.0
    %v2710 = vand.u32 %v2592, 4294901760
    %v2711 = vsub.f32 %v2592, %v2710
    %v2712 = vand.u32 %v2711, 4294901760
    %v2713 = vsub.f32 %v2711, %v2712
    %v2714 = vand.u32 %v2713, 4294901760
    %2715 = vmatmul.mubr.f32.gmra.mrb[0].mxu0 %v2714
    %v2716 = vpop.f32.mrb[0].mxu0
    %v2717 = vadd.f32 0.0, %v2716
    %v2718 = vpop.f32.mrb[0].mxu0
    %2719 = vmatprep.mubr.f32.mxu0 0.0
    %v2720 = vand.u32 %v2595, 4294901760
    %v2721 = vsub.f32 %v2595, %v2720
    %v2722 = vand.u32 %v2721, 4294901760
    %v2723 = vsub.f32 %v2721, %v2722
    %v2724 = vand.u32 %v2723, 4294901760
    %2725 = vmatmul.mubr.f32.gmra.mrb[0].mxu0 %v2724
    %v2726 = vpop.f32.mrb[0].mxu0
    %v2727 = vadd.f32 0.0, %v2726
    %v2728 = vpop.f32.mrb[0].mxu0
    %2729 = vmatprep.mubr.f32.mxu0 0.0
    %v2730 = vand.u32 %v2598, 4294901760
    %v2731 = vsub.f32 %v2598, %v2730
    %v2732 = vand.u32 %v2731, 4294901760
    %v2733 = vsub.f32 %v2731, %v2732
    %v2734 = vand.u32 %v2733, 4294901760
    %2735 = vmatmul.mubr.f32.gmra.mrb[0].mxu0 %v2734
    %v2736 = vpop.f32.mrb[0].mxu0
    %v2737 = vadd.f32 0.0, %v2736
    %v2738 = vpop.f32.mrb[0].mxu0
    %2739 = vmatprep.mubr.f32.mxu0 0.0
    %v2740 = vand.u32 %v2601, 4294901760
    %v2741 = vsub.f32 %v2601, %v2740
    %v2742 = vand.u32 %v2741, 4294901760
    %v2743 = vsub.f32 %v2741, %v2742
    %v2744 = vand.u32 %v2743, 4294901760
    %2745 = vmatmul.mubr.f32.gmra.mrb[0].mxu0 %v2744
    %v2746 = vpop.f32.mrb[0].mxu0
    %v2747 = vadd.f32 0.0, %v2746
    %v2748 = vpop.f32.mrb[0].mxu0
    %2749 = vmatprep.mubr.f32.mxu0 0.0
    %v2750 = vand.u32 %v2604, 4294901760
    %v2751 = vsub.f32 %v2604, %v2750
    %v2752 = vand.u32 %v2751, 4294901760
    %v2753 = vsub.f32 %v2751, %v2752
    %v2754 = vand.u32 %v2753, 4294901760
    %2755 = vmatmul.mubr.f32.gmra.mrb[0].mxu0 %v2754
    %v2756 = vpop.f32.mrb[0].mxu0
    %v2757 = vpop.f32.mrb[0].mxu0
    %v2758 = vadd.f32 0.0, %v2757
    %2759 = vmatprep.mubr.f32.mxu0 0.0
    %v2760 = vand.u32 %v2607, 4294901760
    %v2761 = vsub.f32 %v2607, %v2760
    %v2762 = vand.u32 %v2761, 4294901760
    %v2763 = vsub.f32 %v2761, %v2762
    %v2764 = vand.u32 %v2763, 4294901760
    %2765 = vmatmul.mubr.f32.gmra.mrb[0].mxu0 %v2764
    %v2766 = vpop.f32.mrb[0].mxu0
    %v2767 = vpop.f32.mrb[0].mxu0
    %v2768 = vadd.f32 0.0, %v2767
    %2769 = vmatprep.mubr.f32.mxu0 0.0
    %v2770 = vand.u32 %v2610, 4294901760
    %v2771 = vsub.f32 %v2610, %v2770
    %v2772 = vand.u32 %v2771, 4294901760
    %v2773 = vsub.f32 %v2771, %v2772
    %v2774 = vand.u32 %v2773, 4294901760
    %2775 = vmatmul.mubr.f32.gmra.mrb[0].mxu0 %v2774
    %v2776 = vpop.f32.mrb[0].mxu0
    %v2777 = vpop.f32.mrb[0].mxu0
    %v2778 = vadd.f32 0.0, %v2777
    %2779 = vmatprep.mubr.f32.mxu0 0.0
    %v2780 = vand.u32 %v2613, 4294901760
    %v2781 = vsub.f32 %v2613, %v2780
    %v2782 = vand.u32 %v2781, 4294901760
    %v2783 = vsub.f32 %v2781, %v2782
    %v2784 = vand.u32 %v2783, 4294901760
    %2785 = vmatmul.mubr.f32.gmra.mrb[0].mxu0 %v2784
    %v2786 = vpop.f32.mrb[0].mxu0
    %v2787 = vpop.f32.mrb[0].mxu0
    %v2788 = vadd.f32 0.0, %v2787
    %2789 = vmatprep.mubr.f32.mxu0 0.0
    %v2790 = vand.u32 %v2616, 4294901760
    %v2791 = vsub.f32 %v2616, %v2790
    %v2792 = vand.u32 %v2791, 4294901760
    %v2793 = vsub.f32 %v2791, %v2792
    %v2794 = vand.u32 %v2793, 4294901760
    %2795 = vmatmul.mubr.f32.gmra.mrb[0].mxu0 %v2794
    %v2796 = vpop.f32.mrb[0].mxu0
    %v2797 = vpop.f32.mrb[0].mxu0
    %v2798 = vadd.f32 0.0, %v2797
    %2799 = vmatprep.mubr.f32.mxu0 0.0
    %v2800 = vand.u32 %v2619, 4294901760
    %v2801 = vsub.f32 %v2619, %v2800
    %v2802 = vand.u32 %v2801, 4294901760
    %v2803 = vsub.f32 %v2801, %v2802
    %v2804 = vand.u32 %v2803, 4294901760
    %2805 = vmatmul.mubr.f32.gmra.mrb[0].mxu0 %v2804
    %v2806 = vpop.f32.mrb[0].mxu0
    %v2807 = vpop.f32.mrb[0].mxu0
    %v2808 = vadd.f32 0.0, %v2807
    %2809 = vdwg.mxu0
    %v2810 = vand.u32 %v2564, 4294901760
    %v2811 = vsub.f32 %v2564, %v2810
    %v2812 = vand.u32 %v2811, 4294901760
    %v2813 = vsub.f32 %v2811, %v2812
    %v2814 = vand.u32 %v2813, 4294901760
    %2815 = vmatprep.subr.mxu0 %v2814
    %v2816 = vand.u32 %v2562, 4294901760
    %v2817 = vsub.f32 %v2562, %v2816
    %v2818 = vand.u32 %v2817, 4294901760
    %v2819 = vsub.f32 %v2817, %v2818
    %v2820 = vand.u32 %v2819, 4294901760
    %2821 = vmatpush1.msra.mxu0 %v2820
    %v2822 = vand.u32 %v2571, 4294901760
    %v2823 = vsub.f32 %v2571, %v2822
    %v2824 = vand.u32 %v2823, 4294901760
    %v2825 = vsub.f32 %v2823, %v2824
    %v2826 = vand.u32 %v2825, 4294901760
    %2827 = vmatprep.subr.mxu0 %v2826
    %v2828 = vand.u32 %v2569, 4294901760
    %v2829 = vsub.f32 %v2569, %v2828
    %v2830 = vand.u32 %v2829, 4294901760
    %v2831 = vsub.f32 %v2829, %v2830
    %v2832 = vand.u32 %v2831, 4294901760
    %2833 = vmatpush1.msra.mxu0 %v2832
    %2834 = vmatprep.subr.mxu0 0.0
    %2835 = vmatpush1.msra.mxu0 0.0
    %2836 = vmatprep.subr.mxu0 0.0
    %2837 = vmatpush1.msra.mxu0 0.0
    %2838 = vmatprep.subr.mxu0 0.0
    %2839 = vmatpush1.msra.mxu0 0.0
    %2840 = vmatprep.subr.mxu0 0.0
    %2841 = vmatpush1.msra.mxu0 0.0
    %2842 = vmatprep.subr.mxu0 0.0
    %2843 = vmatpush1.msra.mxu0 0.0
    %2844 = vmatprep.subr.mxu0 0.0
    %2845 = vmatpush1.msra.mxu0 0.0
    %2846 = vmatprep.subr.mxu0 0.0
    %2847 = vmatpush1.msra.mxu0 0.0
    %2848 = vmatprep.subr.mxu0 0.0
    %2849 = vmatpush1.msra.mxu0 0.0
    %2850 = vmatprep.subr.mxu0 0.0
    %2851 = vmatpush1.msra.mxu0 0.0
    %2852 = vmatprep.subr.mxu0 0.0
    %2853 = vmatpush1.msra.mxu0 0.0
    %2854 = vmatprep.subr.mxu0 0.0
    %2855 = vmatpush1.msra.mxu0 0.0
    %2856 = vmatprep.subr.mxu0 0.0
    %2857 = vmatpush1.msra.mxu0 0.0
    %2858 = vmatprep.subr.mxu0 0.0
    %2859 = vmatpush1.msra.mxu0 0.0
    %2860 = vmatprep.subr.mxu0 0.0
    %2861 = vmatpush1.msra.mxu0 0.0
    %2862 = vmatprep.subr.mxu0 0.0
    %2863 = vmatpush1.msra.mxu0 0.0
    %2864 = vmatprep.subr.mxu0 0.0
    %2865 = vmatpush1.msra.mxu0 0.0
    %2866 = vmatprep.subr.mxu0 0.0
    %2867 = vmatpush1.msra.mxu0 0.0
    %2868 = vmatprep.subr.mxu0 0.0
    %2869 = vmatpush1.msra.mxu0 0.0
    %2870 = vmatprep.subr.mxu0 0.0
    %2871 = vmatpush1.msra.mxu0 0.0
    %2872 = vmatprep.subr.mxu0 0.0
    %2873 = vmatpush1.msra.mxu0 0.0
    %2874 = vmatprep.subr.mxu0 0.0
    %2875 = vmatpush1.msra.mxu0 0.0
    %2876 = vmatprep.subr.mxu0 0.0
    %2877 = vmatpush1.msra.mxu0 0.0
    %2878 = vmatprep.subr.mxu0 0.0
    %2879 = vmatpush1.msra.mxu0 0.0
    %2880 = vmatprep.subr.mxu0 0.0
    %2881 = vmatpush1.msra.mxu0 0.0
    %2882 = vmatprep.subr.mxu0 0.0
    %2883 = vmatpush1.msra.mxu0 0.0
    %2884 = vmatprep.subr.mxu0 0.0
    %2885 = vmatpush1.msra.mxu0 0.0
    %2886 = vmatprep.subr.mxu0 0.0
    %2887 = vmatpush1.msra.mxu0 0.0
    %2888 = vmatprep.subr.mxu0 0.0
    %2889 = vmatpush1.msra.mxu0 0.0
    %2890 = vmatprep.subr.mxu0 0.0
    %2891 = vmatpush1.msra.mxu0 0.0
    %2892 = vmatprep.subr.mxu0 0.0
    %2893 = vmatpush1.msra.mxu0 0.0
    %2894 = vmatprep.mubr.f32.mxu0 0.0
    %v2895 = vand.u32 %v2586, 4294901760
    %2896 = vmatmul.mubr.f32.gmra.mrb[0].mxu0 %v2895
    %v2897 = vpop.f32.mrb[0].mxu0
    %v2898 = vadd.f32 %v2697, %v2897
    %v2899 = vpop.f32.mrb[0].mxu0
    %2900 = vmatprep.mubr.f32.mxu0 0.0
    %v2901 = vand.u32 %v2589, 4294901760
    %2902 = vmatmul.mubr.f32.gmra.mrb[0].mxu0 %v2901
    %v2903 = vpop.f32.mrb[0].mxu0
    %v2904 = vadd.f32 %v2707, %v2903
    %v2905 = vpop.f32.mrb[0].mxu0
    %2906 = vmatprep.mubr.f32.mxu0 0.0
    %v2907 = vand.u32 %v2592, 4294901760
    %2908 = vmatmul.mubr.f32.gmra.mrb[0].mxu0 %v2907
    %v2909 = vpop.f32.mrb[0].mxu0
    %v2910 = vadd.f32 %v2717, %v2909
    %v2911 = vpop.f32.mrb[0].mxu0
    %2912 = vmatprep.mubr.f32.mxu0 0.0
    %v2913 = vand.u32 %v2595, 4294901760
    %2914 = vmatmul.mubr.f32.gmra.mrb[0].mxu0 %v2913
    %v2915 = vpop.f32.mrb[0].mxu0
    %v2916 = vadd.f32 %v2727, %v2915
    %v2917 = vpop.f32.mrb[0].mxu0
    %2918 = vmatprep.mubr.f32.mxu0 0.0
    %v2919 = vand.u32 %v2598, 4294901760
    %2920 = vmatmul.mubr.f32.gmra.mrb[0].mxu0 %v2919
    %v2921 = vpop.f32.mrb[0].mxu0
    %v2922 = vadd.f32 %v2737, %v2921
    %v2923 = vpop.f32.mrb[0].mxu0
    %2924 = vmatprep.mubr.f32.mxu0 0.0
    %v2925 = vand.u32 %v2601, 4294901760
    %2926 = vmatmul.mubr.f32.gmra.mrb[0].mxu0 %v2925
    %v2927 = vpop.f32.mrb[0].mxu0
    %v2928 = vadd.f32 %v2747, %v2927
    %v2929 = vpop.f32.mrb[0].mxu0
    %2930 = vmatprep.mubr.f32.mxu0 0.0
    %v2931 = vand.u32 %v2604, 4294901760
    %2932 = vmatmul.mubr.f32.gmra.mrb[0].mxu0 %v2931
    %v2933 = vpop.f32.mrb[0].mxu0
    %v2934 = vpop.f32.mrb[0].mxu0
    %v2935 = vadd.f32 %v2758, %v2934
    %2936 = vmatprep.mubr.f32.mxu0 0.0
    %v2937 = vand.u32 %v2607, 4294901760
    %2938 = vmatmul.mubr.f32.gmra.mrb[0].mxu0 %v2937
    %v2939 = vpop.f32.mrb[0].mxu0
    %v2940 = vpop.f32.mrb[0].mxu0
    %v2941 = vadd.f32 %v2768, %v2940
    %2942 = vmatprep.mubr.f32.mxu0 0.0
    %v2943 = vand.u32 %v2610, 4294901760
    %2944 = vmatmul.mubr.f32.gmra.mrb[0].mxu0 %v2943
    %v2945 = vpop.f32.mrb[0].mxu0
    %v2946 = vpop.f32.mrb[0].mxu0
    %v2947 = vadd.f32 %v2778, %v2946
    %2948 = vmatprep.mubr.f32.mxu0 0.0
    %v2949 = vand.u32 %v2613, 4294901760
    %2950 = vmatmul.mubr.f32.gmra.mrb[0].mxu0 %v2949
    %v2951 = vpop.f32.mrb[0].mxu0
    %v2952 = vpop.f32.mrb[0].mxu0
    %v2953 = vadd.f32 %v2788, %v2952
    %2954 = vmatprep.mubr.f32.mxu0 0.0
    %v2955 = vand.u32 %v2616, 4294901760
    %2956 = vmatmul.mubr.f32.gmra.mrb[0].mxu0 %v2955
    %v2957 = vpop.f32.mrb[0].mxu0
    %v2958 = vpop.f32.mrb[0].mxu0
    %v2959 = vadd.f32 %v2798, %v2958
    %2960 = vmatprep.mubr.f32.mxu0 0.0
    %v2961 = vand.u32 %v2619, 4294901760
    %2962 = vmatmul.mubr.f32.gmra.mrb[0].mxu0 %v2961
    %v2963 = vpop.f32.mrb[0].mxu0
    %v2964 = vpop.f32.mrb[0].mxu0
    %v2965 = vadd.f32 %v2808, %v2964
    %2966 = vdwg.mxu0
    %v2967 = vand.u32 %v2564, 4294901760
    %v2968 = vsub.f32 %v2564, %v2967
    %2969 = vmatprep.subr.mxu0 %v2968
    %v2970 = vand.u32 %v2562, 4294901760
    %v2971 = vsub.f32 %v2562, %v2970
    %2972 = vmatpush1.msra.mxu0 %v2971
    %v2973 = vand.u32 %v2571, 4294901760
    %v2974 = vsub.f32 %v2571, %v2973
    %2975 = vmatprep.subr.mxu0 %v2974
    %v2976 = vand.u32 %v2569, 4294901760
    %v2977 = vsub.f32 %v2569, %v2976
    %2978 = vmatpush1.msra.mxu0 %v2977
    %2979 = vmatprep.subr.mxu0 0.0
    %2980 = vmatpush1.msra.mxu0 0.0
    %2981 = vmatprep.subr.mxu0 0.0
    %2982 = vmatpush1.msra.mxu0 0.0
    %2983 = vmatprep.subr.mxu0 0.0
    %2984 = vmatpush1.msra.mxu0 0.0
    %2985 = vmatprep.subr.mxu0 0.0
    %2986 = vmatpush1.msra.mxu0 0.0
    %2987 = vmatprep.subr.mxu0 0.0
    %2988 = vmatpush1.msra.mxu0 0.0
    %2989 = vmatprep.subr.mxu0 0.0
    %2990 = vmatpush1.msra.mxu0 0.0
    %2991 = vmatprep.subr.mxu0 0.0
    %2992 = vmatpush1.msra.mxu0 0.0
    %2993 = vmatprep.subr.mxu0 0.0
    %2994 = vmatpush1.msra.mxu0 0.0
    %2995 = vmatprep.subr.mxu0 0.0
    %2996 = vmatpush1.msra.mxu0 0.0
    %2997 = vmatprep.subr.mxu0 0.0
    %2998 = vmatpush1.msra.mxu0 0.0
    %2999 = vmatprep.subr.mxu0 0.0
    %3000 = vmatpush1.msra.mxu0 0.0
    %3001 = vmatprep.subr.mxu0 0.0
    %3002 = vmatpush1.msra.mxu0 0.0
    %3003 = vmatprep.subr.mxu0 0.0
    %3004 = vmatpush1.msra.mxu0 0.0
    %3005 = vmatprep.subr.mxu0 0.0
    %3006 = vmatpush1.msra.mxu0 0.0
    %3007 = vmatprep.subr.mxu0 0.0
    %3008 = vmatpush1.msra.mxu0 0.0
    %3009 = vmatprep.subr.mxu0 0.0
    %3010 = vmatpush1.msra.mxu0 0.0
    %3011 = vmatprep.subr.mxu0 0.0
    %3012 = vmatpush1.msra.mxu0 0.0
    %3013 = vmatprep.subr.mxu0 0.0
    %3014 = vmatpush1.msra.mxu0 0.0
    %3015 = vmatprep.subr.mxu0 0.0
    %3016 = vmatpush1.msra.mxu0 0.0
    %3017 = vmatprep.subr.mxu0 0.0
    %3018 = vmatpush1.msra.mxu0 0.0
    %3019 = vmatprep.subr.mxu0 0.0
    %3020 = vmatpush1.msra.mxu0 0.0
    %3021 = vmatprep.subr.mxu0 0.0
    %3022 = vmatpush1.msra.mxu0 0.0
    %3023 = vmatprep.subr.mxu0 0.0
    %3024 = vmatpush1.msra.mxu0 0.0
    %3025 = vmatprep.subr.mxu0 0.0
    %3026 = vmatpush1.msra.mxu0 0.0
    %3027 = vmatprep.subr.mxu0 0.0
    %3028 = vmatpush1.msra.mxu0 0.0
    %3029 = vmatprep.subr.mxu0 0.0
    %3030 = vmatpush1.msra.mxu0 0.0
    %3031 = vmatprep.subr.mxu0 0.0
    %3032 = vmatpush1.msra.mxu0 0.0
    %3033 = vmatprep.subr.mxu0 0.0
    %3034 = vmatpush1.msra.mxu0 0.0
    %3035 = vmatprep.subr.mxu0 0.0
    %3036 = vmatpush1.msra.mxu0 0.0
    %3037 = vmatprep.subr.mxu0 0.0
    %3038 = vmatpush1.msra.mxu0 0.0
    %3039 = vmatprep.mubr.f32.mxu0 0.0
    %v3040 = vand.u32 %v2586, 4294901760
    %v3041 = vsub.f32 %v2586, %v3040
    %3042 = vmatmul.mubr.f32.gmra.mrb[0].mxu0 %v3041
    %v3043 = vpop.f32.mrb[0].mxu0
    %v3044 = vadd.f32 %v2898, %v3043
    %v3045 = vpop.f32.mrb[0].mxu0
    %3046 = vmatprep.mubr.f32.mxu0 0.0
    %v3047 = vand.u32 %v2589, 4294901760
    %v3048 = vsub.f32 %v2589, %v3047
    %3049 = vmatmul.mubr.f32.gmra.mrb[0].mxu0 %v3048
    %v3050 = vpop.f32.mrb[0].mxu0
    %v3051 = vadd.f32 %v2904, %v3050
    %v3052 = vpop.f32.mrb[0].mxu0
    %3053 = vmatprep.mubr.f32.mxu0 0.0
    %v3054 = vand.u32 %v2592, 4294901760
    %v3055 = vsub.f32 %v2592, %v3054
    %3056 = vmatmul.mubr.f32.gmra.mrb[0].mxu0 %v3055
    %v3057 = vpop.f32.mrb[0].mxu0
    %v3058 = vadd.f32 %v2910, %v3057
    %v3059 = vpop.f32.mrb[0].mxu0
    %3060 = vmatprep.mubr.f32.mxu0 0.0
    %v3061 = vand.u32 %v2595, 4294901760
    %v3062 = vsub.f32 %v2595, %v3061
    %3063 = vmatmul.mubr.f32.gmra.mrb[0].mxu0 %v3062
    %v3064 = vpop.f32.mrb[0].mxu0
    %v3065 = vadd.f32 %v2916, %v3064
    %v3066 = vpop.f32.mrb[0].mxu0
    %3067 = vmatprep.mubr.f32.mxu0 0.0
    %v3068 = vand.u32 %v2598, 4294901760
    %v3069 = vsub.f32 %v2598, %v3068
    %3070 = vmatmul.mubr.f32.gmra.mrb[0].mxu0 %v3069
    %v3071 = vpop.f32.mrb[0].mxu0
    %v3072 = vadd.f32 %v2922, %v3071
    %v3073 = vpop.f32.mrb[0].mxu0
    %3074 = vmatprep.mubr.f32.mxu0 0.0
    %v3075 = vand.u32 %v2601, 4294901760
    %v3076 = vsub.f32 %v2601, %v3075
    %3077 = vmatmul.mubr.f32.gmra.mrb[0].mxu0 %v3076
    %v3078 = vpop.f32.mrb[0].mxu0
    %v3079 = vadd.f32 %v2928, %v3078
    %v3080 = vpop.f32.mrb[0].mxu0
    %3081 = vmatprep.mubr.f32.mxu0 0.0
    %v3082 = vand.u32 %v2604, 4294901760
    %v3083 = vsub.f32 %v2604, %v3082
    %3084 = vmatmul.mubr.f32.gmra.mrb[0].mxu0 %v3083
    %v3085 = vpop.f32.mrb[0].mxu0
    %v3086 = vpop.f32.mrb[0].mxu0
    %v3087 = vadd.f32 %v2935, %v3086
    %3088 = vmatprep.mubr.f32.mxu0 0.0
    %v3089 = vand.u32 %v2607, 4294901760
    %v3090 = vsub.f32 %v2607, %v3089
    %3091 = vmatmul.mubr.f32.gmra.mrb[0].mxu0 %v3090
    %v3092 = vpop.f32.mrb[0].mxu0
    %v3093 = vpop.f32.mrb[0].mxu0
    %v3094 = vadd.f32 %v2941, %v3093
    %3095 = vmatprep.mubr.f32.mxu0 0.0
    %v3096 = vand.u32 %v2610, 4294901760
    %v3097 = vsub.f32 %v2610, %v3096
    %3098 = vmatmul.mubr.f32.gmra.mrb[0].mxu0 %v3097
    %v3099 = vpop.f32.mrb[0].mxu0
    %v3100 = vpop.f32.mrb[0].mxu0
    %v3101 = vadd.f32 %v2947, %v3100
    %3102 = vmatprep.mubr.f32.mxu0 0.0
    %v3103 = vand.u32 %v2613, 4294901760
    %v3104 = vsub.f32 %v2613, %v3103
    %3105 = vmatmul.mubr.f32.gmra.mrb[0].mxu0 %v3104
    %v3106 = vpop.f32.mrb[0].mxu0
    %v3107 = vpop.f32.mrb[0].mxu0
    %v3108 = vadd.f32 %v2953, %v3107
    %3109 = vmatprep.mubr.f32.mxu0 0.0
    %v3110 = vand.u32 %v2616, 4294901760
    %v3111 = vsub.f32 %v2616, %v3110
    %3112 = vmatmul.mubr.f32.gmra.mrb[0].mxu0 %v3111
    %v3113 = vpop.f32.mrb[0].mxu0
    %v3114 = vpop.f32.mrb[0].mxu0
    %v3115 = vadd.f32 %v2959, %v3114
    %3116 = vmatprep.mubr.f32.mxu0 0.0
    %v3117 = vand.u32 %v2619, 4294901760
    %v3118 = vsub.f32 %v2619, %v3117
    %3119 = vmatmul.mubr.f32.gmra.mrb[0].mxu0 %v3118
    %v3120 = vpop.f32.mrb[0].mxu0
    %v3121 = vpop.f32.mrb[0].mxu0
    %v3122 = vadd.f32 %v2965, %v3121
    %3123 = vdwg.mxu0
    %v3124 = vand.u32 %v2564, 4294901760
    %3125 = vmatprep.subr.mxu0 %v3124
    %v3126 = vand.u32 %v2562, 4294901760
    %3127 = vmatpush1.msra.mxu0 %v3126
    %v3128 = vand.u32 %v2571, 4294901760
    %3129 = vmatprep.subr.mxu0 %v3128
    %v3130 = vand.u32 %v2569, 4294901760
    %3131 = vmatpush1.msra.mxu0 %v3130
    %3132 = vmatprep.subr.mxu0 0.0
    %3133 = vmatpush1.msra.mxu0 0.0
    %3134 = vmatprep.subr.mxu0 0.0
    %3135 = vmatpush1.msra.mxu0 0.0
    %3136 = vmatprep.subr.mxu0 0.0
    %3137 = vmatpush1.msra.mxu0 0.0
    %3138 = vmatprep.subr.mxu0 0.0
    %3139 = vmatpush1.msra.mxu0 0.0
    %3140 = vmatprep.subr.mxu0 0.0
    %3141 = vmatpush1.msra.mxu0 0.0
    %3142 = vmatprep.subr.mxu0 0.0
    %3143 = vmatpush1.msra.mxu0 0.0
    %3144 = vmatprep.subr.mxu0 0.0
    %3145 = vmatpush1.msra.mxu0 0.0
    %3146 = vmatprep.subr.mxu0 0.0
    %3147 = vmatpush1.msra.mxu0 0.0
    %3148 = vmatprep.subr.mxu0 0.0
    %3149 = vmatpush1.msra.mxu0 0.0
    %3150 = vmatprep.subr.mxu0 0.0
    %3151 = vmatpush1.msra.mxu0 0.0
    %3152 = vmatprep.subr.mxu0 0.0
    %3153 = vmatpush1.msra.mxu0 0.0
    %3154 = vmatprep.subr.mxu0 0.0
    %3155 = vmatpush1.msra.mxu0 0.0
    %3156 = vmatprep.subr.mxu0 0.0
    %3157 = vmatpush1.msra.mxu0 0.0
    %3158 = vmatprep.subr.mxu0 0.0
    %3159 = vmatpush1.msra.mxu0 0.0
    %3160 = vmatprep.subr.mxu0 0.0
    %3161 = vmatpush1.msra.mxu0 0.0
    %3162 = vmatprep.subr.mxu0 0.0
    %3163 = vmatpush1.msra.mxu0 0.0
    %3164 = vmatprep.subr.mxu0 0.0
    %3165 = vmatpush1.msra.mxu0 0.0
    %3166 = vmatprep.subr.mxu0 0.0
    %3167 = vmatpush1.msra.mxu0 0.0
    %3168 = vmatprep.subr.mxu0 0.0
    %3169 = vmatpush1.msra.mxu0 0.0
    %3170 = vmatprep.subr.mxu0 0.0
    %3171 = vmatpush1.msra.mxu0 0.0
    %3172 = vmatprep.subr.mxu0 0.0
    %3173 = vmatpush1.msra.mxu0 0.0
    %3174 = vmatprep.subr.mxu0 0.0
    %3175 = vmatpush1.msra.mxu0 0.0
    %3176 = vmatprep.subr.mxu0 0.0
    %3177 = vmatpush1.msra.mxu0 0.0
    %3178 = vmatprep.subr.mxu0 0.0
    %3179 = vmatpush1.msra.mxu0 0.0
    %3180 = vmatprep.subr.mxu0 0.0
    %3181 = vmatpush1.msra.mxu0 0.0
    %3182 = vmatprep.subr.mxu0 0.0
    %3183 = vmatpush1.msra.mxu0 0.0
    %3184 = vmatprep.subr.mxu0 0.0
    %3185 = vmatpush1.msra.mxu0 0.0
    %3186 = vmatprep.subr.mxu0 0.0
    %3187 = vmatpush1.msra.mxu0 0.0
    %3188 = vmatprep.subr.mxu0 0.0
    %3189 = vmatpush1.msra.mxu0 0.0
    %3190 = vmatprep.subr.mxu0 0.0
    %3191 = vmatpush1.msra.mxu0 0.0
    %3192 = vmatprep.mubr.f32.mxu0 0.0
    %v3193 = vand.u32 %v2586, 4294901760
    %v3194 = vsub.f32 %v2586, %v3193
    %v3195 = vand.u32 %v3194, 4294901760
    %3196 = vmatmul.mubr.f32.gmra.mrb[0].mxu0 %v3195
    %v3197 = vpop.f32.mrb[0].mxu0
    %v3198 = vadd.f32 %v3044, %v3197
    %v3199 = vpop.f32.mrb[0].mxu0
    %3200 = vmatprep.mubr.f32.mxu0 0.0
    %v3201 = vand.u32 %v2589, 4294901760
    %v3202 = vsub.f32 %v2589, %v3201
    %v3203 = vand.u32 %v3202, 4294901760
    %3204 = vmatmul.mubr.f32.gmra.mrb[0].mxu0 %v3203
    %v3205 = vpop.f32.mrb[0].mxu0
    %v3206 = vadd.f32 %v3051, %v3205
    %v3207 = vpop.f32.mrb[0].mxu0
    %3208 = vmatprep.mubr.f32.mxu0 0.0
    %v3209 = vand.u32 %v2592, 4294901760
    %v3210 = vsub.f32 %v2592, %v3209
    %v3211 = vand.u32 %v3210, 4294901760
    %3212 = vmatmul.mubr.f32.gmra.mrb[0].mxu0 %v3211
    %v3213 = vpop.f32.mrb[0].mxu0
    %v3214 = vadd.f32 %v3058, %v3213
    %v3215 = vpop.f32.mrb[0].mxu0
    %3216 = vmatprep.mubr.f32.mxu0 0.0
    %v3217 = vand.u32 %v2595, 4294901760
    %v3218 = vsub.f32 %v2595, %v3217
    %v3219 = vand.u32 %v3218, 4294901760
    %3220 = vmatmul.mubr.f32.gmra.mrb[0].mxu0 %v3219
    %v3221 = vpop.f32.mrb[0].mxu0
    %v3222 = vadd.f32 %v3065, %v3221
    %v3223 = vpop.f32.mrb[0].mxu0
    %3224 = vmatprep.mubr.f32.mxu0 0.0
    %v3225 = vand.u32 %v2598, 4294901760
    %v3226 = vsub.f32 %v2598, %v3225
    %v3227 = vand.u32 %v3226, 4294901760
    %3228 = vmatmul.mubr.f32.gmra.mrb[0].mxu0 %v3227
    %v3229 = vpop.f32.mrb[0].mxu0
    %v3230 = vadd.f32 %v3072, %v3229
    %v3231 = vpop.f32.mrb[0].mxu0
    %3232 = vmatprep.mubr.f32.mxu0 0.0
    %v3233 = vand.u32 %v2601, 4294901760
    %v3234 = vsub.f32 %v2601, %v3233
    %v3235 = vand.u32 %v3234, 4294901760
    %3236 = vmatmul.mubr.f32.gmra.mrb[0].mxu0 %v3235
    %v3237 = vpop.f32.mrb[0].mxu0
    %v3238 = vadd.f32 %v3079, %v3237
    %v3239 = vpop.f32.mrb[0].mxu0
    %3240 = vmatprep.mubr.f32.mxu0 0.0
    %v3241 = vand.u32 %v2604, 4294901760
    %v3242 = vsub.f32 %v2604, %v3241
    %v3243 = vand.u32 %v3242, 4294901760
    %3244 = vmatmul.mubr.f32.gmra.mrb[0].mxu0 %v3243
    %v3245 = vpop.f32.mrb[0].mxu0
    %v3246 = vpop.f32.mrb[0].mxu0
    %v3247 = vadd.f32 %v3087, %v3246
    %3248 = vmatprep.mubr.f32.mxu0 0.0
    %v3249 = vand.u32 %v2607, 4294901760
    %v3250 = vsub.f32 %v2607, %v3249
    %v3251 = vand.u32 %v3250, 4294901760
    %3252 = vmatmul.mubr.f32.gmra.mrb[0].mxu0 %v3251
    %v3253 = vpop.f32.mrb[0].mxu0
    %v3254 = vpop.f32.mrb[0].mxu0
    %v3255 = vadd.f32 %v3094, %v3254
    %3256 = vmatprep.mubr.f32.mxu0 0.0
    %v3257 = vand.u32 %v2610, 4294901760
    %v3258 = vsub.f32 %v2610, %v3257
    %v3259 = vand.u32 %v3258, 4294901760
    %3260 = vmatmul.mubr.f32.gmra.mrb[0].mxu0 %v3259
    %v3261 = vpop.f32.mrb[0].mxu0
    %v3262 = vpop.f32.mrb[0].mxu0
    %v3263 = vadd.f32 %v3101, %v3262
    %3264 = vmatprep.mubr.f32.mxu0 0.0
    %v3265 = vand.u32 %v2613, 4294901760
    %v3266 = vsub.f32 %v2613, %v3265
    %v3267 = vand.u32 %v3266, 4294901760
    %3268 = vmatmul.mubr.f32.gmra.mrb[0].mxu0 %v3267
    %v3269 = vpop.f32.mrb[0].mxu0
    %v3270 = vpop.f32.mrb[0].mxu0
    %v3271 = vadd.f32 %v3108, %v3270
    %3272 = vmatprep.mubr.f32.mxu0 0.0
    %v3273 = vand.u32 %v2616, 4294901760
    %v3274 = vsub.f32 %v2616, %v3273
    %v3275 = vand.u32 %v3274, 4294901760
    %3276 = vmatmul.mubr.f32.gmra.mrb[0].mxu0 %v3275
    %v3277 = vpop.f32.mrb[0].mxu0
    %v3278 = vpop.f32.mrb[0].mxu0
    %v3279 = vadd.f32 %v3115, %v3278
    %3280 = vmatprep.mubr.f32.mxu0 0.0
    %v3281 = vand.u32 %v2619, 4294901760
    %v3282 = vsub.f32 %v2619, %v3281
    %v3283 = vand.u32 %v3282, 4294901760
    %3284 = vmatmul.mubr.f32.gmra.mrb[0].mxu0 %v3283
    %v3285 = vpop.f32.mrb[0].mxu0
    %v3286 = vpop.f32.mrb[0].mxu0
    %v3287 = vadd.f32 %v3122, %v3286
    %3288 = vdwg.mxu0
    %v3289 = vand.u32 %v2564, 4294901760
    %v3290 = vsub.f32 %v2564, %v3289
    %v3291 = vand.u32 %v3290, 4294901760
    %3292 = vmatprep.subr.mxu0 %v3291
    %v3293 = vand.u32 %v2562, 4294901760
    %v3294 = vsub.f32 %v2562, %v3293
    %v3295 = vand.u32 %v3294, 4294901760
    %3296 = vmatpush1.msra.mxu0 %v3295
    %v3297 = vand.u32 %v2571, 4294901760
    %v3298 = vsub.f32 %v2571, %v3297
    %v3299 = vand.u32 %v3298, 4294901760
    %3300 = vmatprep.subr.mxu0 %v3299
    %v3301 = vand.u32 %v2569, 4294901760
    %v3302 = vsub.f32 %v2569, %v3301
    %v3303 = vand.u32 %v3302, 4294901760
    %3304 = vmatpush1.msra.mxu0 %v3303
    %3305 = vmatprep.subr.mxu0 0.0
    %3306 = vmatpush1.msra.mxu0 0.0
    %3307 = vmatprep.subr.mxu0 0.0
    %3308 = vmatpush1.msra.mxu0 0.0
    %3309 = vmatprep.subr.mxu0 0.0
    %3310 = vmatpush1.msra.mxu0 0.0
    %3311 = vmatprep.subr.mxu0 0.0
    %3312 = vmatpush1.msra.mxu0 0.0
    %3313 = vmatprep.subr.mxu0 0.0
    %3314 = vmatpush1.msra.mxu0 0.0
    %3315 = vmatprep.subr.mxu0 0.0
    %3316 = vmatpush1.msra.mxu0 0.0
    %3317 = vmatprep.subr.mxu0 0.0
    %3318 = vmatpush1.msra.mxu0 0.0
    %3319 = vmatprep.subr.mxu0 0.0
    %3320 = vmatpush1.msra.mxu0 0.0
    %3321 = vmatprep.subr.mxu0 0.0
    %3322 = vmatpush1.msra.mxu0 0.0
    %3323 = vmatprep.subr.mxu0 0.0
    %3324 = vmatpush1.msra.mxu0 0.0
    %3325 = vmatprep.subr.mxu0 0.0
    %3326 = vmatpush1.msra.mxu0 0.0
    %3327 = vmatprep.subr.mxu0 0.0
    %3328 = vmatpush1.msra.mxu0 0.0
    %3329 = vmatprep.subr.mxu0 0.0
    %3330 = vmatpush1.msra.mxu0 0.0
    %3331 = vmatprep.subr.mxu0 0.0
    %3332 = vmatpush1.msra.mxu0 0.0
    %3333 = vmatprep.subr.mxu0 0.0
    %3334 = vmatpush1.msra.mxu0 0.0
    %3335 = vmatprep.subr.mxu0 0.0
    %3336 = vmatpush1.msra.mxu0 0.0
    %3337 = vmatprep.subr.mxu0 0.0
    %3338 = vmatpush1.msra.mxu0 0.0
    %3339 = vmatprep.subr.mxu0 0.0
    %3340 = vmatpush1.msra.mxu0 0.0
    %3341 = vmatprep.subr.mxu0 0.0
    %3342 = vmatpush1.msra.mxu0 0.0
    %3343 = vmatprep.subr.mxu0 0.0
    %3344 = vmatpush1.msra.mxu0 0.0
    %3345 = vmatprep.subr.mxu0 0.0
    %3346 = vmatpush1.msra.mxu0 0.0
    %3347 = vmatprep.subr.mxu0 0.0
    %3348 = vmatpush1.msra.mxu0 0.0
    %3349 = vmatprep.subr.mxu0 0.0
    %3350 = vmatpush1.msra.mxu0 0.0
    %3351 = vmatprep.subr.mxu0 0.0
    %3352 = vmatpush1.msra.mxu0 0.0
    %3353 = vmatprep.subr.mxu0 0.0
    %3354 = vmatpush1.msra.mxu0 0.0
    %3355 = vmatprep.subr.mxu0 0.0
    %3356 = vmatpush1.msra.mxu0 0.0
    %3357 = vmatprep.subr.mxu0 0.0
    %3358 = vmatpush1.msra.mxu0 0.0
    %3359 = vmatprep.subr.mxu0 0.0
    %3360 = vmatpush1.msra.mxu0 0.0
    %3361 = vmatprep.subr.mxu0 0.0
    %3362 = vmatpush1.msra.mxu0 0.0
    %3363 = vmatprep.subr.mxu0 0.0
    %3364 = vmatpush1.msra.mxu0 0.0
    %3365 = vmatprep.mubr.f32.mxu0 0.0
    %v3366 = vand.u32 %v2586, 4294901760
    %3367 = vmatmul.mubr.f32.gmra.mrb[0].mxu0 %v3366
    %v3368 = vpop.f32.mrb[0].mxu0
    %v3369 = vadd.f32 %v3198, %v3368
    %v3370 = vpop.f32.mrb[0].mxu0
    %3371 = vmatprep.mubr.f32.mxu0 0.0
    %v3372 = vand.u32 %v2589, 4294901760
    %3373 = vmatmul.mubr.f32.gmra.mrb[0].mxu0 %v3372
    %v3374 = vpop.f32.mrb[0].mxu0
    %v3375 = vadd.f32 %v3206, %v3374
    %v3376 = vpop.f32.mrb[0].mxu0
    %3377 = vmatprep.mubr.f32.mxu0 0.0
    %v3378 = vand.u32 %v2592, 4294901760
    %3379 = vmatmul.mubr.f32.gmra.mrb[0].mxu0 %v3378
    %v3380 = vpop.f32.mrb[0].mxu0
    %v3381 = vadd.f32 %v3214, %v3380
    %v3382 = vpop.f32.mrb[0].mxu0
    %3383 = vmatprep.mubr.f32.mxu0 0.0
    %v3384 = vand.u32 %v2595, 4294901760
    %3385 = vmatmul.mubr.f32.gmra.mrb[0].mxu0 %v3384
    %v3386 = vpop.f32.mrb[0].mxu0
    %v3387 = vadd.f32 %v3222, %v3386
    %v3388 = vpop.f32.mrb[0].mxu0
    %3389 = vmatprep.mubr.f32.mxu0 0.0
    %v3390 = vand.u32 %v2598, 4294901760
    %3391 = vmatmul.mubr.f32.gmra.mrb[0].mxu0 %v3390
    %v3392 = vpop.f32.mrb[0].mxu0
    %v3393 = vadd.f32 %v3230, %v3392
    %v3394 = vpop.f32.mrb[0].mxu0
    %3395 = vmatprep.mubr.f32.mxu0 0.0
    %v3396 = vand.u32 %v2601, 4294901760
    %3397 = vmatmul.mubr.f32.gmra.mrb[0].mxu0 %v3396
    %v3398 = vpop.f32.mrb[0].mxu0
    %v3399 = vadd.f32 %v3238, %v3398
    %v3400 = vpop.f32.mrb[0].mxu0
    %3401 = vmatprep.mubr.f32.mxu0 0.0
    %v3402 = vand.u32 %v2604, 4294901760
    %3403 = vmatmul.mubr.f32.gmra.mrb[0].mxu0 %v3402
    %v3404 = vpop.f32.mrb[0].mxu0
    %v3405 = vpop.f32.mrb[0].mxu0
    %v3406 = vadd.f32 %v3247, %v3405
    %3407 = vmatprep.mubr.f32.mxu0 0.0
    %v3408 = vand.u32 %v2607, 4294901760
    %3409 = vmatmul.mubr.f32.gmra.mrb[0].mxu0 %v3408
    %v3410 = vpop.f32.mrb[0].mxu0
    %v3411 = vpop.f32.mrb[0].mxu0
    %v3412 = vadd.f32 %v3255, %v3411
    %3413 = vmatprep.mubr.f32.mxu0 0.0
    %v3414 = vand.u32 %v2610, 4294901760
    %3415 = vmatmul.mubr.f32.gmra.mrb[0].mxu0 %v3414
    %v3416 = vpop.f32.mrb[0].mxu0
    %v3417 = vpop.f32.mrb[0].mxu0
    %v3418 = vadd.f32 %v3263, %v3417
    %3419 = vmatprep.mubr.f32.mxu0 0.0
    %v3420 = vand.u32 %v2613, 4294901760
    %3421 = vmatmul.mubr.f32.gmra.mrb[0].mxu0 %v3420
    %v3422 = vpop.f32.mrb[0].mxu0
    %v3423 = vpop.f32.mrb[0].mxu0
    %v3424 = vadd.f32 %v3271, %v3423
    %3425 = vmatprep.mubr.f32.mxu0 0.0
    %v3426 = vand.u32 %v2616, 4294901760
    %3427 = vmatmul.mubr.f32.gmra.mrb[0].mxu0 %v3426
    %v3428 = vpop.f32.mrb[0].mxu0
    %v3429 = vpop.f32.mrb[0].mxu0
    %v3430 = vadd.f32 %v3279, %v3429
    %3431 = vmatprep.mubr.f32.mxu0 0.0
    %v3432 = vand.u32 %v2619, 4294901760
    %3433 = vmatmul.mubr.f32.gmra.mrb[0].mxu0 %v3432
    %v3434 = vpop.f32.mrb[0].mxu0
    %v3435 = vpop.f32.mrb[0].mxu0
    %v3436 = vadd.f32 %v3287, %v3435
    %3437 = vdwg.mxu0
    %v3438 = vand.u32 %v2564, 4294901760
    %3439 = vmatprep.subr.mxu0 %v3438
    %v3440 = vand.u32 %v2562, 4294901760
    %3441 = vmatpush1.msra.mxu0 %v3440
    %v3442 = vand.u32 %v2571, 4294901760
    %3443 = vmatprep.subr.mxu0 %v3442
    %v3444 = vand.u32 %v2569, 4294901760
    %3445 = vmatpush1.msra.mxu0 %v3444
    %3446 = vmatprep.subr.mxu0 0.0
    %3447 = vmatpush1.msra.mxu0 0.0
    %3448 = vmatprep.subr.mxu0 0.0
    %3449 = vmatpush1.msra.mxu0 0.0
    %3450 = vmatprep.subr.mxu0 0.0
    %3451 = vmatpush1.msra.mxu0 0.0
    %3452 = vmatprep.subr.mxu0 0.0
    %3453 = vmatpush1.msra.mxu0 0.0
    %3454 = vmatprep.subr.mxu0 0.0
    %3455 = vmatpush1.msra.mxu0 0.0
    %3456 = vmatprep.subr.mxu0 0.0
    %3457 = vmatpush1.msra.mxu0 0.0
    %3458 = vmatprep.subr.mxu0 0.0
    %3459 = vmatpush1.msra.mxu0 0.0
    %3460 = vmatprep.subr.mxu0 0.0
    %3461 = vmatpush1.msra.mxu0 0.0
    %3462 = vmatprep.subr.mxu0 0.0
    %3463 = vmatpush1.msra.mxu0 0.0
    %3464 = vmatprep.subr.mxu0 0.0
    %3465 = vmatpush1.msra.mxu0 0.0
    %3466 = vmatprep.subr.mxu0 0.0
    %3467 = vmatpush1.msra.mxu0 0.0
    %3468 = vmatprep.subr.mxu0 0.0
    %3469 = vmatpush1.msra.mxu0 0.0
    %3470 = vmatprep.subr.mxu0 0.0
    %3471 = vmatpush1.msra.mxu0 0.0
    %3472 = vmatprep.subr.mxu0 0.0
    %3473 = vmatpush1.msra.mxu0 0.0
    %3474 = vmatprep.subr.mxu0 0.0
    %3475 = vmatpush1.msra.mxu0 0.0
    %3476 = vmatprep.subr.mxu0 0.0
    %3477 = vmatpush1.msra.mxu0 0.0
    %3478 = vmatprep.subr.mxu0 0.0
    %3479 = vmatpush1.msra.mxu0 0.0
    %3480 = vmatprep.subr.mxu0 0.0
    %3481 = vmatpush1.msra.mxu0 0.0
    %3482 = vmatprep.subr.mxu0 0.0
    %3483 = vmatpush1.msra.mxu0 0.0
    %3484 = vmatprep.subr.mxu0 0.0
    %3485 = vmatpush1.msra.mxu0 0.0
    %3486 = vmatprep.subr.mxu0 0.0
    %3487 = vmatpush1.msra.mxu0 0.0
    %3488 = vmatprep.subr.mxu0 0.0
    %3489 = vmatpush1.msra.mxu0 0.0
    %3490 = vmatprep.subr.mxu0 0.0
    %3491 = vmatpush1.msra.mxu0 0.0
    %3492 = vmatprep.subr.mxu0 0.0
    %3493 = vmatpush1.msra.mxu0 0.0
    %3494 = vmatprep.subr.mxu0 0.0
    %3495 = vmatpush1.msra.mxu0 0.0
    %3496 = vmatprep.subr.mxu0 0.0
    %3497 = vmatpush1.msra.mxu0 0.0
    %3498 = vmatprep.subr.mxu0 0.0
    %3499 = vmatpush1.msra.mxu0 0.0
    %3500 = vmatprep.subr.mxu0 0.0
    %3501 = vmatpush1.msra.mxu0 0.0
    %3502 = vmatprep.subr.mxu0 0.0
    %3503 = vmatpush1.msra.mxu0 0.0
    %3504 = vmatprep.subr.mxu0 0.0
    %3505 = vmatpush1.msra.mxu0 0.0
    %3506 = vmatprep.mubr.f32.mxu0 0.0
    %v3507 = vand.u32 %v2586, 4294901760
    %3508 = vmatmul.mubr.f32.gmra.mrb[0].mxu0 %v3507
    %v3509 = vpop.f32.mrb[0].mxu0
    %v3510 = vadd.f32 %v3369, %v3509
    %v3511 = vpop.f32.mrb[0].mxu0
    %3512 = vmatprep.mubr.f32.mxu0 0.0
    %v3513 = vand.u32 %v2589, 4294901760
    %3514 = vmatmul.mubr.f32.gmra.mrb[0].mxu0 %v3513
    %v3515 = vpop.f32.mrb[0].mxu0
    %v3516 = vadd.f32 %v3375, %v3515
    %v3517 = vpop.f32.mrb[0].mxu0
    %3518 = vmatprep.mubr.f32.mxu0 0.0
    %v3519 = vand.u32 %v2592, 4294901760
    %3520 = vmatmul.mubr.f32.gmra.mrb[0].mxu0 %v3519
    %v3521 = vpop.f32.mrb[0].mxu0
    %v3522 = vadd.f32 %v3381, %v3521
    %v3523 = vpop.f32.mrb[0].mxu0
    %3524 = vmatprep.mubr.f32.mxu0 0.0
    %v3525 = vand.u32 %v2595, 4294901760
    %3526 = vmatmul.mubr.f32.gmra.mrb[0].mxu0 %v3525
    %v3527 = vpop.f32.mrb[0].mxu0
    %v3528 = vadd.f32 %v3387, %v3527
    %v3529 = vpop.f32.mrb[0].mxu0
    %3530 = vmatprep.mubr.f32.mxu0 0.0
    %v3531 = vand.u32 %v2598, 4294901760
    %3532 = vmatmul.mubr.f32.gmra.mrb[0].mxu0 %v3531
    %v3533 = vpop.f32.mrb[0].mxu0
    %v3534 = vadd.f32 %v3393, %v3533
    %v3535 = vpop.f32.mrb[0].mxu0
    %3536 = vmatprep.mubr.f32.mxu0 0.0
    %v3537 = vand.u32 %v2601, 4294901760
    %3538 = vmatmul.mubr.f32.gmra.mrb[0].mxu0 %v3537
    %v3539 = vpop.f32.mrb[0].mxu0
    %v3540 = vadd.f32 %v3399, %v3539
    %v3541 = vpop.f32.mrb[0].mxu0
    %3542 = vmatprep.mubr.f32.mxu0 0.0
    %v3543 = vand.u32 %v2604, 4294901760
    %3544 = vmatmul.mubr.f32.gmra.mrb[0].mxu0 %v3543
    %v3545 = vpop.f32.mrb[0].mxu0
    %v3546 = vpop.f32.mrb[0].mxu0
    %v3547 = vadd.f32 %v3406, %v3546
    %3548 = vmatprep.mubr.f32.mxu0 0.0
    %v3549 = vand.u32 %v2607, 4294901760
    %3550 = vmatmul.mubr.f32.gmra.mrb[0].mxu0 %v3549
    %v3551 = vpop.f32.mrb[0].mxu0
    %v3552 = vpop.f32.mrb[0].mxu0
    %v3553 = vadd.f32 %v3412, %v3552
    %3554 = vmatprep.mubr.f32.mxu0 0.0
    %v3555 = vand.u32 %v2610, 4294901760
    %3556 = vmatmul.mubr.f32.gmra.mrb[0].mxu0 %v3555
    %v3557 = vpop.f32.mrb[0].mxu0
    %v3558 = vpop.f32.mrb[0].mxu0
    %v3559 = vadd.f32 %v3418, %v3558
    %3560 = vmatprep.mubr.f32.mxu0 0.0
    %v3561 = vand.u32 %v2613, 4294901760
    %3562 = vmatmul.mubr.f32.gmra.mrb[0].mxu0 %v3561
    %v3563 = vpop.f32.mrb[0].mxu0
    %v3564 = vpop.f32.mrb[0].mxu0
    %v3565 = vadd.f32 %v3424, %v3564
    %3566 = vmatprep.mubr.f32.mxu0 0.0
    %v3567 = vand.u32 %v2616, 4294901760
    %3568 = vmatmul.mubr.f32.gmra.mrb[0].mxu0 %v3567
    %v3569 = vpop.f32.mrb[0].mxu0
    %v3570 = vpop.f32.mrb[0].mxu0
    %v3571 = vadd.f32 %v3430, %v3570
    %3572 = vmatprep.mubr.f32.mxu0 0.0
    %v3573 = vand.u32 %v2619, 4294901760
    %3574 = vmatmul.mubr.f32.gmra.mrb[0].mxu0 %v3573
    %v3575 = vpop.f32.mrb[0].mxu0
    %v3576 = vpop.f32.mrb[0].mxu0
    %v3577 = vadd.f32 %v3436, %v3576
    %3578 = vdwg.mxu0
    %v3579 = vsub.f32 %v3510, %v3547
    %v3580 = vsub.f32 %v3516, %v3553
    %v3581 = vsub.f32 %v3522, %v3559
    %v3582 = vsub.f32 %v3528, %v3565
    %v3583 = vsub.f32 %v3534, %v3571
    %v3584 = vsub.f32 %v3540, %v3577
    %v3585 = vmul.f32 %v3579, 0.00390625
    %v3586 = vmul.f32 %v3581, 0.00390625
    %v3587 = vmul.f32 %v3583, 0.00390625
    %v3588 = vmul.f32 %v3580, 0.00390625
    %v3589 = vmul.f32 %v3582, 0.00390625
    %v3590 = vmul.f32 %v3584, 0.00390625
    %v3591 = vld [vmem:[#allocation5] sm:$0xff]
    %v3592 = vld [vmem:[#allocation5 + $0x8] sm:$0xff]
    %v3593 = vld [vmem:[#allocation5 + $0x10] sm:$0xff]
    %v3594 = vld [vmem:[#allocation5 + $0x18] sm:$0xff]
    %v3595 = vld [vmem:[#allocation5 + $0x20] sm:$0xff]
    %v3596 = vld [vmem:[#allocation5 + $0x28] sm:$0xff]
    %v3597 = vld [vmem:[#allocation5 + $0x30] sm:$0xff]
    %v3598 = vld [vmem:[#allocation5 + $0x38] sm:$0xff]
    %v3599 = vld [vmem:[#allocation5 + $0x40] sm:$0xff]
    %v3600 = vld [vmem:[#allocation5 + $0x48] sm:$0xff]
    %v3601 = vld [vmem:[#allocation5 + $0x50] sm:$0xff]
    %v3602 = vld [vmem:[#allocation5 + $0x58] sm:$0xff]
    %v3603 = vld [vmem:[#allocation5 + $0x60] sm:$0xff]
    %v3604 = vld [vmem:[#allocation5 + $0x68] sm:$0xff]
    %v3605 = vld [vmem:[#allocation5 + $0x70] sm:$0xff]
    %v3606 = vld [vmem:[#allocation5 + $0x78] sm:$0xff]
    %v3607 = vld [vmem:[#allocation5 + $0x80] sm:$0xff]
    %v3608 = vld [vmem:[#allocation5 + $0x88] sm:$0xff]
    %v3609 = vld [vmem:[#allocation5 + $0x90] sm:$0xff]
    %v3610 = vld [vmem:[#allocation5 + $0x98] sm:$0xff]
    %v3611 = vld [vmem:[#allocation5 + $0xa0] sm:$0xff]
    %v3612 = vld [vmem:[#allocation5 + $0xa8] sm:$0xff]
    %v3613 = vld [vmem:[#allocation5 + $0xb0] sm:$0xff]
    %v3614 = vld [vmem:[#allocation5 + $0xb8] sm:$0xff]
    %v3615 = vld [vmem:[#allocation5 + $0xc0] sm:$0xff]
    %v3616 = vld [vmem:[#allocation5 + $0xc8] sm:$0xff]
    %v3617 = vld [vmem:[#allocation5 + $0xd0] sm:$0xff]
    %v3618 = vld [vmem:[#allocation5 + $0xd8] sm:$0xff]
    %v3619 = vld [vmem:[#allocation5 + $0xe0] sm:$0xff]
    %v3620 = vld [vmem:[#allocation5 + $0xe8] sm:$0xff]
    %v3621 = vld [vmem:[#allocation5 + $0xf0] sm:$0xff]
    %v3622 = vld [vmem:[#allocation5 + $0xf8] sm:$0xff]
    %v3623 = vld [vmem:[#allocation5 + $0x100] sm:$0xff]
    %v3624 = vld [vmem:[#allocation5 + $0x108] sm:$0xff]
    %v3625 = vld [vmem:[#allocation5 + $0x110] sm:$0xff]
    %v3626 = vld [vmem:[#allocation5 + $0x118] sm:$0xff]
    %v3627 = vld [vmem:[#allocation5 + $0x120] sm:$0xff]
    %v3628 = vld [vmem:[#allocation5 + $0x128] sm:$0xff]
    %v3629 = vld [vmem:[#allocation5 + $0x130] sm:$0xff]
    %v3630 = vld [vmem:[#allocation5 + $0x138] sm:$0xff]
    %v3631 = vld [vmem:[#allocation5 + $0x140] sm:$0xff]
    %v3632 = vld [vmem:[#allocation5 + $0x148] sm:$0xff]
    %v3633 = vld [vmem:[#allocation5 + $0x150] sm:$0xff]
    %v3634 = vld [vmem:[#allocation5 + $0x158] sm:$0xff]
    %v3635 = vld [vmem:[#allocation5 + $0x160] sm:$0xff]
    %v3636 = vld [vmem:[#allocation5 + $0x168] sm:$0xff]
    %v3637 = vld [vmem:[#allocation5 + $0x170] sm:$0xff]
    %v3638 = vld [vmem:[#allocation5 + $0x178] sm:$0xff]
    %v3639 = vld [vmem:[%s5] sm:$0x1]
    %v3641 = vlaneseq
    %v3642 = vshrl.u32 %v3641, 7
    %v3643 = vsub.s32 0, %v3642
    %v3644 = vrot.slane %v3639, %v3643
    %3646 = vmatprep.subr.mxu0 0.0
    %3647 = vmatpush1.msra.mxu0 %v3591
    %3648 = vmatprep.subr.mxu0 0.0
    %3649 = vmatpush1.msra.mxu0 %v3592
    %3650 = vmatprep.subr.mxu0 0.0
    %3651 = vmatpush1.msra.mxu0 %v3593
    %3652 = vmatprep.subr.mxu0 0.0
    %3653 = vmatpush1.msra.mxu0 %v3594
    %3654 = vmatprep.subr.mxu0 0.0
    %3655 = vmatpush1.msra.mxu0 %v3595
    %3656 = vmatprep.subr.mxu0 0.0
    %3657 = vmatpush1.msra.mxu0 %v3596
    %3658 = vmatprep.subr.mxu0 0.0
    %3659 = vmatpush1.msra.mxu0 %v3597
    %3660 = vmatprep.subr.mxu0 0.0
    %3661 = vmatpush1.msra.mxu0 %v3598
    %3662 = vmatprep.subr.mxu0 0.0
    %3663 = vmatpush1.msra.mxu0 %v3599
    %3664 = vmatprep.subr.mxu0 0.0
    %3665 = vmatpush1.msra.mxu0 %v3600
    %3666 = vmatprep.subr.mxu0 0.0
    %3667 = vmatpush1.msra.mxu0 %v3601
    %3668 = vmatprep.subr.mxu0 0.0
    %3669 = vmatpush1.msra.mxu0 %v3602
    %3670 = vmatprep.subr.mxu0 0.0
    %3671 = vmatpush1.msra.mxu0 %v3603
    %3672 = vmatprep.subr.mxu0 0.0
    %3673 = vmatpush1.msra.mxu0 %v3604
    %3674 = vmatprep.subr.mxu0 0.0
    %3675 = vmatpush1.msra.mxu0 %v3605
    %3676 = vmatprep.subr.mxu0 0.0
    %3677 = vmatpush1.msra.mxu0 %v3606
    %3678 = vmatprep.subr.mxu0 0.0
    %3679 = vmatpush1.msra.mxu0 %v3607
    %3680 = vmatprep.subr.mxu0 0.0
    %3681 = vmatpush1.msra.mxu0 %v3608
    %3682 = vmatprep.subr.mxu0 0.0
    %3683 = vmatpush1.msra.mxu0 %v3609
    %3684 = vmatprep.subr.mxu0 0.0
    %3685 = vmatpush1.msra.mxu0 %v3610
    %3686 = vmatprep.subr.mxu0 0.0
    %3687 = vmatpush1.msra.mxu0 %v3611
    %3688 = vmatprep.subr.mxu0 0.0
    %3689 = vmatpush1.msra.mxu0 %v3612
    %3690 = vmatprep.subr.mxu0 0.0
    %3691 = vmatpush1.msra.mxu0 %v3613
    %3692 = vmatprep.subr.mxu0 0.0
    %3693 = vmatpush1.msra.mxu0 %v3614
    %3694 = vmatprep.subr.mxu0 0.0
    %3695 = vmatpush1.msra.mxu0 %v3615
    %3696 = vmatprep.subr.mxu0 0.0
    %3697 = vmatpush1.msra.mxu0 %v3616
    %3698 = vmatprep.subr.mxu0 0.0
    %3699 = vmatpush1.msra.mxu0 %v3617
    %3700 = vmatprep.subr.mxu0 0.0
    %3701 = vmatpush1.msra.mxu0 %v3618
    %3702 = vmatprep.subr.mxu0 0.0
    %3703 = vmatpush1.msra.mxu0 %v3619
    %3704 = vmatprep.subr.mxu0 0.0
    %3705 = vmatpush1.msra.mxu0 %v3620
    %3706 = vmatprep.subr.mxu0 0.0
    %3707 = vmatpush1.msra.mxu0 %v3621
    %3708 = vmatprep.subr.mxu0 0.0
    %3709 = vmatpush1.msra.mxu0 %v3622
    %3710 = vmatprep.mubr.f32.mxu0 %v3586
    %3711 = vmatmul.mubr.f32.gmra.mrb[0].mxu0 %v3585
    %v3712 = vpop.f32.mrb[0].mxu0
    %v3713 = vadd.f32 %v3644, %v3712
    %v3714 = vpop.f32.mrb[0].mxu0
    %3715 = vmatprep.mubr.f32.mxu0 %v3589
    %3716 = vmatmul.mubr.f32.gmra.mrb[0].mxu0 %v3588
    %v3717 = vpop.f32.mrb[0].mxu0
    %v3718 = vadd.f32 %v3644, %v3717
    %v3719 = vpop.f32.mrb[0].mxu0
    %3720 = vdwg.mxu0
    %3721 = vmatprep.subr.mxu0 0.0
    %3722 = vmatpush1.msra.mxu0 %v3623
    %3723 = vmatprep.subr.mxu0 0.0
    %3724 = vmatpush1.msra.mxu0 %v3624
    %3725 = vmatprep.subr.mxu0 0.0
    %3726 = vmatpush1.msra.mxu0 %v3625
    %3727 = vmatprep.subr.mxu0 0.0
    %3728 = vmatpush1.msra.mxu0 %v3626
    %3729 = vmatprep.subr.mxu0 0.0
    %3730 = vmatpush1.msra.mxu0 %v3627
    %3731 = vmatprep.subr.mxu0 0.0
    %3732 = vmatpush1.msra.mxu0 %v3628
    %3733 = vmatprep.subr.mxu0 0.0
    %3734 = vmatpush1.msra.mxu0 %v3629
    %3735 = vmatprep.subr.mxu0 0.0
    %3736 = vmatpush1.msra.mxu0 %v3630
    %3737 = vmatprep.subr.mxu0 0.0
    %3738 = vmatpush1.msra.mxu0 %v3631
    %3739 = vmatprep.subr.mxu0 0.0
    %3740 = vmatpush1.msra.mxu0 %v3632
    %3741 = vmatprep.subr.mxu0 0.0
    %3742 = vmatpush1.msra.mxu0 %v3633
    %3743 = vmatprep.subr.mxu0 0.0
    %3744 = vmatpush1.msra.mxu0 %v3634
    %3745 = vmatprep.subr.mxu0 0.0
    %3746 = vmatpush1.msra.mxu0 %v3635
    %3747 = vmatprep.subr.mxu0 0.0
    %3748 = vmatpush1.msra.mxu0 %v3636
    %3749 = vmatprep.subr.mxu0 0.0
    %3750 = vmatpush1.msra.mxu0 %v3637
    %3751 = vmatprep.subr.mxu0 0.0
    %3752 = vmatpush1.msra.mxu0 %v3638
    %3753 = vmatprep.subr.mxu0 0.0
    %3754 = vmatpush1.msra.mxu0 0.0
    %3755 = vmatprep.subr.mxu0 0.0
    %3756 = vmatpush1.msra.mxu0 0.0
    %3757 = vmatprep.subr.mxu0 0.0
    %3758 = vmatpush1.msra.mxu0 0.0
    %3759 = vmatprep.subr.mxu0 0.0
    %3760 = vmatpush1.msra.mxu0 0.0
    %3761 = vmatprep.subr.mxu0 0.0
    %3762 = vmatpush1.msra.mxu0 0.0
    %3763 = vmatprep.subr.mxu0 0.0
    %3764 = vmatpush1.msra.mxu0 0.0
    %3765 = vmatprep.subr.mxu0 0.0
    %3766 = vmatpush1.msra.mxu0 0.0
    %3767 = vmatprep.subr.mxu0 0.0
    %3768 = vmatpush1.msra.mxu0 0.0
    %3769 = vmatprep.subr.mxu0 0.0
    %3770 = vmatpush1.msra.mxu0 0.0
    %3771 = vmatprep.subr.mxu0 0.0
    %3772 = vmatpush1.msra.mxu0 0.0
    %3773 = vmatprep.subr.mxu0 0.0
    %3774 = vmatpush1.msra.mxu0 0.0
    %3775 = vmatprep.subr.mxu0 0.0
    %3776 = vmatpush1.msra.mxu0 0.0
    %3777 = vmatprep.subr.mxu0 0.0
    %3778 = vmatpush1.msra.mxu0 0.0
    %3779 = vmatprep.subr.mxu0 0.0
    %3780 = vmatpush1.msra.mxu0 0.0
    %3781 = vmatprep.subr.mxu0 0.0
    %3782 = vmatpush1.msra.mxu0 0.0
    %3783 = vmatprep.subr.mxu0 0.0
    %3784 = vmatpush1.msra.mxu0 0.0
    %3785 = vmatprep.mubr.f32.mxu0 0.0
    %3786 = vmatmul.mubr.f32.gmra.mrb[0].mxu0 %v3587
    %v3787 = vpop.f32.mrb[0].mxu0
    %v3788 = vadd.f32 %v3713, %v3787
    %v3789 = vpop.f32.mrb[0].mxu0
    %3790 = vmatprep.mubr.f32.mxu0 0.0
    %3791 = vmatmul.mubr.f32.gmra.mrb[0].mxu0 %v3590
    %v3792 = vpop.f32.mrb[0].mxu0
    %v3793 = vadd.f32 %v3718, %v3792
    %v3794 = vpop.f32.mrb[0].mxu0
    %3795 = vdwg.mxu0
    %v3796 = vmax.f32 %v3788, 0.0
    %v3797 = vmax.f32 %v3793, 0.0
    %3798 = vst [vmem:[#allocation7] sm:$0xff] %v3796
    %3799 = vst [vmem:[#allocation7 + $0x8] sm:$0xff] %v3797
    // Predicated region
    $region34: #{tpu_custom_call.1} parent=1 // pred_check
      _
    $region35: #{tpu_custom_call.1} parent=1 // pred_check_branch
      %3801 = sbr.rel (0) target = $region37
    $region36: #{tpu_custom_call.1} parent=1 // pred_region
      %s3803 = ssub.s32 256, 256
      %3804 = vsyncadd [#allocation4], %s3803
      %s3805 = sshll.u32 [#allocation7], 4
      %s3806 = int_to_ptr.vmem [resolvable:$true] %s3805
      %3811 = dma.vmem_to_hbm [thread:$0]  %s3806, 256, %s6, [#allocation4], 128, 128, 8
    $region37: #{tpu_custom_call.1} parent=1 // pred_fallthru
      _
    // Predicated region
    $region38: #{tpu_custom_call.1} parent=1 // pred_check
      _
    $region39: #{tpu_custom_call.1} parent=1 // pred_check_branch
      %3813 = sbr.rel (0) target = $region41
    $region40: #{tpu_custom_call.1} parent=1 // pred_region
      %3814 = dma.done [#allocation4], 256
    $region41: #{tpu_custom_call.1} parent=1 // pred_fallthru
      _
    %3815 = vsyncpa [#allocation3], 1
    %3816 = vsyncpa [#allocation6], 1
    %3817 = vsyncpa [#allocation4], 1

</llo_original>
